<compile_context>
chip_gen: v6e
topology: v6e:2x2x1
jax: 0.10.0
libtpu: 0.0.40
codegen_flags: <defaults>
</compile_context>

<pallas_src>
import functools

import jax
import jax.numpy as jnp
from jax.experimental import pallas as pl
from jax.experimental.pallas import tpu as pltpu

VMEM = pltpu.MemorySpace.VMEM
LANE = 128
# 48 MiB: safe under v7x's 64 MiB physical VMEM; raise toward ~100 MiB on v5e/v6e if desired.
VMEM_LIMIT_BYTES = 48 * 1024 * 1024


# ----------------------------- in-kernel helpers ---------------------------- #

def _layernorm_f32(x, g, b, eps):
    """LayerNorm over the last axis; all math in f32 vregs."""
    mu = jnp.mean(x, axis=-1, keepdims=True)
    var = jnp.mean(jnp.square(x - mu), axis=-1, keepdims=True)
    return (x - mu) * jax.lax.rsqrt(var + eps) * g + b


def _gelu_tanh(x):
    # TODO(synk): HF ELECTRA default is exact erf-GELU; tanh approximation used here (Mosaic-safe).
    return 0.5 * x * (1.0 + jnp.tanh(0.7978845608028654 * (x + 0.044715 * x * x * x)))


# ------------------------------ Pallas kernels ------------------------------ #

def _embed_ln_kernel(w_ref, t_ref, p_ref, g_ref, b_ref, o_ref, *, eps):
    """(word + position + token_type) embeddings, then LayerNorm.  One batch row per grid step."""
    h = (w_ref[0].astype(jnp.float32) + t_ref[0].astype(jnp.float32)
         + p_ref[0].astype(jnp.float32))                      # (S, H) f32
    o_ref[0] = _layernorm_f32(h, g_ref[...], b_ref[...], eps).astype(o_ref.dtype)


def _layer_kernel(h_ref, m_ref, wqkv_ref, bqkv_ref, wo_ref, bo_ref,
                  g1_ref, b1_ref, wi_ref, bi_ref, wf_ref, bf_ref,
                  g2_ref, b2_ref, o_ref, *, n_heads, eps, cls_only):
    """One full transformer encoder layer for one batch element (grid step).

    cls_only=True: only the CLS (token 0) row goes through out-proj / FFN / LN2 and is written.
    """
    x_bf = h_ref[0]                                           # (S, H) bf16
    S, H = x_bf.shape
    dH = H // n_heads

    # ---- fused QKV projection ([S,H] x [H,3H], f32 accumulation).  Softmax scale was folded
    #      into wq / bq at prepare_params time, so no in-kernel scaling.
    qkv = jnp.dot(x_bf, wqkv_ref[...], preferred_element_type=jnp.float32) + bqkv_ref[...]

    # 128-lane-aligned slabs, cast to bf16 immediately (shortens the f32 QKV live range).
    k_bf = qkv[:, H:2 * H].astype(jnp.bfloat16)
    v_bf = qkv[:, 2 * H:].astype(jnp.bfloat16)
    if cls_only:
        q_bf = qkv[0:1, 0:H].astype(jnp.bfloat16)             # only CLS query is needed
        x_res = x_bf[0:1].astype(jnp.float32)
    else:
        q_bf = qkv[:, 0:H].astype(jnp.bfloat16)
        x_res = x_bf.astype(jnp.float32)

    def to_heads(x2d):                                        # (rows, H) -> (nH, rows, dH)
        rows = x2d.shape[0]
        return jnp.swapaxes(x2d.reshape(rows, n_heads, dH), 0, 1)

    q3, k3, v3 = to_heads(q_bf), to_heads(k_bf), to_heads(v_bf)
    Sq = q3.shape[1]

    # ---- head-batched attention (no per-head loop, no misaligned slices) ----
    mask = m_ref[0]                                           # (1, S) additive key mask, f32
    s = jnp.einsum("hqd,hkd->hqk", q3, k3,
                   preferred_element_type=jnp.float32)        # (nH, Sq, S)
    s = s + mask                                              # single add, broadcast over heads/rows
    s = s - jnp.max(s, axis=-1, keepdims=True)
    p = jnp.exp(s)
    p = p * pl.reciprocal(jnp.sum(p, axis=-1, keepdims=True), approx=True)
    ctx = jnp.einsum("hqk,hkd->hqd", p.astype(jnp.bfloat16), v3,
                     preferred_element_type=jnp.float32)      # (nH, Sq, dH)

    # ---- output projection as ONE deep (K=H) contraction ----
    ctx2 = jnp.swapaxes(ctx, 0, 1).reshape(Sq, H)             # (Sq, H)
    attn = jnp.dot(ctx2.astype(jnp.bfloat16), wo_ref[...],
                   preferred_element_type=jnp.float32)        # (Sq, H)

    # ---- residual + LayerNorm epilogue (f32) ----
    h1 = _layernorm_f32(attn + bo_ref[...] + x_res, g1_ref[...], b1_ref[...], eps)

    # ---- FFN with GELU, then residual + LayerNorm epilogue ----
    inter = jnp.dot(h1.astype(jnp.bfloat16), wi_ref[...],
                    preferred_element_type=jnp.float32) + bi_ref[...]
    inter = _gelu_tanh(inter)
    ffn = jnp.dot(inter.astype(jnp.bfloat16), wf_ref[...],
                  preferred_element_type=jnp.float32) + bf_ref[...]
    h2 = _layernorm_f32(ffn + h1, g2_ref[...], b2_ref[...], eps)

    o_ref[0] = h2.astype(o_ref.dtype)


def _head_kernel(x_ref, w_ref, b_ref, o_ref):
    """CLS classifier head; output padded to 128 lanes so the store is lane-dense."""
    o_ref[...] = (jnp.dot(x_ref[...], w_ref[...], preferred_element_type=jnp.float32)
                  + b_ref[...]).astype(o_ref.dtype)


# ------------------------------ kernel wrappers ------------------------------ #

def embed_layernorm(word, typ, pos, gamma, beta, eps=1e-12):
    """LayerNorm(word + pos + type) -> bf16 activations.
    word/typ: (B,S,H) bf16 gathered rows, pos: (1,S,H) bf16 (resident), gamma/beta: (H,) f32."""
    B, S, H = word.shape
    return pl.pallas_call(
        functools.partial(_embed_ln_kernel, eps=eps),
        out_shape=jax.ShapeDtypeStruct((B, S, H), jnp.bfloat16),
        grid=(B,),
        in_specs=[
            pl.BlockSpec((1, S, H), lambda b: (b, 0, 0)),     # word rows (per-batch block)
            pl.BlockSpec((1, S, H), lambda b: (b, 0, 0)),     # token-type rows
            pl.BlockSpec(memory_space=VMEM),                  # position embeddings, resident
            pl.BlockSpec(memory_space=VMEM),                  # LN gamma
            pl.BlockSpec(memory_space=VMEM),                  # LN beta
        ],
        out_specs=pl.BlockSpec((1, S, H), lambda b: (b, 0, 0)),
        compiler_params=pltpu.CompilerParams(
            dimension_semantics=("parallel",),
            vmem_limit_bytes=VMEM_LIMIT_BYTES,
        ),
    )(word, typ, pos, gamma.reshape(1, H), beta.reshape(1, H))


def encoder_layer(h, mask3, lp, cfg, cls_only=False):
    """One fused encoder layer; h: (B,S,H) bf16, mask3: (B,1,S) f32 additive key mask.
    cls_only=True -> only the CLS row of the layer output is computed/written, shape (B,1,H)."""
    B, S, H = h.shape
    nH = cfg["n_heads"]
    S_out = 1 if cls_only else S

    # Weights/biases/LN params: un-blocked whole-array VMEM operands -> resident once across the
    # batch grid, NOT double-buffered (the single-buffer "Buffered(1)" recommendation).
    wspec = pl.BlockSpec(memory_space=VMEM)

    return pl.pallas_call(
        functools.partial(_layer_kernel, n_heads=nH, eps=1e-12, cls_only=cls_only),
        out_shape=jax.ShapeDtypeStruct((B, S_out, H), jnp.bfloat16),
        grid=(B,),
        in_specs=[
            pl.BlockSpec((1, S, H), lambda b: (b, 0, 0)),     # h (per-batch block)
            pl.BlockSpec((1, 1, S), lambda b: (b, 0, 0)),     # additive key mask
            wspec, wspec,                                     # fused QKV weight / bias
            wspec, wspec,                                     # attention output proj
            wspec, wspec,                                     # LN1 gamma / beta
            wspec, wspec,                                     # FFN in
            wspec, wspec,                                     # FFN out
            wspec, wspec,                                     # LN2 gamma / beta
        ],
        out_specs=pl.BlockSpec((1, S_out, H), lambda b: (b, 0, 0)),
        compiler_params=pltpu.CompilerParams(
            dimension_semantics=("parallel",),                # megacore: split batch across TCs
            vmem_limit_bytes=VMEM_LIMIT_BYTES,
        ),
    )(h, mask3, lp["wqkv"], lp["bqkv"], lp["wo"], lp["bo"], lp["ln1_g"], lp["ln1_b"],
      lp["wi"], lp["bi"], lp["wf"], lp["bf"], lp["ln2_g"], lp["ln2_b"])


def cls_head(cls_bf16, w_pad, b_pad):
    """logits = cls @ W + b with the class axis padded to 128 lanes (sliced by caller)."""
    B = cls_bf16.shape[0]
    N = w_pad.shape[1]
    return pl.pallas_call(
        _head_kernel,
        out_shape=jax.ShapeDtypeStruct((B, N), jnp.float32),
        in_specs=[pl.BlockSpec(memory_space=VMEM)] * 3,
        out_specs=pl.BlockSpec(memory_space=VMEM),
    )(cls_bf16, w_pad, b_pad)


# ------------------------ parameter init & preparation ----------------------- #

def init_params(key, cfg):
    """Torch-layout parameters (Linear weights stored as [in, out] == torch weight.T), f32."""
    H, I = cfg["hidden"], cfg["intermediate"]

    def normal(k, shape):
        return jax.random.normal(k, shape, jnp.float32) * 0.02

    keys = iter(jax.random.split(key, 8 + 16 * cfg["n_layers"]))
    params = {
        "word_emb": normal(next(keys), (cfg["vocab_size"], H)),
        "pos_emb": normal(next(keys), (cfg["max_pos"], H)),
        "type_emb": normal(next(keys), (cfg["type_vocab"], H)),
        "emb_ln_g": jnp.ones((H,), jnp.float32),
        "emb_ln_b": jnp.zeros((H,), jnp.float32),
        "fc_w": normal(next(keys), (H, cfg["num_classes"])),
        "fc_b": jnp.zeros((cfg["num_classes"],), jnp.float32),
        "layers": [],
    }
    for _ in range(cfg["n_layers"]):
        params["layers"].append({
            "wq": normal(next(keys), (H, H)), "bq": jnp.zeros((H,), jnp.float32),
            "wk": normal(next(keys), (H, H)), "bk": jnp.zeros((H,), jnp.float32),
            "wv": normal(next(keys), (H, H)), "bv": jnp.zeros((H,), jnp.float32),
            "wo": normal(next(keys), (H, H)), "bo": jnp.zeros((H,), jnp.float32),
            "ln1_g": jnp.ones((H,), jnp.float32), "ln1_b": jnp.zeros((H,), jnp.float32),
            "wi": normal(next(keys), (H, I)), "bi": jnp.zeros((I,), jnp.float32),
            "wf": normal(next(keys), (I, H)), "bf": jnp.zeros((H,), jnp.float32),
            "ln2_g": jnp.ones((H,), jnp.float32), "ln2_b": jnp.zeros((H,), jnp.float32),
        })
    return params


def prepare_params(params, cfg):
    """Kernel-ready weights: bf16 MXU operands, fused QKV with the softmax scale folded into
    wq/bq, row-vector f32 biases, bf16 embedding tables, lane-padded classifier head."""
    H = cfg["hidden"]
    nH = cfg["n_heads"]
    scale = float(H // nH) ** -0.5
    nc = cfg["num_classes"]
    npad = ((nc + LANE - 1) // LANE) * LANE

    def w16(w):
        return w.astype(jnp.bfloat16)

    def row(b):
        return b.reshape(1, -1).astype(jnp.float32)

    fc_w_pad = jnp.zeros((H, npad), jnp.float32).at[:, :nc].set(params["fc_w"])
    fc_b_pad = jnp.zeros((1, npad), jnp.float32).at[:, :nc].set(params["fc_b"])

    prep = {
        "word_emb": w16(params["word_emb"]),
        "pos_emb": w16(params["pos_emb"]),
        "type_emb": w16(params["type_emb"]),
        "emb_ln_g": params["emb_ln_g"],
        "emb_ln_b": params["emb_ln_b"],
        "fc_w_pad": w16(fc_w_pad),
        "fc_b_pad": fc_b_pad,
        "layers": [],
    }
    for lp in params["layers"]:
        prep["layers"].append({
            # softmax 1/sqrt(dH) folded into the Q slab of the fused QKV weight + bias (free).
            "wqkv": w16(jnp.concatenate([lp["wq"] * scale, lp["wk"], lp["wv"]], axis=1)),
            "bqkv": row(jnp.concatenate([lp["bq"] * scale, lp["bk"], lp["bv"]])),
            "wo": w16(lp["wo"]), "bo": row(lp["bo"]),
            "ln1_g": row(lp["ln1_g"]), "ln1_b": row(lp["ln1_b"]),
            "wi": w16(lp["wi"]), "bi": row(lp["bi"]),
            "wf": w16(lp["wf"]), "bf": row(lp["bf"]),
            "ln2_g": row(lp["ln2_g"]), "ln2_b": row(lp["ln2_b"]),
        })
    return prep


# --------------------------------- forward ----------------------------------- #

def electra_cls_forward(prep, input_ids, attention_mask, token_type_ids, cfg):
    B, S = input_ids.shape

    # Embedding-row gathers stay in XLA (efficient gather); tables stored bf16 halves HBM bytes.
    # TODO(synk): gather rows in-kernel (scalar-prefetch ids + manual DMA) to skip the (B,S,H)
    #             HBM round trip entirely.
    word = jnp.take(prep["word_emb"], input_ids, axis=0)                  # (B,S,H) bf16
    typ = jnp.take(prep["type_emb"], token_type_ids, axis=0)             # (B,S,H) bf16
    pos = prep["pos_emb"][:S][None, :, :]                                 # (1,S,H) bf16
    h = embed_layernorm(word, typ, pos, prep["emb_ln_g"], prep["emb_ln_b"])   # (B,S,H) bf16
    # TODO(synk): HF embeddings_project dense (embedding_size != hidden_size) omitted; equal here.

    # HF-style extended attention mask, kept f32 for the softmax max-subtraction.
    mask3 = ((1.0 - attention_mask.astype(jnp.float32)) * -1e9).reshape(B, 1, S)

    n_layers = len(prep["layers"])
    for li, lp in enumerate(prep["layers"]):
        # Last layer: only the CLS row is consumed downstream -> CLS-only epilogue + (B,1,H) out.
        h = encoder_layer(h, mask3, lp, cfg, cls_only=(li == n_layers - 1))

    # CLS pooling -> dropout (eval-mode identity) -> classifier head.
    cls = h[:, 0, :]                                                      # (B,H) bf16
    # TODO(synk): nn.Dropout(0.5) (and HF hidden/attn-prob dropouts) are identity in eval mode;
    #             train-mode dropout would use pltpu.prng_seed / pltpu.prng_random_bits.
    logits_pad = cls_head(cls, prep["fc_w_pad"], prep["fc_b_pad"])        # (B,128) f32, lane-dense
    return logits_pad[:, :cfg["num_classes"]]


# ----------------------------------- main ------------------------------------ #

if __name__ == "__main__":
    cfg = dict(vocab_size=100, hidden=32, n_layers=2, n_heads=4,
               intermediate=64, max_pos=16, type_vocab=2, num_classes=3)
    B, S = 2, 8

    root = jax.random.PRNGKey(0)
    k_params, k_ids = jax.random.split(root)
    params = init_params(k_params, cfg)
    prep = prepare_params(params, cfg)

    input_ids = jax.random.randint(k_ids, (B, S), 0, cfg["vocab_size"], dtype=jnp.int32)
    attention_mask = jnp.array([[1, 1, 1, 1, 1, 1, 1, 1],
                                [1, 1, 1, 1, 1, 0, 0, 0]], dtype=jnp.int32)
    token_type_ids = jnp.zeros((B, S), dtype=jnp.int32)

    fwd = jax.jit(functools.partial(electra_cls_forward, cfg=cfg))
    logits = fwd(prep, input_ids, attention_mask, token_type_ids)
    logits = jax.block_until_ready(logits)

    assert logits.shape == (B, cfg["num_classes"])
    assert bool(jnp.all(jnp.isfinite(logits)))
    print("KERNEL_OK")
</pallas_src>

<mosaic_0001>
module attributes {stable_mosaic.version = 11 : i64} {
  func.func @_layer_kernel(%arg0: i32, %arg1: memref<1x8x32xbf16, #tpu.memory_space<vmem>>, %arg2: memref<1x1x8xf32, #tpu.memory_space<vmem>>, %arg3: memref<32x96xbf16, #tpu.memory_space<vmem>>, %arg4: memref<1x96xf32, #tpu.memory_space<vmem>>, %arg5: memref<32x32xbf16, #tpu.memory_space<vmem>>, %arg6: memref<1x32xf32, #tpu.memory_space<vmem>>, %arg7: memref<1x32xf32, #tpu.memory_space<vmem>>, %arg8: memref<1x32xf32, #tpu.memory_space<vmem>>, %arg9: memref<32x64xbf16, #tpu.memory_space<vmem>>, %arg10: memref<1x64xf32, #tpu.memory_space<vmem>>, %arg11: memref<64x32xbf16, #tpu.memory_space<vmem>>, %arg12: memref<1x32xf32, #tpu.memory_space<vmem>>, %arg13: memref<1x32xf32, #tpu.memory_space<vmem>>, %arg14: memref<1x32xf32, #tpu.memory_space<vmem>>, %arg15: memref<1x8x32xbf16, #tpu.memory_space<vmem>>) attributes {dimension_semantics = [#tpu.dimension_semantics<parallel>], iteration_bounds = array<i64: 2>, scalar_prefetch = 0 : i64, scratch_operands = 0 : i64, tpu.core_type = #tpu.core_type<tc>, window_params = [{transform_indices = @transform_0, window_bounds = array<i64: 1, 8, 32>}, {transform_indices = @transform_1, window_bounds = array<i64: 1, 1, 8>}, {pipeline_mode = #tpu.pipeline_mode<synchronous>, transform_indices = @transform_2, window_bounds = array<i64: 32, 96>}, {pipeline_mode = #tpu.pipeline_mode<synchronous>, transform_indices = @transform_3, window_bounds = array<i64: 1, 96>}, {pipeline_mode = #tpu.pipeline_mode<synchronous>, transform_indices = @transform_4, window_bounds = array<i64: 32, 32>}, {pipeline_mode = #tpu.pipeline_mode<synchronous>, transform_indices = @transform_5, window_bounds = array<i64: 1, 32>}, {pipeline_mode = #tpu.pipeline_mode<synchronous>, transform_indices = @transform_6, window_bounds = array<i64: 1, 32>}, {pipeline_mode = #tpu.pipeline_mode<synchronous>, transform_indices = @transform_7, window_bounds = array<i64: 1, 32>}, {pipeline_mode = #tpu.pipeline_mode<synchronous>, transform_indices = @transform_8, window_bounds = array<i64: 32, 64>}, {pipeline_mode = #tpu.pipeline_mode<synchronous>, transform_indices = @transform_9, window_bounds = array<i64: 1, 64>}, {pipeline_mode = #tpu.pipeline_mode<synchronous>, transform_indices = @transform_10, window_bounds = array<i64: 64, 32>}, {pipeline_mode = #tpu.pipeline_mode<synchronous>, transform_indices = @transform_11, window_bounds = array<i64: 1, 32>}, {pipeline_mode = #tpu.pipeline_mode<synchronous>, transform_indices = @transform_12, window_bounds = array<i64: 1, 32>}, {pipeline_mode = #tpu.pipeline_mode<synchronous>, transform_indices = @transform_13, window_bounds = array<i64: 1, 32>}, {transform_indices = @transform_14, window_bounds = array<i64: 1, 8, 32>}]} {
    %c0 = arith.constant 0 : index
    %c0_0 = arith.constant 0 : index
    %c0_1 = arith.constant 0 : index
    %0 = vector.load %arg1[%c0, %c0_0, %c0_1] : memref<1x8x32xbf16, #tpu.memory_space<vmem>>, vector<1x8x32xbf16>
    %1 = vector.shape_cast %0 : vector<1x8x32xbf16> to vector<8x32xbf16>
    %c0_2 = arith.constant 0 : index
    %c0_3 = arith.constant 0 : index
    %2 = vector.load %arg3[%c0_2, %c0_3] : memref<32x96xbf16, #tpu.memory_space<vmem>>, vector<32x96xbf16>
    %cst = arith.constant dense<0.000000e+00> : vector<8x96xf32>
    %3 = tpu.matmul %1, %2, %cst {dimension_numbers = #tpu.dot_dimension_numbers<[1], [0], [0], [1], [0, 0, 1, 1], [], []>} : vector<8x32xbf16>, vector<32x96xbf16>, vector<8x96xf32> -> vector<8x96xf32>
    %c0_4 = arith.constant 0 : index
    %c0_5 = arith.constant 0 : index
    %4 = vector.load %arg4[%c0_4, %c0_5] : memref<1x96xf32, #tpu.memory_space<vmem>>, vector<1x96xf32>
    %5 = vector.broadcast %4 : vector<1x96xf32> to vector<8x96xf32>
    %6 = arith.addf %3, %5 : vector<8x96xf32>
    %7 = vector.extract_strided_slice %6 {offsets = [0, 32], sizes = [8, 32], strides = [1, 1]} : vector<8x96xf32> to vector<8x32xf32>
    %8 = arith.truncf %7 : vector<8x32xf32> to vector<8x32xbf16>
    %9 = vector.extract_strided_slice %6 {offsets = [0, 64], sizes = [8, 32], strides = [1, 1]} : vector<8x96xf32> to vector<8x32xf32>
    %10 = arith.truncf %9 : vector<8x32xf32> to vector<8x32xbf16>
    %11 = vector.extract_strided_slice %6 {offsets = [0, 0], sizes = [8, 32], strides = [1, 1]} : vector<8x96xf32> to vector<8x32xf32>
    %12 = arith.truncf %11 : vector<8x32xf32> to vector<8x32xbf16>
    %13 = arith.extf %1 : vector<8x32xbf16> to vector<8x32xf32>
    %14 = vector.shape_cast %12 : vector<8x32xbf16> to vector<8x4x8xbf16>
    %15 = tpu.transpose %14, [1, 0, 2] : vector<8x4x8xbf16> -> vector<4x8x8xbf16>
    %16 = vector.shape_cast %8 : vector<8x32xbf16> to vector<8x4x8xbf16>
    %17 = tpu.transpose %16, [1, 0, 2] : vector<8x4x8xbf16> -> vector<4x8x8xbf16>
    %18 = vector.shape_cast %10 : vector<8x32xbf16> to vector<8x4x8xbf16>
    %19 = tpu.transpose %18, [1, 0, 2] : vector<8x4x8xbf16> -> vector<4x8x8xbf16>
    %c0_6 = arith.constant 0 : index
    %c0_7 = arith.constant 0 : index
    %c0_8 = arith.constant 0 : index
    %20 = vector.load %arg2[%c0_6, %c0_7, %c0_8] : memref<1x1x8xf32, #tpu.memory_space<vmem>>, vector<1x1x8xf32>
    %21 = vector.shape_cast %20 : vector<1x1x8xf32> to vector<1x8xf32>
    "tpu.trace_start"() <{level = 10 : i32, message = "hqd,hkd->hqk"}> : () -> ()
    %cst_9 = arith.constant dense<0.000000e+00> : vector<4x8x8xf32>
    %22 = tpu.matmul %15, %17, %cst_9 {dimension_numbers = #tpu.dot_dimension_numbers<[2], [2], [1], [1], [0, 0, 0, 1, 1, 1], [0], [0]>} : vector<4x8x8xbf16>, vector<4x8x8xbf16>, vector<4x8x8xf32> -> vector<4x8x8xf32>
    "tpu.trace_stop"() : () -> ()
    %23 = vector.shape_cast %21 : vector<1x8xf32> to vector<1x1x8xf32>
    %24 = vector.broadcast %23 : vector<1x1x8xf32> to vector<4x8x8xf32>
    %25 = arith.addf %22, %24 : vector<4x8x8xf32>
    %cst_10 = arith.constant dense<0xFF800000> : vector<4x8xf32>
    %26 = vector.multi_reduction <maximumf>, %25, %cst_10 [2] : vector<4x8x8xf32> to vector<4x8xf32>
    %27 = vector.shape_cast %26 : vector<4x8xf32> to vector<4x8x1xf32>
    %28 = vector.broadcast %27 : vector<4x8x1xf32> to vector<4x8x8xf32>
    %29 = arith.subf %25, %28 : vector<4x8x8xf32>
    %30 = math.exp %29 : vector<4x8x8xf32>
    %cst_11 = arith.constant dense<0.000000e+00> : vector<4x8xf32>
    %31 = vector.multi_reduction <add>, %30, %cst_11 [2] : vector<4x8x8xf32> to vector<4x8xf32>
    %32 = vector.shape_cast %31 : vector<4x8xf32> to vector<4x8x1xf32>
    %33 = tpu.reciprocal %32 {approx = true} : vector<4x8x1xf32> -> vector<4x8x1xf32>
    %34 = vector.broadcast %33 : vector<4x8x1xf32> to vector<4x8x8xf32>
    %35 = arith.mulf %30, %34 : vector<4x8x8xf32>
    %36 = arith.truncf %35 : vector<4x8x8xf32> to vector<4x8x8xbf16>
    "tpu.trace_start"() <{level = 10 : i32, message = "hqk,hkd->hqd"}> : () -> ()
    %cst_12 = arith.constant dense<0.000000e+00> : vector<4x8x8xf32>
    %37 = tpu.matmul %36, %19, %cst_12 {dimension_numbers = #tpu.dot_dimension_numbers<[2], [1], [1], [2], [0, 0, 0, 1, 1, 2], [0], [0]>} : vector<4x8x8xbf16>, vector<4x8x8xbf16>, vector<4x8x8xf32> -> vector<4x8x8xf32>
    "tpu.trace_stop"() : () -> ()
    %38 = tpu.transpose %37, [1, 0, 2] : vector<4x8x8xf32> -> vector<8x4x8xf32>
    %39 = vector.shape_cast %38 : vector<8x4x8xf32> to vector<8x32xf32>
    %40 = arith.truncf %39 : vector<8x32xf32> to vector<8x32xbf16>
    %c0_13 = arith.constant 0 : index
    %c0_14 = arith.constant 0 : index
    %41 = vector.load %arg5[%c0_13, %c0_14] : memref<32x32xbf16, #tpu.memory_space<vmem>>, vector<32x32xbf16>
    %cst_15 = arith.constant dense<0.000000e+00> : vector<8x32xf32>
    %42 = tpu.matmul %40, %41, %cst_15 {dimension_numbers = #tpu.dot_dimension_numbers<[1], [0], [0], [1], [0, 0, 1, 1], [], []>} : vector<8x32xbf16>, vector<32x32xbf16>, vector<8x32xf32> -> vector<8x32xf32>
    %c0_16 = arith.constant 0 : index
    %c0_17 = arith.constant 0 : index
    %43 = vector.load %arg6[%c0_16, %c0_17] : memref<1x32xf32, #tpu.memory_space<vmem>>, vector<1x32xf32>
    %44 = vector.broadcast %43 : vector<1x32xf32> to vector<8x32xf32>
    %45 = arith.addf %42, %44 : vector<8x32xf32>
    %46 = arith.addf %45, %13 : vector<8x32xf32>
    %c0_18 = arith.constant 0 : index
    %c0_19 = arith.constant 0 : index
    %47 = vector.load %arg7[%c0_18, %c0_19] : memref<1x32xf32, #tpu.memory_space<vmem>>, vector<1x32xf32>
    %c0_20 = arith.constant 0 : index
    %c0_21 = arith.constant 0 : index
    %48 = vector.load %arg8[%c0_20, %c0_21] : memref<1x32xf32, #tpu.memory_space<vmem>>, vector<1x32xf32>
    %cst_22 = arith.constant dense<0.000000e+00> : vector<8xf32>
    %49 = vector.multi_reduction <add>, %46, %cst_22 [1] : vector<8x32xf32> to vector<8xf32>
    %50 = vector.shape_cast %49 : vector<8xf32> to vector<8x1xf32>
    %cst_23 = arith.constant 3.200000e+01 : f32
    %51 = vector.broadcast %cst_23 : f32 to vector<8x1xf32>
    %52 = arith.divf %50, %51 : vector<8x1xf32>
    %53 = vector.broadcast %52 : vector<8x1xf32> to vector<8x32xf32>
    %54 = arith.subf %46, %53 : vector<8x32xf32>
    %55 = arith.mulf %54, %54 : vector<8x32xf32>
    %cst_24 = arith.constant dense<0.000000e+00> : vector<8xf32>
    %56 = vector.multi_reduction <add>, %55, %cst_24 [1] : vector<8x32xf32> to vector<8xf32>
    %57 = vector.shape_cast %56 : vector<8xf32> to vector<8x1xf32>
    %cst_25 = arith.constant 3.200000e+01 : f32
    %58 = vector.broadcast %cst_25 : f32 to vector<8x1xf32>
    %59 = arith.divf %57, %58 : vector<8x1xf32>
    %60 = vector.broadcast %52 : vector<8x1xf32> to vector<8x32xf32>
    %61 = arith.subf %46, %60 : vector<8x32xf32>
    %cst_26 = arith.constant 9.99999996E-13 : f32
    %62 = vector.broadcast %cst_26 : f32 to vector<8x1xf32>
    %63 = arith.addf %59, %62 : vector<8x1xf32>
    %64 = math.rsqrt %63 : vector<8x1xf32>
    %65 = vector.broadcast %64 : vector<8x1xf32> to vector<8x32xf32>
    %66 = arith.mulf %61, %65 : vector<8x32xf32>
    %67 = vector.broadcast %47 : vector<1x32xf32> to vector<8x32xf32>
    %68 = arith.mulf %66, %67 : vector<8x32xf32>
    %69 = vector.broadcast %48 : vector<1x32xf32> to vector<8x32xf32>
    %70 = arith.addf %68, %69 : vector<8x32xf32>
    %71 = arith.truncf %70 : vector<8x32xf32> to vector<8x32xbf16>
    %c0_27 = arith.constant 0 : index
    %c0_28 = arith.constant 0 : index
    %72 = vector.load %arg9[%c0_27, %c0_28] : memref<32x64xbf16, #tpu.memory_space<vmem>>, vector<32x64xbf16>
    %cst_29 = arith.constant dense<0.000000e+00> : vector<8x64xf32>
    %73 = tpu.matmul %71, %72, %cst_29 {dimension_numbers = #tpu.dot_dimension_numbers<[1], [0], [0], [1], [0, 0, 1, 1], [], []>} : vector<8x32xbf16>, vector<32x64xbf16>, vector<8x64xf32> -> vector<8x64xf32>
    %c0_30 = arith.constant 0 : index
    %c0_31 = arith.constant 0 : index
    %74 = vector.load %arg10[%c0_30, %c0_31] : memref<1x64xf32, #tpu.memory_space<vmem>>, vector<1x64xf32>
    %75 = vector.broadcast %74 : vector<1x64xf32> to vector<8x64xf32>
    %76 = arith.addf %73, %75 : vector<8x64xf32>
    %cst_32 = arith.constant 5.000000e-01 : f32
    %77 = vector.broadcast %cst_32 : f32 to vector<8x64xf32>
    %78 = arith.mulf %77, %76 : vector<8x64xf32>
    %cst_33 = arith.constant 4.471500e-02 : f32
    %79 = vector.broadcast %cst_33 : f32 to vector<8x64xf32>
    %80 = arith.mulf %79, %76 : vector<8x64xf32>
    %81 = arith.mulf %80, %76 : vector<8x64xf32>
    %82 = arith.mulf %81, %76 : vector<8x64xf32>
    %83 = arith.addf %76, %82 : vector<8x64xf32>
    %cst_34 = arith.constant 0.797884583 : f32
    %84 = vector.broadcast %cst_34 : f32 to vector<8x64xf32>
    %85 = arith.mulf %84, %83 : vector<8x64xf32>
    %86 = math.tanh %85 : vector<8x64xf32>
    %cst_35 = arith.constant 1.000000e+00 : f32
    %87 = vector.broadcast %cst_35 : f32 to vector<8x64xf32>
    %88 = arith.addf %87, %86 : vector<8x64xf32>
    %89 = arith.mulf %78, %88 : vector<8x64xf32>
    %90 = arith.truncf %89 : vector<8x64xf32> to vector<8x64xbf16>
    %c0_36 = arith.constant 0 : index
    %c0_37 = arith.constant 0 : index
    %91 = vector.load %arg11[%c0_36, %c0_37] : memref<64x32xbf16, #tpu.memory_space<vmem>>, vector<64x32xbf16>
    %cst_38 = arith.constant dense<0.000000e+00> : vector<8x32xf32>
    %92 = tpu.matmul %90, %91, %cst_38 {dimension_numbers = #tpu.dot_dimension_numbers<[1], [0], [0], [1], [0, 0, 1, 1], [], []>} : vector<8x64xbf16>, vector<64x32xbf16>, vector<8x32xf32> -> vector<8x32xf32>
    %c0_39 = arith.constant 0 : index
    %c0_40 = arith.constant 0 : index
    %93 = vector.load %arg12[%c0_39, %c0_40] : memref<1x32xf32, #tpu.memory_space<vmem>>, vector<1x32xf32>
    %94 = vector.broadcast %93 : vector<1x32xf32> to vector<8x32xf32>
    %95 = arith.addf %92, %94 : vector<8x32xf32>
    %96 = arith.addf %95, %70 : vector<8x32xf32>
    %c0_41 = arith.constant 0 : index
    %c0_42 = arith.constant 0 : index
    %97 = vector.load %arg13[%c0_41, %c0_42] : memref<1x32xf32, #tpu.memory_space<vmem>>, vector<1x32xf32>
    %c0_43 = arith.constant 0 : index
    %c0_44 = arith.constant 0 : index
    %98 = vector.load %arg14[%c0_43, %c0_44] : memref<1x32xf32, #tpu.memory_space<vmem>>, vector<1x32xf32>
    %cst_45 = arith.constant dense<0.000000e+00> : vector<8xf32>
    %99 = vector.multi_reduction <add>, %96, %cst_45 [1] : vector<8x32xf32> to vector<8xf32>
    %100 = vector.shape_cast %99 : vector<8xf32> to vector<8x1xf32>
    %cst_46 = arith.constant 3.200000e+01 : f32
    %101 = vector.broadcast %cst_46 : f32 to vector<8x1xf32>
    %102 = arith.divf %100, %101 : vector<8x1xf32>
    %103 = vector.broadcast %102 : vector<8x1xf32> to vector<8x32xf32>
    %104 = arith.subf %96, %103 : vector<8x32xf32>
    %105 = arith.mulf %104, %104 : vector<8x32xf32>
    %cst_47 = arith.constant dense<0.000000e+00> : vector<8xf32>
    %106 = vector.multi_reduction <add>, %105, %cst_47 [1] : vector<8x32xf32> to vector<8xf32>
    %107 = vector.shape_cast %106 : vector<8xf32> to vector<8x1xf32>
    %cst_48 = arith.constant 3.200000e+01 : f32
    %108 = vector.broadcast %cst_48 : f32 to vector<8x1xf32>
    %109 = arith.divf %107, %108 : vector<8x1xf32>
    %110 = vector.broadcast %102 : vector<8x1xf32> to vector<8x32xf32>
    %111 = arith.subf %96, %110 : vector<8x32xf32>
    %cst_49 = arith.constant 9.99999996E-13 : f32
    %112 = vector.broadcast %cst_49 : f32 to vector<8x1xf32>
    %113 = arith.addf %109, %112 : vector<8x1xf32>
    %114 = math.rsqrt %113 : vector<8x1xf32>
    %115 = vector.broadcast %114 : vector<8x1xf32> to vector<8x32xf32>
    %116 = arith.mulf %111, %115 : vector<8x32xf32>
    %117 = vector.broadcast %97 : vector<1x32xf32> to vector<8x32xf32>
    %118 = arith.mulf %116, %117 : vector<8x32xf32>
    %119 = vector.broadcast %98 : vector<1x32xf32> to vector<8x32xf32>
    %120 = arith.addf %118, %119 : vector<8x32xf32>
    %121 = arith.truncf %120 : vector<8x32xf32> to vector<8x32xbf16>
    %c0_50 = arith.constant 0 : index
    %c0_51 = arith.constant 0 : index
    %c0_52 = arith.constant 0 : index
    %122 = vector.load %arg15[%c0_50, %c0_51, %c0_52] : memref<1x8x32xbf16, #tpu.memory_space<vmem>>, vector<1x8x32xbf16>
    %123 = vector.shape_cast %122 : vector<1x8x32xbf16> to vector<8x32xbf16>
    %124 = vector.shape_cast %121 : vector<8x32xbf16> to vector<1x8x32xbf16>
    tpu.vector_store %arg15[%c0_50, %c0_51, %c0_52], %124 {strides = array<i32>} : memref<1x8x32xbf16, #tpu.memory_space<vmem>>, vector<1x8x32xbf16>,
    return
  }
  func.func @transform_0(%arg0: i32) -> (i32, i32, i32) {
    %c0_i32 = arith.constant 0 : i32
    %c0_i32_0 = arith.constant 0 : i32
    %c0_i32_1 = arith.constant 0 : i32
    return %arg0, %c0_i32, %c0_i32_0 : i32, i32, i32
  }
  func.func @transform_1(%arg0: i32) -> (i32, i32, i32) {
    %c0_i32 = arith.constant 0 : i32
    %c0_i32_0 = arith.constant 0 : i32
    %c0_i32_1 = arith.constant 0 : i32
    return %arg0, %c0_i32, %c0_i32_0 : i32, i32, i32
  }
  func.func @transform_2(%arg0: i32) -> (i32, i32) {
    %c0_i32 = arith.constant 0 : i32
    %c0_i32_0 = arith.constant 0 : i32
    %c0_i32_1 = arith.constant 0 : i32
    return %c0_i32, %c0_i32_0 : i32, i32
  }
  func.func @transform_3(%arg0: i32) -> (i32, i32) {
    %c0_i32 = arith.constant 0 : i32
    %c0_i32_0 = arith.constant 0 : i32
    %c0_i32_1 = arith.constant 0 : i32
    return %c0_i32, %c0_i32_0 : i32, i32
  }
  func.func @transform_4(%arg0: i32) -> (i32, i32) {
    %c0_i32 = arith.constant 0 : i32
    %c0_i32_0 = arith.constant 0 : i32
    %c0_i32_1 = arith.constant 0 : i32
    return %c0_i32, %c0_i32_0 : i32, i32
  }
  func.func @transform_5(%arg0: i32) -> (i32, i32) {
    %c0_i32 = arith.constant 0 : i32
    %c0_i32_0 = arith.constant 0 : i32
    %c0_i32_1 = arith.constant 0 : i32
    return %c0_i32, %c0_i32_0 : i32, i32
  }
  func.func @transform_6(%arg0: i32) -> (i32, i32) {
    %c0_i32 = arith.constant 0 : i32
    %c0_i32_0 = arith.constant 0 : i32
    %c0_i32_1 = arith.constant 0 : i32
    return %c0_i32, %c0_i32_0 : i32, i32
  }
  func.func @transform_7(%arg0: i32) -> (i32, i32) {
    %c0_i32 = arith.constant 0 : i32
    %c0_i32_0 = arith.constant 0 : i32
    %c0_i32_1 = arith.constant 0 : i32
    return %c0_i32, %c0_i32_0 : i32, i32
  }
  func.func @transform_8(%arg0: i32) -> (i32, i32) {
    %c0_i32 = arith.constant 0 : i32
    %c0_i32_0 = arith.constant 0 : i32
    %c0_i32_1 = arith.constant 0 : i32
    return %c0_i32, %c0_i32_0 : i32, i32
  }
  func.func @transform_9(%arg0: i32) -> (i32, i32) {
    %c0_i32 = arith.constant 0 : i32
    %c0_i32_0 = arith.constant 0 : i32
    %c0_i32_1 = arith.constant 0 : i32
    return %c0_i32, %c0_i32_0 : i32, i32
  }
  func.func @transform_10(%arg0: i32) -> (i32, i32) {
    %c0_i32 = arith.constant 0 : i32
    %c0_i32_0 = arith.constant 0 : i32
    %c0_i32_1 = arith.constant 0 : i32
    return %c0_i32, %c0_i32_0 : i32, i32
  }
  func.func @transform_11(%arg0: i32) -> (i32, i32) {
    %c0_i32 = arith.constant 0 : i32
    %c0_i32_0 = arith.constant 0 : i32
    %c0_i32_1 = arith.constant 0 : i32
    return %c0_i32, %c0_i32_0 : i32, i32
  }
  func.func @transform_12(%arg0: i32) -> (i32, i32) {
    %c0_i32 = arith.constant 0 : i32
    %c0_i32_0 = arith.constant 0 : i32
    %c0_i32_1 = arith.constant 0 : i32
    return %c0_i32, %c0_i32_0 : i32, i32
  }
  func.func @transform_13(%arg0: i32) -> (i32, i32) {
    %c0_i32 = arith.constant 0 : i32
    %c0_i32_0 = arith.constant 0 : i32
    %c0_i32_1 = arith.constant 0 : i32
    return %c0_i32, %c0_i32_0 : i32, i32
  }
  func.func @transform_14(%arg0: i32) -> (i32, i32, i32) {
    %c0_i32 = arith.constant 0 : i32
    %c0_i32_0 = arith.constant 0 : i32
    %c0_i32_1 = arith.constant 0 : i32
    return %arg0, %c0_i32, %c0_i32_0 : i32, i32, i32
  }
}

module attributes {stable_mosaic.version = 11 : i64} {
  func.func @_layer_kernel(%arg0: i32, %arg1: memref<1x8x32xbf16, #tpu.memory_space<vmem>>, %arg2: memref<1x1x8xf32, #tpu.memory_space<vmem>>, %arg3: memref<32x96xbf16, #tpu.memory_space<vmem>>, %arg4: memref<1x96xf32, #tpu.memory_space<vmem>>, %arg5: memref<32x32xbf16, #tpu.memory_space<vmem>>, %arg6: memref<1x32xf32, #tpu.memory_space<vmem>>, %arg7: memref<1x32xf32, #tpu.memory_space<vmem>>, %arg8: memref<1x32xf32, #tpu.memory_space<vmem>>, %arg9: memref<32x64xbf16, #tpu.memory_space<vmem>>, %arg10: memref<1x64xf32, #tpu.memory_space<vmem>>, %arg11: memref<64x32xbf16, #tpu.memory_space<vmem>>, %arg12: memref<1x32xf32, #tpu.memory_space<vmem>>, %arg13: memref<1x32xf32, #tpu.memory_space<vmem>>, %arg14: memref<1x32xf32, #tpu.memory_space<vmem>>, %arg15: memref<1x1x32xbf16, #tpu.memory_space<vmem>>) attributes {dimension_semantics = [#tpu.dimension_semantics<parallel>], iteration_bounds = array<i64: 2>, scalar_prefetch = 0 : i64, scratch_operands = 0 : i64, tpu.core_type = #tpu.core_type<tc>, window_params = [{transform_indices = @transform_0, window_bounds = array<i64: 1, 8, 32>}, {transform_indices = @transform_1, window_bounds = array<i64: 1, 1, 8>}, {pipeline_mode = #tpu.pipeline_mode<synchronous>, transform_indices = @transform_2, window_bounds = array<i64: 32, 96>}, {pipeline_mode = #tpu.pipeline_mode<synchronous>, transform_indices = @transform_3, window_bounds = array<i64: 1, 96>}, {pipeline_mode = #tpu.pipeline_mode<synchronous>, transform_indices = @transform_4, window_bounds = array<i64: 32, 32>}, {pipeline_mode = #tpu.pipeline_mode<synchronous>, transform_indices = @transform_5, window_bounds = array<i64: 1, 32>}, {pipeline_mode = #tpu.pipeline_mode<synchronous>, transform_indices = @transform_6, window_bounds = array<i64: 1, 32>}, {pipeline_mode = #tpu.pipeline_mode<synchronous>, transform_indices = @transform_7, window_bounds = array<i64: 1, 32>}, {pipeline_mode = #tpu.pipeline_mode<synchronous>, transform_indices = @transform_8, window_bounds = array<i64: 32, 64>}, {pipeline_mode = #tpu.pipeline_mode<synchronous>, transform_indices = @transform_9, window_bounds = array<i64: 1, 64>}, {pipeline_mode = #tpu.pipeline_mode<synchronous>, transform_indices = @transform_10, window_bounds = array<i64: 64, 32>}, {pipeline_mode = #tpu.pipeline_mode<synchronous>, transform_indices = @transform_11, window_bounds = array<i64: 1, 32>}, {pipeline_mode = #tpu.pipeline_mode<synchronous>, transform_indices = @transform_12, window_bounds = array<i64: 1, 32>}, {pipeline_mode = #tpu.pipeline_mode<synchronous>, transform_indices = @transform_13, window_bounds = array<i64: 1, 32>}, {transform_indices = @transform_14, window_bounds = array<i64: 1, 1, 32>}]} {
    %c0 = arith.constant 0 : index
    %c0_0 = arith.constant 0 : index
    %c0_1 = arith.constant 0 : index
    %0 = vector.load %arg1[%c0, %c0_0, %c0_1] : memref<1x8x32xbf16, #tpu.memory_space<vmem>>, vector<1x8x32xbf16>
    %1 = vector.shape_cast %0 : vector<1x8x32xbf16> to vector<8x32xbf16>
    %c0_2 = arith.constant 0 : index
    %c0_3 = arith.constant 0 : index
    %2 = vector.load %arg3[%c0_2, %c0_3] : memref<32x96xbf16, #tpu.memory_space<vmem>>, vector<32x96xbf16>
    %cst = arith.constant dense<0.000000e+00> : vector<8x96xf32>
    %3 = tpu.matmul %1, %2, %cst {dimension_numbers = #tpu.dot_dimension_numbers<[1], [0], [0], [1], [0, 0, 1, 1], [], []>} : vector<8x32xbf16>, vector<32x96xbf16>, vector<8x96xf32> -> vector<8x96xf32>
    %c0_4 = arith.constant 0 : index
    %c0_5 = arith.constant 0 : index
    %4 = vector.load %arg4[%c0_4, %c0_5] : memref<1x96xf32, #tpu.memory_space<vmem>>, vector<1x96xf32>
    %5 = vector.broadcast %4 : vector<1x96xf32> to vector<8x96xf32>
    %6 = arith.addf %3, %5 : vector<8x96xf32>
    %7 = vector.extract_strided_slice %6 {offsets = [0, 32], sizes = [8, 32], strides = [1, 1]} : vector<8x96xf32> to vector<8x32xf32>
    %8 = arith.truncf %7 : vector<8x32xf32> to vector<8x32xbf16>
    %9 = vector.extract_strided_slice %6 {offsets = [0, 64], sizes = [8, 32], strides = [1, 1]} : vector<8x96xf32> to vector<8x32xf32>
    %10 = arith.truncf %9 : vector<8x32xf32> to vector<8x32xbf16>
    %11 = vector.extract_strided_slice %6 {offsets = [0, 0], sizes = [1, 32], strides = [1, 1]} : vector<8x96xf32> to vector<1x32xf32>
    %12 = arith.truncf %11 : vector<1x32xf32> to vector<1x32xbf16>
    %13 = vector.extract_strided_slice %1 {offsets = [0, 0], sizes = [1, 32], strides = [1, 1]} : vector<8x32xbf16> to vector<1x32xbf16>
    %14 = arith.extf %13 : vector<1x32xbf16> to vector<1x32xf32>
    %15 = vector.shape_cast %12 : vector<1x32xbf16> to vector<1x4x8xbf16>
    %16 = tpu.transpose %15, [1, 0, 2] : vector<1x4x8xbf16> -> vector<4x1x8xbf16>
    %17 = vector.shape_cast %8 : vector<8x32xbf16> to vector<8x4x8xbf16>
    %18 = tpu.transpose %17, [1, 0, 2] : vector<8x4x8xbf16> -> vector<4x8x8xbf16>
    %19 = vector.shape_cast %10 : vector<8x32xbf16> to vector<8x4x8xbf16>
    %20 = tpu.transpose %19, [1, 0, 2] : vector<8x4x8xbf16> -> vector<4x8x8xbf16>
    %c0_6 = arith.constant 0 : index
    %c0_7 = arith.constant 0 : index
    %c0_8 = arith.constant 0 : index
    %21 = vector.load %arg2[%c0_6, %c0_7, %c0_8] : memref<1x1x8xf32, #tpu.memory_space<vmem>>, vector<1x1x8xf32>
    %22 = vector.shape_cast %21 : vector<1x1x8xf32> to vector<1x8xf32>
    "tpu.trace_start"() <{level = 10 : i32, message = "hqd,hkd->hqk"}> : () -> ()
    %cst_9 = arith.constant dense<0.000000e+00> : vector<4x1x8xf32>
    %23 = tpu.matmul %16, %18, %cst_9 {dimension_numbers = #tpu.dot_dimension_numbers<[2], [2], [1], [1], [0, 0, 0, 1, 1, 1], [0], [0]>} : vector<4x1x8xbf16>, vector<4x8x8xbf16>, vector<4x1x8xf32> -> vector<4x1x8xf32>
    "tpu.trace_stop"() : () -> ()
    %24 = vector.shape_cast %22 : vector<1x8xf32> to vector<1x1x8xf32>
    %25 = vector.broadcast %24 : vector<1x1x8xf32> to vector<4x1x8xf32>
    %26 = arith.addf %23, %25 : vector<4x1x8xf32>
    %cst_10 = arith.constant dense<0xFF800000> : vector<4x1xf32>
    %27 = vector.multi_reduction <maximumf>, %26, %cst_10 [2] : vector<4x1x8xf32> to vector<4x1xf32>
    %28 = vector.shape_cast %27 : vector<4x1xf32> to vector<4x1x1xf32>
    %29 = vector.broadcast %28 : vector<4x1x1xf32> to vector<4x1x8xf32>
    %30 = arith.subf %26, %29 : vector<4x1x8xf32>
    %31 = math.exp %30 : vector<4x1x8xf32>
    %cst_11 = arith.constant dense<0.000000e+00> : vector<4x1xf32>
    %32 = vector.multi_reduction <add>, %31, %cst_11 [2] : vector<4x1x8xf32> to vector<4x1xf32>
    %33 = vector.shape_cast %32 : vector<4x1xf32> to vector<4x1x1xf32>
    %34 = tpu.reciprocal %33 {approx = true} : vector<4x1x1xf32> -> vector<4x1x1xf32>
    %35 = vector.broadcast %34 : vector<4x1x1xf32> to vector<4x1x8xf32>
    %36 = arith.mulf %31, %35 : vector<4x1x8xf32>
    %37 = arith.truncf %36 : vector<4x1x8xf32> to vector<4x1x8xbf16>
    "tpu.trace_start"() <{level = 10 : i32, message = "hqk,hkd->hqd"}> : () -> ()
    %cst_12 = arith.constant dense<0.000000e+00> : vector<4x1x8xf32>
    %38 = tpu.matmul %37, %20, %cst_12 {dimension_numbers = #tpu.dot_dimension_numbers<[2], [1], [1], [2], [0, 0, 0, 1, 1, 2], [0], [0]>} : vector<4x1x8xbf16>, vector<4x8x8xbf16>, vector<4x1x8xf32> -> vector<4x1x8xf32>
    "tpu.trace_stop"() : () -> ()
    %39 = tpu.transpose %38, [1, 0, 2] : vector<4x1x8xf32> -> vector<1x4x8xf32>
    %40 = vector.shape_cast %39 : vector<1x4x8xf32> to vector<1x32xf32>
    %41 = arith.truncf %40 : vector<1x32xf32> to vector<1x32xbf16>
    %c0_13 = arith.constant 0 : index
    %c0_14 = arith.constant 0 : index
    %42 = vector.load %arg5[%c0_13, %c0_14] : memref<32x32xbf16, #tpu.memory_space<vmem>>, vector<32x32xbf16>
    %cst_15 = arith.constant dense<0.000000e+00> : vector<1x32xf32>
    %43 = tpu.matmul %41, %42, %cst_15 {dimension_numbers = #tpu.dot_dimension_numbers<[1], [0], [0], [1], [0, 0, 1, 1], [], []>} : vector<1x32xbf16>, vector<32x32xbf16>, vector<1x32xf32> -> vector<1x32xf32>
    %c0_16 = arith.constant 0 : index
    %c0_17 = arith.constant 0 : index
    %44 = vector.load %arg6[%c0_16, %c0_17] : memref<1x32xf32, #tpu.memory_space<vmem>>, vector<1x32xf32>
    %45 = arith.addf %43, %44 : vector<1x32xf32>
    %46 = arith.addf %45, %14 : vector<1x32xf32>
    %c0_18 = arith.constant 0 : index
    %c0_19 = arith.constant 0 : index
    %47 = vector.load %arg7[%c0_18, %c0_19] : memref<1x32xf32, #tpu.memory_space<vmem>>, vector<1x32xf32>
    %c0_20 = arith.constant 0 : index
    %c0_21 = arith.constant 0 : index
    %48 = vector.load %arg8[%c0_20, %c0_21] : memref<1x32xf32, #tpu.memory_space<vmem>>, vector<1x32xf32>
    %cst_22 = arith.constant dense<0.000000e+00> : vector<1xf32>
    %49 = vector.multi_reduction <add>, %46, %cst_22 [1] : vector<1x32xf32> to vector<1xf32>
    %50 = vector.shape_cast %49 : vector<1xf32> to vector<1x1xf32>
    %cst_23 = arith.constant 3.200000e+01 : f32
    %51 = vector.broadcast %cst_23 : f32 to vector<1x1xf32>
    %52 = arith.divf %50, %51 : vector<1x1xf32>
    %53 = vector.broadcast %52 : vector<1x1xf32> to vector<1x32xf32>
    %54 = arith.subf %46, %53 : vector<1x32xf32>
    %55 = arith.mulf %54, %54 : vector<1x32xf32>
    %cst_24 = arith.constant dense<0.000000e+00> : vector<1xf32>
    %56 = vector.multi_reduction <add>, %55, %cst_24 [1] : vector<1x32xf32> to vector<1xf32>
    %57 = vector.shape_cast %56 : vector<1xf32> to vector<1x1xf32>
    %cst_25 = arith.constant 3.200000e+01 : f32
    %58 = vector.broadcast %cst_25 : f32 to vector<1x1xf32>
    %59 = arith.divf %57, %58 : vector<1x1xf32>
    %60 = vector.broadcast %52 : vector<1x1xf32> to vector<1x32xf32>
    %61 = arith.subf %46, %60 : vector<1x32xf32>
    %cst_26 = arith.constant 9.99999996E-13 : f32
    %62 = vector.broadcast %cst_26 : f32 to vector<1x1xf32>
    %63 = arith.addf %59, %62 : vector<1x1xf32>
    %64 = math.rsqrt %63 : vector<1x1xf32>
    %65 = vector.broadcast %64 : vector<1x1xf32> to vector<1x32xf32>
    %66 = arith.mulf %61, %65 : vector<1x32xf32>
    %67 = arith.mulf %66, %47 : vector<1x32xf32>
    %68 = arith.addf %67, %48 : vector<1x32xf32>
    %69 = arith.truncf %68 : vector<1x32xf32> to vector<1x32xbf16>
    %c0_27 = arith.constant 0 : index
    %c0_28 = arith.constant 0 : index
    %70 = vector.load %arg9[%c0_27, %c0_28] : memref<32x64xbf16, #tpu.memory_space<vmem>>, vector<32x64xbf16>
    %cst_29 = arith.constant dense<0.000000e+00> : vector<1x64xf32>
    %71 = tpu.matmul %69, %70, %cst_29 {dimension_numbers = #tpu.dot_dimension_numbers<[1], [0], [0], [1], [0, 0, 1, 1], [], []>} : vector<1x32xbf16>, vector<32x64xbf16>, vector<1x64xf32> -> vector<1x64xf32>
    %c0_30 = arith.constant 0 : index
    %c0_31 = arith.constant 0 : index
    %72 = vector.load %arg10[%c0_30, %c0_31] : memref<1x64xf32, #tpu.memory_space<vmem>>, vector<1x64xf32>
    %73 = arith.addf %71, %72 : vector<1x64xf32>
    %cst_32 = arith.constant 5.000000e-01 : f32
    %74 = vector.broadcast %cst_32 : f32 to vector<1x64xf32>
    %75 = arith.mulf %74, %73 : vector<1x64xf32>
    %cst_33 = arith.constant 4.471500e-02 : f32
    %76 = vector.broadcast %cst_33 : f32 to vector<1x64xf32>
    %77 = arith.mulf %76, %73 : vector<1x64xf32>
    %78 = arith.mulf %77, %73 : vector<1x64xf32>
    %79 = arith.mulf %78, %73 : vector<1x64xf32>
    %80 = arith.addf %73, %79 : vector<1x64xf32>
    %cst_34 = arith.constant 0.797884583 : f32
    %81 = vector.broadcast %cst_34 : f32 to vector<1x64xf32>
    %82 = arith.mulf %81, %80 : vector<1x64xf32>
    %83 = math.tanh %82 : vector<1x64xf32>
    %cst_35 = arith.constant 1.000000e+00 : f32
    %84 = vector.broadcast %cst_35 : f32 to vector<1x64xf32>
    %85 = arith.addf %84, %83 : vector<1x64xf32>
    %86 = arith.mulf %75, %85 : vector<1x64xf32>
    %87 = arith.truncf %86 : vector<1x64xf32> to vector<1x64xbf16>
    %c0_36 = arith.constant 0 : index
    %c0_37 = arith.constant 0 : index
    %88 = vector.load %arg11[%c0_36, %c0_37] : memref<64x32xbf16, #tpu.memory_space<vmem>>, vector<64x32xbf16>
    %cst_38 = arith.constant dense<0.000000e+00> : vector<1x32xf32>
    %89 = tpu.matmul %87, %88, %cst_38 {dimension_numbers = #tpu.dot_dimension_numbers<[1], [0], [0], [1], [0, 0, 1, 1], [], []>} : vector<1x64xbf16>, vector<64x32xbf16>, vector<1x32xf32> -> vector<1x32xf32>
    %c0_39 = arith.constant 0 : index
    %c0_40 = arith.constant 0 : index
    %90 = vector.load %arg12[%c0_39, %c0_40] : memref<1x32xf32, #tpu.memory_space<vmem>>, vector<1x32xf32>
    %91 = arith.addf %89, %90 : vector<1x32xf32>
    %92 = arith.addf %91, %68 : vector<1x32xf32>
    %c0_41 = arith.constant 0 : index
    %c0_42 = arith.constant 0 : index
    %93 = vector.load %arg13[%c0_41, %c0_42] : memref<1x32xf32, #tpu.memory_space<vmem>>, vector<1x32xf32>
    %c0_43 = arith.constant 0 : index
    %c0_44 = arith.constant 0 : index
    %94 = vector.load %arg14[%c0_43, %c0_44] : memref<1x32xf32, #tpu.memory_space<vmem>>, vector<1x32xf32>
    %cst_45 = arith.constant dense<0.000000e+00> : vector<1xf32>
    %95 = vector.multi_reduction <add>, %92, %cst_45 [1] : vector<1x32xf32> to vector<1xf32>
    %96 = vector.shape_cast %95 : vector<1xf32> to vector<1x1xf32>
    %cst_46 = arith.constant 3.200000e+01 : f32
    %97 = vector.broadcast %cst_46 : f32 to vector<1x1xf32>
    %98 = arith.divf %96, %97 : vector<1x1xf32>
    %99 = vector.broadcast %98 : vector<1x1xf32> to vector<1x32xf32>
    %100 = arith.subf %92, %99 : vector<1x32xf32>
    %101 = arith.mulf %100, %100 : vector<1x32xf32>
    %cst_47 = arith.constant dense<0.000000e+00> : vector<1xf32>
    %102 = vector.multi_reduction <add>, %101, %cst_47 [1] : vector<1x32xf32> to vector<1xf32>
    %103 = vector.shape_cast %102 : vector<1xf32> to vector<1x1xf32>
    %cst_48 = arith.constant 3.200000e+01 : f32
    %104 = vector.broadcast %cst_48 : f32 to vector<1x1xf32>
    %105 = arith.divf %103, %104 : vector<1x1xf32>
    %106 = vector.broadcast %98 : vector<1x1xf32> to vector<1x32xf32>
    %107 = arith.subf %92, %106 : vector<1x32xf32>
    %cst_49 = arith.constant 9.99999996E-13 : f32
    %108 = vector.broadcast %cst_49 : f32 to vector<1x1xf32>
    %109 = arith.addf %105, %108 : vector<1x1xf32>
    %110 = math.rsqrt %109 : vector<1x1xf32>
    %111 = vector.broadcast %110 : vector<1x1xf32> to vector<1x32xf32>
    %112 = arith.mulf %107, %111 : vector<1x32xf32>
    %113 = arith.mulf %112, %93 : vector<1x32xf32>
    %114 = arith.addf %113, %94 : vector<1x32xf32>
    %115 = arith.truncf %114 : vector<1x32xf32> to vector<1x32xbf16>
    %c0_50 = arith.constant 0 : index
    %c0_51 = arith.constant 0 : index
    %c0_52 = arith.constant 0 : index
    %116 = vector.load %arg15[%c0_50, %c0_51, %c0_52] : memref<1x1x32xbf16, #tpu.memory_space<vmem>>, vector<1x1x32xbf16>
    %117 = vector.shape_cast %116 : vector<1x1x32xbf16> to vector<1x32xbf16>
    %118 = vector.shape_cast %115 : vector<1x32xbf16> to vector<1x1x32xbf16>
    tpu.vector_store %arg15[%c0_50, %c0_51, %c0_52], %118 {strides = array<i32>} : memref<1x1x32xbf16, #tpu.memory_space<vmem>>, vector<1x1x32xbf16>,
    return
  }
  func.func @transform_0(%arg0: i32) -> (i32, i32, i32) {
    %c0_i32 = arith.constant 0 : i32
    %c0_i32_0 = arith.constant 0 : i32
    %c0_i32_1 = arith.constant 0 : i32
    return %arg0, %c0_i32, %c0_i32_0 : i32, i32, i32
  }
  func.func @transform_1(%arg0: i32) -> (i32, i32, i32) {
    %c0_i32 = arith.constant 0 : i32
    %c0_i32_0 = arith.constant 0 : i32
    %c0_i32_1 = arith.constant 0 : i32
    return %arg0, %c0_i32, %c0_i32_0 : i32, i32, i32
  }
  func.func @transform_2(%arg0: i32) -> (i32, i32) {
    %c0_i32 = arith.constant 0 : i32
    %c0_i32_0 = arith.constant 0 : i32
    %c0_i32_1 = arith.constant 0 : i32
    return %c0_i32, %c0_i32_0 : i32, i32
  }
  func.func @transform_3(%arg0: i32) -> (i32, i32) {
    %c0_i32 = arith.constant 0 : i32
    %c0_i32_0 = arith.constant 0 : i32
    %c0_i32_1 = arith.constant 0 : i32
    return %c0_i32, %c0_i32_0 : i32, i32
  }
  func.func @transform_4(%arg0: i32) -> (i32, i32) {
    %c0_i32 = arith.constant 0 : i32
    %c0_i32_0 = arith.constant 0 : i32
    %c0_i32_1 = arith.constant 0 : i32
    return %c0_i32, %c0_i32_0 : i32, i32
  }
  func.func @transform_5(%arg0: i32) -> (i32, i32) {
    %c0_i32 = arith.constant 0 : i32
    %c0_i32_0 = arith.constant 0 : i32
    %c0_i32_1 = arith.constant 0 : i32
    return %c0_i32, %c0_i32_0 : i32, i32
  }
  func.func @transform_6(%arg0: i32) -> (i32, i32) {
    %c0_i32 = arith.constant 0 : i32
    %c0_i32_0 = arith.constant 0 : i32
    %c0_i32_1 = arith.constant 0 : i32
    return %c0_i32, %c0_i32_0 : i32, i32
  }
  func.func @transform_7(%arg0: i32) -> (i32, i32) {
    %c0_i32 = arith.constant 0 : i32
    %c0_i32_0 = arith.constant 0 : i32
    %c0_i32_1 = arith.constant 0 : i32
    return %c0_i32, %c0_i32_0 : i32, i32
  }
  func.func @transform_8(%arg0: i32) -> (i32, i32) {
    %c0_i32 = arith.constant 0 : i32
    %c0_i32_0 = arith.constant 0 : i32
    %c0_i32_1 = arith.constant 0 : i32
    return %c0_i32, %c0_i32_0 : i32, i32
  }
  func.func @transform_9(%arg0: i32) -> (i32, i32) {
    %c0_i32 = arith.constant 0 : i32
    %c0_i32_0 = arith.constant 0 : i32
    %c0_i32_1 = arith.constant 0 : i32
    return %c0_i32, %c0_i32_0 : i32, i32
  }
  func.func @transform_10(%arg0: i32) -> (i32, i32) {
    %c0_i32 = arith.constant 0 : i32
    %c0_i32_0 = arith.constant 0 : i32
    %c0_i32_1 = arith.constant 0 : i32
    return %c0_i32, %c0_i32_0 : i32, i32
  }
  func.func @transform_11(%arg0: i32) -> (i32, i32) {
    %c0_i32 = arith.constant 0 : i32
    %c0_i32_0 = arith.constant 0 : i32
    %c0_i32_1 = arith.constant 0 : i32
    return %c0_i32, %c0_i32_0 : i32, i32
  }
  func.func @transform_12(%arg0: i32) -> (i32, i32) {
    %c0_i32 = arith.constant 0 : i32
    %c0_i32_0 = arith.constant 0 : i32
    %c0_i32_1 = arith.constant 0 : i32
    return %c0_i32, %c0_i32_0 : i32, i32
  }
  func.func @transform_13(%arg0: i32) -> (i32, i32) {
    %c0_i32 = arith.constant 0 : i32
    %c0_i32_0 = arith.constant 0 : i32
    %c0_i32_1 = arith.constant 0 : i32
    return %c0_i32, %c0_i32_0 : i32, i32
  }
  func.func @transform_14(%arg0: i32) -> (i32, i32, i32) {
    %c0_i32 = arith.constant 0 : i32
    %c0_i32_0 = arith.constant 0 : i32
    %c0_i32_1 = arith.constant 0 : i32
    return %arg0, %c0_i32, %c0_i32_0 : i32, i32, i32
  }
}

module attributes {stable_mosaic.version = 11 : i64} {
  func.func @_head_kernel(%arg0: memref<2x32xbf16, #tpu.memory_space<vmem>>, %arg1: memref<32x128xbf16, #tpu.memory_space<vmem>>, %arg2: memref<1x128xf32, #tpu.memory_space<vmem>>, %arg3: memref<2x128xf32, #tpu.memory_space<vmem>>) attributes {dimension_semantics = [], scalar_prefetch = 0 : i64, scratch_operands = 0 : i64, tpu.core_type = #tpu.core_type<tc>} {
    %c0 = arith.constant 0 : index
    %c0_0 = arith.constant 0 : index
    %0 = vector.load %arg0[%c0, %c0_0] : memref<2x32xbf16, #tpu.memory_space<vmem>>, vector<2x32xbf16>
    %c0_1 = arith.constant 0 : index
    %c0_2 = arith.constant 0 : index
    %1 = vector.load %arg1[%c0_1, %c0_2] : memref<32x128xbf16, #tpu.memory_space<vmem>>, vector<32x128xbf16>
    %cst = arith.constant dense<0.000000e+00> : vector<2x128xf32>
    %2 = tpu.matmul %0, %1, %cst {dimension_numbers = #tpu.dot_dimension_numbers<[1], [0], [0], [1], [0, 0, 1, 1], [], []>} : vector<2x32xbf16>, vector<32x128xbf16>, vector<2x128xf32> -> vector<2x128xf32>
    %c0_3 = arith.constant 0 : index
    %c0_4 = arith.constant 0 : index
    %3 = vector.load %arg2[%c0_3, %c0_4] : memref<1x128xf32, #tpu.memory_space<vmem>>, vector<1x128xf32>
    %4 = vector.broadcast %3 : vector<1x128xf32> to vector<2x128xf32>
    %5 = arith.addf %2, %4 : vector<2x128xf32>
    %c0_5 = arith.constant 0 : index
    %c0_6 = arith.constant 0 : index
    %6 = vector.load %arg3[%c0_5, %c0_6] : memref<2x128xf32, #tpu.memory_space<vmem>>, vector<2x128xf32>
    tpu.vector_store %arg3[%c0_5, %c0_6], %5 {strides = array<i32>} : memref<2x128xf32, #tpu.memory_space<vmem>>, vector<2x128xf32>,
    return
  }
}

module attributes {stable_mosaic.version = 11 : i64} {
  func.func @_embed_ln_kernel(%arg0: i32, %arg1: memref<1x8x32xbf16, #tpu.memory_space<vmem>>, %arg2: memref<1x8x32xbf16, #tpu.memory_space<vmem>>, %arg3: memref<1x8x32xbf16, #tpu.memory_space<vmem>>, %arg4: memref<1x32xf32, #tpu.memory_space<vmem>>, %arg5: memref<1x32xf32, #tpu.memory_space<vmem>>, %arg6: memref<1x8x32xbf16, #tpu.memory_space<vmem>>) attributes {dimension_semantics = [#tpu.dimension_semantics<parallel>], iteration_bounds = array<i64: 2>, scalar_prefetch = 0 : i64, scratch_operands = 0 : i64, tpu.core_type = #tpu.core_type<tc>, window_params = [{transform_indices = @transform_0, window_bounds = array<i64: 1, 8, 32>}, {transform_indices = @transform_1, window_bounds = array<i64: 1, 8, 32>}, {pipeline_mode = #tpu.pipeline_mode<synchronous>, transform_indices = @transform_2, window_bounds = array<i64: 1, 8, 32>}, {pipeline_mode = #tpu.pipeline_mode<synchronous>, transform_indices = @transform_3, window_bounds = array<i64: 1, 32>}, {pipeline_mode = #tpu.pipeline_mode<synchronous>, transform_indices = @transform_4, window_bounds = array<i64: 1, 32>}, {transform_indices = @transform_5, window_bounds = array<i64: 1, 8, 32>}]} {
    %c0 = arith.constant 0 : index
    %c0_0 = arith.constant 0 : index
    %c0_1 = arith.constant 0 : index
    %0 = vector.load %arg1[%c0, %c0_0, %c0_1] : memref<1x8x32xbf16, #tpu.memory_space<vmem>>, vector<1x8x32xbf16>
    %1 = vector.shape_cast %0 : vector<1x8x32xbf16> to vector<8x32xbf16>
    %2 = arith.extf %1 : vector<8x32xbf16> to vector<8x32xf32>
    %c0_2 = arith.constant 0 : index
    %c0_3 = arith.constant 0 : index
    %c0_4 = arith.constant 0 : index
    %3 = vector.load %arg2[%c0_2, %c0_3, %c0_4] : memref<1x8x32xbf16, #tpu.memory_space<vmem>>, vector<1x8x32xbf16>
    %4 = vector.shape_cast %3 : vector<1x8x32xbf16> to vector<8x32xbf16>
    %5 = arith.extf %4 : vector<8x32xbf16> to vector<8x32xf32>
    %6 = arith.addf %2, %5 : vector<8x32xf32>
    %c0_5 = arith.constant 0 : index
    %c0_6 = arith.constant 0 : index
    %c0_7 = arith.constant 0 : index
    %7 = vector.load %arg3[%c0_5, %c0_6, %c0_7] : memref<1x8x32xbf16, #tpu.memory_space<vmem>>, vector<1x8x32xbf16>
    %8 = vector.shape_cast %7 : vector<1x8x32xbf16> to vector<8x32xbf16>
    %9 = arith.extf %8 : vector<8x32xbf16> to vector<8x32xf32>
    %10 = arith.addf %6, %9 : vector<8x32xf32>
    %c0_8 = arith.constant 0 : index
    %c0_9 = arith.constant 0 : index
    %11 = vector.load %arg4[%c0_8, %c0_9] : memref<1x32xf32, #tpu.memory_space<vmem>>, vector<1x32xf32>
    %c0_10 = arith.constant 0 : index
    %c0_11 = arith.constant 0 : index
    %12 = vector.load %arg5[%c0_10, %c0_11] : memref<1x32xf32, #tpu.memory_space<vmem>>, vector<1x32xf32>
    %cst = arith.constant dense<0.000000e+00> : vector<8xf32>
    %13 = vector.multi_reduction <add>, %10, %cst [1] : vector<8x32xf32> to vector<8xf32>
    %14 = vector.shape_cast %13 : vector<8xf32> to vector<8x1xf32>
    %cst_12 = arith.constant 3.200000e+01 : f32
    %15 = vector.broadcast %cst_12 : f32 to vector<8x1xf32>
    %16 = arith.divf %14, %15 : vector<8x1xf32>
    %17 = vector.broadcast %16 : vector<8x1xf32> to vector<8x32xf32>
    %18 = arith.subf %10, %17 : vector<8x32xf32>
    %19 = arith.mulf %18, %18 : vector<8x32xf32>
    %cst_13 = arith.constant dense<0.000000e+00> : vector<8xf32>
    %20 = vector.multi_reduction <add>, %19, %cst_13 [1] : vector<8x32xf32> to vector<8xf32>
    %21 = vector.shape_cast %20 : vector<8xf32> to vector<8x1xf32>
    %cst_14 = arith.constant 3.200000e+01 : f32
    %22 = vector.broadcast %cst_14 : f32 to vector<8x1xf32>
    %23 = arith.divf %21, %22 : vector<8x1xf32>
    %24 = vector.broadcast %16 : vector<8x1xf32> to vector<8x32xf32>
    %25 = arith.subf %10, %24 : vector<8x32xf32>
    %cst_15 = arith.constant 9.99999996E-13 : f32
    %26 = vector.broadcast %cst_15 : f32 to vector<8x1xf32>
    %27 = arith.addf %23, %26 : vector<8x1xf32>
    %28 = math.rsqrt %27 : vector<8x1xf32>
    %29 = vector.broadcast %28 : vector<8x1xf32> to vector<8x32xf32>
    %30 = arith.mulf %25, %29 : vector<8x32xf32>
    %31 = vector.broadcast %11 : vector<1x32xf32> to vector<8x32xf32>
    %32 = arith.mulf %30, %31 : vector<8x32xf32>
    %33 = vector.broadcast %12 : vector<1x32xf32> to vector<8x32xf32>
    %34 = arith.addf %32, %33 : vector<8x32xf32>
    %35 = arith.truncf %34 : vector<8x32xf32> to vector<8x32xbf16>
    %c0_16 = arith.constant 0 : index
    %c0_17 = arith.constant 0 : index
    %c0_18 = arith.constant 0 : index
    %36 = vector.load %arg6[%c0_16, %c0_17, %c0_18] : memref<1x8x32xbf16, #tpu.memory_space<vmem>>, vector<1x8x32xbf16>
    %37 = vector.shape_cast %36 : vector<1x8x32xbf16> to vector<8x32xbf16>
    %38 = vector.shape_cast %35 : vector<8x32xbf16> to vector<1x8x32xbf16>
    tpu.vector_store %arg6[%c0_16, %c0_17, %c0_18], %38 {strides = array<i32>} : memref<1x8x32xbf16, #tpu.memory_space<vmem>>, vector<1x8x32xbf16>,
    return
  }
  func.func @transform_0(%arg0: i32) -> (i32, i32, i32) {
    %c0_i32 = arith.constant 0 : i32
    %c0_i32_0 = arith.constant 0 : i32
    %c0_i32_1 = arith.constant 0 : i32
    return %arg0, %c0_i32, %c0_i32_0 : i32, i32, i32
  }
  func.func @transform_1(%arg0: i32) -> (i32, i32, i32) {
    %c0_i32 = arith.constant 0 : i32
    %c0_i32_0 = arith.constant 0 : i32
    %c0_i32_1 = arith.constant 0 : i32
    return %arg0, %c0_i32, %c0_i32_0 : i32, i32, i32
  }
  func.func @transform_2(%arg0: i32) -> (i32, i32, i32) {
    %c0_i32 = arith.constant 0 : i32
    %c0_i32_0 = arith.constant 0 : i32
    %c0_i32_1 = arith.constant 0 : i32
    %c0_i32_2 = arith.constant 0 : i32
    return %c0_i32, %c0_i32_0, %c0_i32_1 : i32, i32, i32
  }
  func.func @transform_3(%arg0: i32) -> (i32, i32) {
    %c0_i32 = arith.constant 0 : i32
    %c0_i32_0 = arith.constant 0 : i32
    %c0_i32_1 = arith.constant 0 : i32
    return %c0_i32, %c0_i32_0 : i32, i32
  }
  func.func @transform_4(%arg0: i32) -> (i32, i32) {
    %c0_i32 = arith.constant 0 : i32
    %c0_i32_0 = arith.constant 0 : i32
    %c0_i32_1 = arith.constant 0 : i32
    return %c0_i32, %c0_i32_0 : i32, i32
  }
  func.func @transform_5(%arg0: i32) -> (i32, i32, i32) {
    %c0_i32 = arith.constant 0 : i32
    %c0_i32_0 = arith.constant 0 : i32
    %c0_i32_1 = arith.constant 0 : i32
    return %arg0, %c0_i32, %c0_i32_0 : i32, i32, i32
  }
}

</mosaic_0001>

<llo_original>
// kernel: electra_cls_forward.7
$region0: #{electra_cls_forward.7}
  #allocation0 [shape = 'u32[]', space=smem, size = 0x4, offset = 0x4, fixed_abs, tag = 'smem constant byte address 0x4 - core index']
  #allocation1 [shape = 'u32[144,128]{1,0:T(1,128)}', space=vmem, size = 0x12000, scoped, tag = 'internal scratch']
  %s0 = inlined_call_operand.vmem [shape: bf16[2,32], index: 0, kind: input, shape index: {}]
  %s1 = inlined_call_operand.vmem [shape: bf16[32,128], index: 1, kind: input, shape index: {}]
  %s2 = inlined_call_operand.vmem [shape: f32[1,128], index: 2, kind: input, shape index: {}]
  %s3 = inlined_call_operand.hbm [shape: f32[2,128], index: 3, kind: output, shape index: {}]
  %s4 = sld [smem:[#allocation0]]
  $region22: #{electra_cls_forward.7} parent=0
    _
  %s6 = ssub.s32 1, %s4
  %s7 = scalar_select 0, %s6, %s4
  $region1: #{electra_cls_forward.7} parent=0
    #allocation2 [shape = 'u8[1024]{0}', space=vmem, size = 0x400, scoped, tag = 'output window, operand 0, single buffered']
    #allocation3 [shape = 's32[1]{0}', space=sflag, size = 0x4, scoped, tag = 'scoped memory for electra_cls_forward.7']
    %8 = vsyncpa [#allocation3], 0
    // Predicated region
    $region2: #{electra_cls_forward.7} parent=1 // pred_check
      _
    $region3: #{electra_cls_forward.7} parent=1 // pred_check_branch
      %10 = sbr.rel (0) target = $region5
    $region4: #{electra_cls_forward.7} parent=1 // pred_region
      _
    $region5: #{electra_cls_forward.7} parent=1 // pred_fallthru
      _
    // Predicated region
    $region6: #{electra_cls_forward.7} parent=1 // pred_check
      _
    $region7: #{electra_cls_forward.7} parent=1 // pred_check_branch
      %12 = sbr.rel (0) target = $region9
    $region8: #{electra_cls_forward.7} parent=1 // pred_region
      _
    $region9: #{electra_cls_forward.7} parent=1 // pred_fallthru
      _
    // Predicated region
    $region10: #{electra_cls_forward.7} parent=1 // pred_check
      _
    $region11: #{electra_cls_forward.7} parent=1 // pred_check_branch
      %14 = sbr.rel (0) target = $region13
    $region12: #{electra_cls_forward.7} parent=1 // pred_region
      _
    $region13: #{electra_cls_forward.7} parent=1 // pred_fallthru
      _
    %v16 = vld [vmem:[%s0] sm:$0x1]
    %v17 = vld [vmem:[%s1] sm:$0xf]
    %v18 = vld [vmem:[%s1 + $0x4] sm:$0xf]
    %v19 = vld [vmem:[%s1 + $0x8] sm:$0xf]
    %v20 = vld [vmem:[%s1 + $0xc] sm:$0xf]
    %v21 = vld [vmem:[%s2] sm:$0x1]
    %v23 = vlaneseq
    %v24 = vshrl.u32 %v23, 7
    %v25 = vsub.s32 0, %v24
    %v26 = vrot.slane %v21, %v25
    %v32 = vunpack.c.l.b16 %v17
    %v33 = vunpack.c.l.b16 %v18
    %v34 = vunpack.c.l.b16 %v19
    %v35 = vunpack.c.l.b16 %v20
    %v36 = vpack.c.b16 %v33, %v32
    %v37 = vpack.c.b16 %v35, %v34
    %vm40 = vcmask 261120
    %v42 = vsel %vm40, %v16, 0
    %44 = vmatprep.subr.bf16.mxu0 0
    %45 = vmatpush1.bf16.msra.mxu0 0
    %46 = vmatprep.subr.bf16.mxu0 0
    %47 = vmatpush1.bf16.msra.mxu0 0
    %48 = vmatprep.subr.bf16.mxu0 0
    %49 = vmatpush1.bf16.msra.mxu0 0
    %50 = vmatprep.subr.bf16.mxu0 0
    %51 = vmatpush1.bf16.msra.mxu0 0
    %52 = vmatprep.subr.bf16.mxu0 0
    %53 = vmatpush1.bf16.msra.mxu0 0
    %54 = vmatprep.subr.bf16.mxu0 0
    %55 = vmatpush1.bf16.msra.mxu0 0
    %56 = vmatprep.subr.bf16.mxu0 0
    %57 = vmatpush1.bf16.msra.mxu0 %v37
    %58 = vmatprep.subr.bf16.mxu0 0
    %59 = vmatpush1.bf16.msra.mxu0 %v36
    %60 = vmatprep.subr.bf16.mxu0 0
    %61 = vmatpush2.bf16.msra.mxu0 0
    %62 = vmatprep.subr.bf16.mxu0 0
    %63 = vmatpush2.bf16.msra.mxu0 0
    %64 = vmatprep.subr.bf16.mxu0 0
    %65 = vmatpush2.bf16.msra.mxu0 0
    %66 = vmatprep.subr.bf16.mxu0 0
    %67 = vmatpush2.bf16.msra.mxu0 0
    %68 = vmatprep.subr.bf16.mxu0 0
    %69 = vmatpush2.bf16.msra.mxu0 0
    %70 = vmatprep.subr.bf16.mxu0 0
    %71 = vmatpush2.bf16.msra.mxu0 0
    %72 = vmatprep.subr.bf16.mxu0 0
    %73 = vmatpush2.bf16.msra.mxu0 0
    %74 = vmatprep.subr.bf16.mxu0 0
    %75 = vmatpush2.bf16.msra.mxu0 0
    %76 = vmatprep.mubr.bf16.mxu0 0
    %77 = vmatmul.mubr.bf16.gmra.mxu0 %v42
    %v78 = vpop.f32.mrf.mxu0
    %v79 = vadd.f32 %v26, %v78
    %v80 = vpop.f32.mrf.mxu0
    %v81 = vpop.f32.mrf.mxu0
    %v82 = vpop.f32.mrf.mxu0
    %83 = vdwg.mxu0
    %84 = vst [vmem:[#allocation2] sm:$0x3] %v79
    // Predicated region
    $region14: #{electra_cls_forward.7} parent=1 // pred_check
      _
    $region15: #{electra_cls_forward.7} parent=1 // pred_check_branch
      %86 = sbr.rel (0) target = $region17
    $region16: #{electra_cls_forward.7} parent=1 // pred_region
      %s88 = ssub.s32 32, 32
      %89 = vsyncadd [#allocation3], %s88
      %s91 = sshll.u32 [#allocation2], 4
      %s92 = int_to_ptr.vmem [resolvable:$true] %s91
      %94 = dma.vmem_to_hbm [thread:$0]  %s92, 32, %s3, [#allocation3]
    $region17: #{electra_cls_forward.7} parent=1 // pred_fallthru
      _
    // Predicated region
    $region18: #{electra_cls_forward.7} parent=1 // pred_check
      _
    $region19: #{electra_cls_forward.7} parent=1 // pred_check_branch
      %96 = sbr.rel (0) target = $region21
    $region20: #{electra_cls_forward.7} parent=1 // pred_region
      %97 = dma.done [#allocation3], 32
    $region21: #{electra_cls_forward.7} parent=1 // pred_fallthru
      _
    %98 = vsyncpa [#allocation3], 1

// kernel: electra_cls_forward.4
$region0: #{electra_cls_forward.4}
  #allocation0 [shape = 'u32[]', space=smem, size = 0x4, offset = 0x4, fixed_abs, tag = 'smem constant byte address 0x4 - core index']
  #allocation1 [shape = 'u32[144,128]{1,0:T(1,128)}', space=vmem, size = 0x12000, scoped, tag = 'internal scratch']
  %s0 = inlined_call_operand.vmem [shape: bf16[2,8,32], index: 0, kind: input, shape index: {}]
  %s1 = inlined_call_operand.vmem [shape: bf16[2,8,32], index: 1, kind: input, shape index: {}]
  %s2 = inlined_call_operand.vmem [shape: bf16[1,8,32], index: 2, kind: input, shape index: {}]
  %s3 = inlined_call_operand.vmem [shape: f32[1,32], index: 3, kind: input, shape index: {}]
  %s4 = inlined_call_operand.vmem [shape: f32[1,32], index: 4, kind: input, shape index: {}]
  %s5 = inlined_call_operand.vmem [shape: bf16[2,8,32], index: 5, kind: output, shape index: {}]
  %s6 = sld [smem:[#allocation0]]
  $region53: #{electra_cls_forward.4} parent=0
    _
  %s8 = ssub.s32 1, %s6
  %s9 = scalar_select 0, %s8, %s6
  loop: start=0, step=1, limit=4
  $region2: #{electra_cls_forward.4} parent=0 // loop_pre_header
    _
  $region3: #{electra_cls_forward.4} parent=0 // loop_header
    %s11 = sphi 0, %s15
    %p12 = scmp.ge.s32.totalorder %s11, 4
    %s21 = sphi 0, %s23
    %s24 = sphi 0, %s21
    %s25 = sphi 0, %s24
    %s41 = sphi 0, %s25
    %s47 = sphi 0, %s49
    %s50 = sphi 0, %s47
    %s51 = sphi 0, %s50
    %s67 = sphi 0, %s51
    %s71 = sphi 0, %s71
    %s73 = sphi 0, %s71
    %s74 = sphi 0, %s73
    %s88 = sphi 0, %s74
    %s92 = sphi 0, %s92
    %s94 = sphi 0, %s92
    %s95 = sphi 0, %s94
    %s109 = sphi 0, %s95
    %s113 = sphi 0, %s113
    %s115 = sphi 0, %s113
    %s116 = sphi 0, %s115
    %s130 = sphi 0, %s116
    %s136 = sphi 0, %s138
    %s139 = sphi 0, %s136
    %s140 = sphi 0, %s139
    %s156 = sphi 0, %s140
  $region4: #{electra_cls_forward.4} parent=0 // loop_header_branch
    %14 = sbr.rel (%p12) target = $region8
  $region5: #{electra_cls_forward.4} parent=0 // loop_body
    %s16 = ssub.s32 %s11, 1
    %s17 = ssub.s32 %s11, 2
    %s18 = sadd.s32 %s11, 1
    %s19 = ssub.s32 %s11, %s18
    %p20 = scmp.eq.s32.totalorder %s19, 0
    %s22 = sadd.s32 %s21, 1
    %s23 = scalar_select %p20, %s21, %s22
    %p26 = pneg %p20
    %p27 = scmp.eq.s32.totalorder %s11, 1
    %p28 = por %p26, %p27
    %p29 = scmp.ne.s32.totalorder %s21, %s24
    %p30 = scmp.eq.s32.totalorder %s11, 0
    %p31 = por %p29, %p30
    %p32 = scmp.ne.s32.totalorder %s21, %s24
    %p33 = scmp.eq.s32.totalorder %s16, 1
    %p34 = por %p32, %p33
    %p35 = scmp.ne.s32.totalorder %s24, %s25
    %p36 = scmp.eq.s32.totalorder %s16, 0
    %p37 = por %p35, %p36
    %p38 = scmp.ne.s32.totalorder %s24, %s25
    %p39 = scmp.eq.s32.totalorder %s17, 1
    %p40 = por %p38, %p39
    %p42 = scmp.ne.s32.totalorder %s25, %s41
    %p43 = scmp.eq.s32.totalorder %s17, 0
    %p44 = por %p42, %p43
    %s45 = ssub.s32 %s11, %s18
    %p46 = scmp.eq.s32.totalorder %s45, 0
    %s48 = sadd.s32 %s47, 1
    %s49 = scalar_select %p46, %s47, %s48
    %p52 = pneg %p46
    %p53 = scmp.eq.s32.totalorder %s11, 1
    %p54 = por %p52, %p53
    %p55 = scmp.ne.s32.totalorder %s47, %s50
    %p56 = scmp.eq.s32.totalorder %s11, 0
    %p57 = por %p55, %p56
    %p58 = scmp.ne.s32.totalorder %s47, %s50
    %p59 = scmp.eq.s32.totalorder %s16, 1
    %p60 = por %p58, %p59
    %p61 = scmp.ne.s32.totalorder %s50, %s51
    %p62 = scmp.eq.s32.totalorder %s16, 0
    %p63 = por %p61, %p62
    %p64 = scmp.ne.s32.totalorder %s50, %s51
    %p65 = scmp.eq.s32.totalorder %s17, 1
    %p66 = por %p64, %p65
    %p68 = scmp.ne.s32.totalorder %s51, %s67
    %p69 = scmp.eq.s32.totalorder %s17, 0
    %p70 = por %p68, %p69
    %s72 = sadd.s32 %s71, 1
    %p75 = scmp.eq.s32.totalorder %s11, 1
    %p76 = scmp.ne.s32.totalorder %s71, %s73
    %p77 = scmp.eq.s32.totalorder %s11, 0
    %p78 = por %p76, %p77
    %p79 = scmp.ne.s32.totalorder %s71, %s73
    %p80 = scmp.eq.s32.totalorder %s16, 1
    %p81 = por %p79, %p80
    %p82 = scmp.ne.s32.totalorder %s73, %s74
    %p83 = scmp.eq.s32.totalorder %s16, 0
    %p84 = por %p82, %p83
    %p85 = scmp.ne.s32.totalorder %s73, %s74
    %p86 = scmp.eq.s32.totalorder %s17, 1
    %p87 = por %p85, %p86
    %p89 = scmp.ne.s32.totalorder %s74, %s88
    %p90 = scmp.eq.s32.totalorder %s17, 0
    %p91 = por %p89, %p90
    %s93 = sadd.s32 %s92, 1
    %p96 = scmp.eq.s32.totalorder %s11, 1
    %p97 = scmp.ne.s32.totalorder %s92, %s94
    %p98 = scmp.eq.s32.totalorder %s11, 0
    %p99 = por %p97, %p98
    %p100 = scmp.ne.s32.totalorder %s92, %s94
    %p101 = scmp.eq.s32.totalorder %s16, 1
    %p102 = por %p100, %p101
    %p103 = scmp.ne.s32.totalorder %s94, %s95
    %p104 = scmp.eq.s32.totalorder %s16, 0
    %p105 = por %p103, %p104
    %p106 = scmp.ne.s32.totalorder %s94, %s95
    %p107 = scmp.eq.s32.totalorder %s17, 1
    %p108 = por %p106, %p107
    %p110 = scmp.ne.s32.totalorder %s95, %s109
    %p111 = scmp.eq.s32.totalorder %s17, 0
    %p112 = por %p110, %p111
    %s114 = sadd.s32 %s113, 1
    %p117 = scmp.eq.s32.totalorder %s11, 1
    %p118 = scmp.ne.s32.totalorder %s113, %s115
    %p119 = scmp.eq.s32.totalorder %s11, 0
    %p120 = por %p118, %p119
    %p121 = scmp.ne.s32.totalorder %s113, %s115
    %p122 = scmp.eq.s32.totalorder %s16, 1
    %p123 = por %p121, %p122
    %p124 = scmp.ne.s32.totalorder %s115, %s116
    %p125 = scmp.eq.s32.totalorder %s16, 0
    %p126 = por %p124, %p125
    %p127 = scmp.ne.s32.totalorder %s115, %s116
    %p128 = scmp.eq.s32.totalorder %s17, 1
    %p129 = por %p127, %p128
    %p131 = scmp.ne.s32.totalorder %s116, %s130
    %p132 = scmp.eq.s32.totalorder %s17, 0
    %p133 = por %p131, %p132
    %s134 = ssub.s32 %s11, %s18
    %p135 = scmp.eq.s32.totalorder %s134, 0
    %s137 = sadd.s32 %s136, 1
    %s138 = scalar_select %p135, %s136, %s137
    %p141 = pneg %p135
    %p142 = scmp.eq.s32.totalorder %s11, 1
    %p143 = por %p141, %p142
    %p144 = scmp.ne.s32.totalorder %s136, %s139
    %p145 = scmp.eq.s32.totalorder %s11, 0
    %p146 = por %p144, %p145
    %p147 = scmp.ne.s32.totalorder %s136, %s139
    %p148 = scmp.eq.s32.totalorder %s16, 1
    %p149 = por %p147, %p148
    %p150 = scmp.ne.s32.totalorder %s139, %s140
    %p151 = scmp.eq.s32.totalorder %s16, 0
    %p152 = por %p150, %p151
    %p153 = scmp.ne.s32.totalorder %s139, %s140
    %p154 = scmp.eq.s32.totalorder %s17, 1
    %p155 = por %p153, %p154
    %p157 = scmp.ne.s32.totalorder %s140, %s156
    %p158 = scmp.eq.s32.totalorder %s17, 0
    %p159 = por %p157, %p158
    %p160 = scmp.le.s32.totalorder 1, %s11
    %p161 = scmp.lt.s32.totalorder %s11, 3
    %p162 = pnand %p160, %p161
    %p163 = pneg %p162
    // Predicated region
    $region9: #{electra_cls_forward.4} parent=5 // pred_check
      _
    $region10: #{electra_cls_forward.4} parent=5 // pred_check_branch
      %165 = sbr.rel (%p162) target = $region12
    $region11: #{electra_cls_forward.4} parent=5 // pred_region
      %s166 = ssub.s32 %s11, 1
      // Predicated region
      $region13: #{electra_cls_forward.4} parent=11 // pred_check
        %p167 = pneg %p84
      $region14: #{electra_cls_forward.4} parent=11 // pred_check_branch
        %169 = sbr.rel (%p167) target = $region16
      $region15: #{electra_cls_forward.4} parent=11 // pred_region
        _
      $region16: #{electra_cls_forward.4} parent=11 // pred_fallthru
        _
      // Predicated region
      $region17: #{electra_cls_forward.4} parent=11 // pred_check
        %p170 = pneg %p105
      $region18: #{electra_cls_forward.4} parent=11 // pred_check_branch
        %172 = sbr.rel (%p170) target = $region20
      $region19: #{electra_cls_forward.4} parent=11 // pred_region
        _
      $region20: #{electra_cls_forward.4} parent=11 // pred_fallthru
        _
      // Predicated region
      $region21: #{electra_cls_forward.4} parent=11 // pred_check
        %p173 = pneg %p126
      $region22: #{electra_cls_forward.4} parent=11 // pred_check_branch
        %175 = sbr.rel (%p173) target = $region24
      $region23: #{electra_cls_forward.4} parent=11 // pred_region
        _
      $region24: #{electra_cls_forward.4} parent=11 // pred_fallthru
        _
    $region12: #{electra_cls_forward.4} parent=5 // pred_fallthru
      _
    %p176 = scmp.lt.s32.totalorder %s11, 2
    // Predicated region
    $region25: #{electra_cls_forward.4} parent=5 // pred_check
      %p177 = pneg %p176
    $region26: #{electra_cls_forward.4} parent=5 // pred_check_branch
      %179 = sbr.rel (%p177) target = $region28
    $region27: #{electra_cls_forward.4} parent=5 // pred_region
      // Predicated region
      $region29: #{electra_cls_forward.4} parent=27 // pred_check
        %p180 = pneg %p31
      $region30: #{electra_cls_forward.4} parent=27 // pred_check_branch
        %182 = sbr.rel (%p180) target = $region32
      $region31: #{electra_cls_forward.4} parent=27 // pred_region
        %p183 = scmp.lt.s32.totalorder %s11, 1
        %s184 = scalar_select %p183, %s11, 1
        %s185 = smul.addr %s184, 4
        %s186 = scalar_lea.vmem %s0, %s185
      $region32: #{electra_cls_forward.4} parent=27 // pred_fallthru
        _
      // Predicated region
      $region33: #{electra_cls_forward.4} parent=27 // pred_check
        %p187 = pneg %p57
      $region34: #{electra_cls_forward.4} parent=27 // pred_check_branch
        %189 = sbr.rel (%p187) target = $region36
      $region35: #{electra_cls_forward.4} parent=27 // pred_region
        %p190 = scmp.lt.s32.totalorder %s11, 1
        %s191 = scalar_select %p190, %s11, 1
        %s192 = smul.addr %s191, 4
        %s193 = scalar_lea.vmem %s1, %s192
      $region36: #{electra_cls_forward.4} parent=27 // pred_fallthru
        _
    $region28: #{electra_cls_forward.4} parent=5 // pred_fallthru
      _
    %p194 = scmp.le.s32.totalorder 1, %s11
    %p195 = scmp.lt.s32.totalorder %s11, 3
    %p196 = pnand %p194, %p195
    %p197 = pneg %p196
    // Predicated region
    $region37: #{electra_cls_forward.4} parent=5 // pred_check
      _
    $region38: #{electra_cls_forward.4} parent=5 // pred_check_branch
      %199 = sbr.rel (%p196) target = $region40
    $region39: #{electra_cls_forward.4} parent=5 // pred_region
      %s200 = ssub.s32 %s11, 1
      %p201 = scmp.lt.s32.totalorder %s16, 1
      %s202 = scalar_select %p201, %s16, 1
      %s203 = smul.addr %s202, 4
      %s204 = scalar_lea.vmem %s0, %s203
      %p205 = pneg %p37
      %p206 = pneg %p34
      %p207 = scmp.lt.s32.totalorder %s16, 1
      %s208 = scalar_select %p207, %s16, 1
      %s209 = smul.addr %s208, 4
      %s210 = scalar_lea.vmem %s1, %s209
      %p211 = pneg %p63
      %p212 = pneg %p60
      %p213 = pneg %p84
      %p214 = pneg %p81
      %p215 = pneg %p105
      %p216 = pneg %p102
      %p217 = pneg %p126
      %p218 = pneg %p123
      %p219 = pneg %p152
      %p220 = pneg %p149
      %p221 = scmp.lt.s32.totalorder %s16, 1
      %s222 = scalar_select %p221, %s16, 1
      %s223 = smul.addr %s222, 4
      %s224 = scalar_lea.vmem %s5, %s223
      %p225 = scmp.lt.s32.totalorder %s16, 1
      %s226 = scalar_select %p225, %s16, 1
      %s227 = smul.addr %s226, 4
      %s228 = scalar_lea.vmem %s0, %s227
      %p229 = scmp.lt.s32.totalorder %s16, 1
      %s230 = scalar_select %p229, %s16, 1
      %s231 = smul.addr %s230, 4
      %s232 = scalar_lea.vmem %s1, %s231
      %p233 = scmp.lt.s32.totalorder %s16, 1
      %s234 = scalar_select %p233, %s16, 1
      %s235 = smul.addr %s234, 4
      %s236 = scalar_lea.vmem %s5, %s235
      %v237 = vld [vmem:[%s228] sm:$0xf]
      %v238 = vunpack.c.l.bf16 %v237
      %v239 = vld [vmem:[%s232] sm:$0xf]
      %v240 = vunpack.c.l.bf16 %v239
      %v241 = vadd.f32 %v238, %v240
      %v242 = vld [vmem:[%s2] sm:$0xf]
      %v243 = vunpack.c.l.bf16 %v242
      %v244 = vadd.f32 %v241, %v243
      %v245 = vld [vmem:[%s3] sm:$0x1]
      %v246 = vld [vmem:[%s4] sm:$0x1]
      %vm247 = vcmask 261120
      %v248 = vsel %vm247, %v244, 0.0
      %249 = vadd.xlane.f32.xlu0 %v248
      %v250 = vpop.xlane.xlu0 %249
      %v251 = vrcp.pop 32.0
      %v252 = vmul.f32 %v250, %v251
      %v253 = vsub.f32 %v244, %v252
      %v254 = vmul.f32 %v253, %v253
      %v255 = vsel %vm247, %v254, 0.0
      %256 = vadd.xlane.f32.xlu0 %v255
      %v257 = vpop.xlane.xlu0 %256
      %v258 = vmul.f32 %v257, %v251
      %v259 = vadd.f32 %v258, 1e-12
      %v260 = vrsqrt.pop %v259
      %v261 = vmul.f32 %v253, %v260
      %v263 = vlaneseq
      %v264 = vshrl.u32 %v263, 7
      %v265 = vsub.s32 0, %v264
      %v266 = vrot.slane %v245, %v265
      %v268 = vmul.f32 %v261, %v266
      %v270 = vlaneseq
      %v271 = vshrl.u32 %v270, 7
      %v272 = vsub.s32 0, %v271
      %v273 = vrot.slane %v246, %v272
      %v275 = vadd.f32 %v268, %v273
      %v276 = vpack.c.bf16 %v275, %v275
      %vm277 = vcmask 257024
      %278 = vst.msk [vmem:[%s236] sm:$0xf] %vm277, %v276
      %p279 = scmp.lt.s32.totalorder %s16, 1
      %s280 = scalar_select %p279, %s16, 1
      %s281 = smul.addr %s280, 4
      %s282 = scalar_lea.vmem %s5, %s281
      // Predicated region
      $region41: #{electra_cls_forward.4} parent=39 // pred_check
        %p283 = pneg %p149
      $region42: #{electra_cls_forward.4} parent=39 // pred_check_branch
        %285 = sbr.rel (%p283) target = $region44
      $region43: #{electra_cls_forward.4} parent=39 // pred_region
        _
      $region44: #{electra_cls_forward.4} parent=39 // pred_fallthru
        _
    $region40: #{electra_cls_forward.4} parent=5 // pred_fallthru
      _
    %p286 = scmp.le.s32.totalorder 2, %s11
    // Predicated region
    $region45: #{electra_cls_forward.4} parent=5 // pred_check
      %p287 = pneg %p286
    $region46: #{electra_cls_forward.4} parent=5 // pred_check_branch
      %289 = sbr.rel (%p287) target = $region48
    $region47: #{electra_cls_forward.4} parent=5 // pred_region
      %s290 = ssub.s32 %s11, 2
      // Predicated region
      $region49: #{electra_cls_forward.4} parent=47 // pred_check
        %p291 = pneg %p155
      $region50: #{electra_cls_forward.4} parent=47 // pred_check_branch
        %293 = sbr.rel (%p291) target = $region52
      $region51: #{electra_cls_forward.4} parent=47 // pred_region
        %p294 = scmp.lt.s32.totalorder %s17, 1
        %s295 = scalar_select %p294, %s17, 1
        %s296 = smul.addr %s295, 4
        %s297 = scalar_lea.vmem %s5, %s296
      $region52: #{electra_cls_forward.4} parent=47 // pred_fallthru
        _
    $region48: #{electra_cls_forward.4} parent=5 // pred_fallthru
      _
  $region6: #{electra_cls_forward.4} parent=0 // loop_footer
    %s15 = sadd.s32 1, %s11
  $region7: #{electra_cls_forward.4} parent=0 // loop_footer_branch
    %10 = sbr.rel target = $region3
  $region8: #{electra_cls_forward.4} parent=0 // loop_exit
    _

// kernel: electra_cls_forward.5
$region0: #{electra_cls_forward.5}
  #allocation0 [shape = 'u32[]', space=smem, size = 0x4, offset = 0x4, fixed_abs, tag = 'smem constant byte address 0x4 - core index']
  #allocation1 [shape = 'u32[144,128]{1,0:T(1,128)}', space=vmem, size = 0x12000, scoped, tag = 'internal scratch']
  %s0 = inlined_call_operand.vmem [shape: bf16[2,8,32], index: 0, kind: input, shape index: {}]
  %s1 = inlined_call_operand.vmem [shape: f32[2,1,8], index: 1, kind: input, shape index: {}]
  %s2 = inlined_call_operand.vmem [shape: bf16[32,96], index: 2, kind: input, shape index: {}]
  %s3 = inlined_call_operand.vmem [shape: f32[1,96], index: 3, kind: input, shape index: {}]
  %s4 = inlined_call_operand.vmem [shape: bf16[32,32], index: 4, kind: input, shape index: {}]
  %s5 = inlined_call_operand.vmem [shape: f32[1,32], index: 5, kind: input, shape index: {}]
  %s6 = inlined_call_operand.vmem [shape: f32[1,32], index: 6, kind: input, shape index: {}]
  %s7 = inlined_call_operand.vmem [shape: f32[1,32], index: 7, kind: input, shape index: {}]
  %s8 = inlined_call_operand.vmem [shape: bf16[32,64], index: 8, kind: input, shape index: {}]
  %s9 = inlined_call_operand.vmem [shape: f32[1,64], index: 9, kind: input, shape index: {}]
  %s10 = inlined_call_operand.vmem [shape: bf16[64,32], index: 10, kind: input, shape index: {}]
  %s11 = inlined_call_operand.vmem [shape: f32[1,32], index: 11, kind: input, shape index: {}]
  %s12 = inlined_call_operand.vmem [shape: f32[1,32], index: 12, kind: input, shape index: {}]
  %s13 = inlined_call_operand.vmem [shape: f32[1,32], index: 13, kind: input, shape index: {}]
  %s14 = inlined_call_operand.vmem [shape: bf16[2,8,32], index: 14, kind: output, shape index: {}]
  %s15 = sld [smem:[#allocation0]]
  $region89: #{electra_cls_forward.5} parent=0
    _
  %s17 = ssub.s32 1, %s15
  %s18 = scalar_select 0, %s17, %s15
  loop: start=0, step=1, limit=4
  $region2: #{electra_cls_forward.5} parent=0 // loop_pre_header
    _
  $region3: #{electra_cls_forward.5} parent=0 // loop_header
    %s20 = sphi 0, %s24
    %p21 = scmp.ge.s32.totalorder %s20, 4
    %s30 = sphi 0, %s32
    %s33 = sphi 0, %s30
    %s34 = sphi 0, %s33
    %s50 = sphi 0, %s34
    %s56 = sphi 0, %s58
    %s59 = sphi 0, %s56
    %s60 = sphi 0, %s59
    %s76 = sphi 0, %s60
    %s80 = sphi 0, %s80
    %s82 = sphi 0, %s80
    %s83 = sphi 0, %s82
    %s97 = sphi 0, %s83
    %s101 = sphi 0, %s101
    %s103 = sphi 0, %s101
    %s104 = sphi 0, %s103
    %s118 = sphi 0, %s104
    %s122 = sphi 0, %s122
    %s124 = sphi 0, %s122
    %s125 = sphi 0, %s124
    %s139 = sphi 0, %s125
    %s143 = sphi 0, %s143
    %s145 = sphi 0, %s143
    %s146 = sphi 0, %s145
    %s160 = sphi 0, %s146
    %s164 = sphi 0, %s164
    %s166 = sphi 0, %s164
    %s167 = sphi 0, %s166
    %s181 = sphi 0, %s167
    %s185 = sphi 0, %s185
    %s187 = sphi 0, %s185
    %s188 = sphi 0, %s187
    %s202 = sphi 0, %s188
    %s206 = sphi 0, %s206
    %s208 = sphi 0, %s206
    %s209 = sphi 0, %s208
    %s223 = sphi 0, %s209
    %s227 = sphi 0, %s227
    %s229 = sphi 0, %s227
    %s230 = sphi 0, %s229
    %s244 = sphi 0, %s230
    %s248 = sphi 0, %s248
    %s250 = sphi 0, %s248
    %s251 = sphi 0, %s250
    %s265 = sphi 0, %s251
    %s269 = sphi 0, %s269
    %s271 = sphi 0, %s269
    %s272 = sphi 0, %s271
    %s286 = sphi 0, %s272
    %s290 = sphi 0, %s290
    %s292 = sphi 0, %s290
    %s293 = sphi 0, %s292
    %s307 = sphi 0, %s293
    %s311 = sphi 0, %s311
    %s313 = sphi 0, %s311
    %s314 = sphi 0, %s313
    %s328 = sphi 0, %s314
    %s334 = sphi 0, %s336
    %s337 = sphi 0, %s334
    %s338 = sphi 0, %s337
    %s354 = sphi 0, %s338
  $region4: #{electra_cls_forward.5} parent=0 // loop_header_branch
    %23 = sbr.rel (%p21) target = $region8
  $region5: #{electra_cls_forward.5} parent=0 // loop_body
    %s25 = ssub.s32 %s20, 1
    %s26 = ssub.s32 %s20, 2
    %s27 = sadd.s32 %s20, 1
    %s28 = ssub.s32 %s20, %s27
    %p29 = scmp.eq.s32.totalorder %s28, 0
    %s31 = sadd.s32 %s30, 1
    %s32 = scalar_select %p29, %s30, %s31
    %p35 = pneg %p29
    %p36 = scmp.eq.s32.totalorder %s20, 1
    %p37 = por %p35, %p36
    %p38 = scmp.ne.s32.totalorder %s30, %s33
    %p39 = scmp.eq.s32.totalorder %s20, 0
    %p40 = por %p38, %p39
    %p41 = scmp.ne.s32.totalorder %s30, %s33
    %p42 = scmp.eq.s32.totalorder %s25, 1
    %p43 = por %p41, %p42
    %p44 = scmp.ne.s32.totalorder %s33, %s34
    %p45 = scmp.eq.s32.totalorder %s25, 0
    %p46 = por %p44, %p45
    %p47 = scmp.ne.s32.totalorder %s33, %s34
    %p48 = scmp.eq.s32.totalorder %s26, 1
    %p49 = por %p47, %p48
    %p51 = scmp.ne.s32.totalorder %s34, %s50
    %p52 = scmp.eq.s32.totalorder %s26, 0
    %p53 = por %p51, %p52
    %s54 = ssub.s32 %s20, %s27
    %p55 = scmp.eq.s32.totalorder %s54, 0
    %s57 = sadd.s32 %s56, 1
    %s58 = scalar_select %p55, %s56, %s57
    %p61 = pneg %p55
    %p62 = scmp.eq.s32.totalorder %s20, 1
    %p63 = por %p61, %p62
    %p64 = scmp.ne.s32.totalorder %s56, %s59
    %p65 = scmp.eq.s32.totalorder %s20, 0
    %p66 = por %p64, %p65
    %p67 = scmp.ne.s32.totalorder %s56, %s59
    %p68 = scmp.eq.s32.totalorder %s25, 1
    %p69 = por %p67, %p68
    %p70 = scmp.ne.s32.totalorder %s59, %s60
    %p71 = scmp.eq.s32.totalorder %s25, 0
    %p72 = por %p70, %p71
    %p73 = scmp.ne.s32.totalorder %s59, %s60
    %p74 = scmp.eq.s32.totalorder %s26, 1
    %p75 = por %p73, %p74
    %p77 = scmp.ne.s32.totalorder %s60, %s76
    %p78 = scmp.eq.s32.totalorder %s26, 0
    %p79 = por %p77, %p78
    %s81 = sadd.s32 %s80, 1
    %p84 = scmp.eq.s32.totalorder %s20, 1
    %p85 = scmp.ne.s32.totalorder %s80, %s82
    %p86 = scmp.eq.s32.totalorder %s20, 0
    %p87 = por %p85, %p86
    %p88 = scmp.ne.s32.totalorder %s80, %s82
    %p89 = scmp.eq.s32.totalorder %s25, 1
    %p90 = por %p88, %p89
    %p91 = scmp.ne.s32.totalorder %s82, %s83
    %p92 = scmp.eq.s32.totalorder %s25, 0
    %p93 = por %p91, %p92
    %p94 = scmp.ne.s32.totalorder %s82, %s83
    %p95 = scmp.eq.s32.totalorder %s26, 1
    %p96 = por %p94, %p95
    %p98 = scmp.ne.s32.totalorder %s83, %s97
    %p99 = scmp.eq.s32.totalorder %s26, 0
    %p100 = por %p98, %p99
    %s102 = sadd.s32 %s101, 1
    %p105 = scmp.eq.s32.totalorder %s20, 1
    %p106 = scmp.ne.s32.totalorder %s101, %s103
    %p107 = scmp.eq.s32.totalorder %s20, 0
    %p108 = por %p106, %p107
    %p109 = scmp.ne.s32.totalorder %s101, %s103
    %p110 = scmp.eq.s32.totalorder %s25, 1
    %p111 = por %p109, %p110
    %p112 = scmp.ne.s32.totalorder %s103, %s104
    %p113 = scmp.eq.s32.totalorder %s25, 0
    %p114 = por %p112, %p113
    %p115 = scmp.ne.s32.totalorder %s103, %s104
    %p116 = scmp.eq.s32.totalorder %s26, 1
    %p117 = por %p115, %p116
    %p119 = scmp.ne.s32.totalorder %s104, %s118
    %p120 = scmp.eq.s32.totalorder %s26, 0
    %p121 = por %p119, %p120
    %s123 = sadd.s32 %s122, 1
    %p126 = scmp.eq.s32.totalorder %s20, 1
    %p127 = scmp.ne.s32.totalorder %s122, %s124
    %p128 = scmp.eq.s32.totalorder %s20, 0
    %p129 = por %p127, %p128
    %p130 = scmp.ne.s32.totalorder %s122, %s124
    %p131 = scmp.eq.s32.totalorder %s25, 1
    %p132 = por %p130, %p131
    %p133 = scmp.ne.s32.totalorder %s124, %s125
    %p134 = scmp.eq.s32.totalorder %s25, 0
    %p135 = por %p133, %p134
    %p136 = scmp.ne.s32.totalorder %s124, %s125
    %p137 = scmp.eq.s32.totalorder %s26, 1
    %p138 = por %p136, %p137
    %p140 = scmp.ne.s32.totalorder %s125, %s139
    %p141 = scmp.eq.s32.totalorder %s26, 0
    %p142 = por %p140, %p141
    %s144 = sadd.s32 %s143, 1
    %p147 = scmp.eq.s32.totalorder %s20, 1
    %p148 = scmp.ne.s32.totalorder %s143, %s145
    %p149 = scmp.eq.s32.totalorder %s20, 0
    %p150 = por %p148, %p149
    %p151 = scmp.ne.s32.totalorder %s143, %s145
    %p152 = scmp.eq.s32.totalorder %s25, 1
    %p153 = por %p151, %p152
    %p154 = scmp.ne.s32.totalorder %s145, %s146
    %p155 = scmp.eq.s32.totalorder %s25, 0
    %p156 = por %p154, %p155
    %p157 = scmp.ne.s32.totalorder %s145, %s146
    %p158 = scmp.eq.s32.totalorder %s26, 1
    %p159 = por %p157, %p158
    %p161 = scmp.ne.s32.totalorder %s146, %s160
    %p162 = scmp.eq.s32.totalorder %s26, 0
    %p163 = por %p161, %p162
    %s165 = sadd.s32 %s164, 1
    %p168 = scmp.eq.s32.totalorder %s20, 1
    %p169 = scmp.ne.s32.totalorder %s164, %s166
    %p170 = scmp.eq.s32.totalorder %s20, 0
    %p171 = por %p169, %p170
    %p172 = scmp.ne.s32.totalorder %s164, %s166
    %p173 = scmp.eq.s32.totalorder %s25, 1
    %p174 = por %p172, %p173
    %p175 = scmp.ne.s32.totalorder %s166, %s167
    %p176 = scmp.eq.s32.totalorder %s25, 0
    %p177 = por %p175, %p176
    %p178 = scmp.ne.s32.totalorder %s166, %s167
    %p179 = scmp.eq.s32.totalorder %s26, 1
    %p180 = por %p178, %p179
    %p182 = scmp.ne.s32.totalorder %s167, %s181
    %p183 = scmp.eq.s32.totalorder %s26, 0
    %p184 = por %p182, %p183
    %s186 = sadd.s32 %s185, 1
    %p189 = scmp.eq.s32.totalorder %s20, 1
    %p190 = scmp.ne.s32.totalorder %s185, %s187
    %p191 = scmp.eq.s32.totalorder %s20, 0
    %p192 = por %p190, %p191
    %p193 = scmp.ne.s32.totalorder %s185, %s187
    %p194 = scmp.eq.s32.totalorder %s25, 1
    %p195 = por %p193, %p194
    %p196 = scmp.ne.s32.totalorder %s187, %s188
    %p197 = scmp.eq.s32.totalorder %s25, 0
    %p198 = por %p196, %p197
    %p199 = scmp.ne.s32.totalorder %s187, %s188
    %p200 = scmp.eq.s32.totalorder %s26, 1
    %p201 = por %p199, %p200
    %p203 = scmp.ne.s32.totalorder %s188, %s202
    %p204 = scmp.eq.s32.totalorder %s26, 0
    %p205 = por %p203, %p204
    %s207 = sadd.s32 %s206, 1
    %p210 = scmp.eq.s32.totalorder %s20, 1
    %p211 = scmp.ne.s32.totalorder %s206, %s208
    %p212 = scmp.eq.s32.totalorder %s20, 0
    %p213 = por %p211, %p212
    %p214 = scmp.ne.s32.totalorder %s206, %s208
    %p215 = scmp.eq.s32.totalorder %s25, 1
    %p216 = por %p214, %p215
    %p217 = scmp.ne.s32.totalorder %s208, %s209
    %p218 = scmp.eq.s32.totalorder %s25, 0
    %p219 = por %p217, %p218
    %p220 = scmp.ne.s32.totalorder %s208, %s209
    %p221 = scmp.eq.s32.totalorder %s26, 1
    %p222 = por %p220, %p221
    %p224 = scmp.ne.s32.totalorder %s209, %s223
    %p225 = scmp.eq.s32.totalorder %s26, 0
    %p226 = por %p224, %p225
    %s228 = sadd.s32 %s227, 1
    %p231 = scmp.eq.s32.totalorder %s20, 1
    %p232 = scmp.ne.s32.totalorder %s227, %s229
    %p233 = scmp.eq.s32.totalorder %s20, 0
    %p234 = por %p232, %p233
    %p235 = scmp.ne.s32.totalorder %s227, %s229
    %p236 = scmp.eq.s32.totalorder %s25, 1
    %p237 = por %p235, %p236
    %p238 = scmp.ne.s32.totalorder %s229, %s230
    %p239 = scmp.eq.s32.totalorder %s25, 0
    %p240 = por %p238, %p239
    %p241 = scmp.ne.s32.totalorder %s229, %s230
    %p242 = scmp.eq.s32.totalorder %s26, 1
    %p243 = por %p241, %p242
    %p245 = scmp.ne.s32.totalorder %s230, %s244
    %p246 = scmp.eq.s32.totalorder %s26, 0
    %p247 = por %p245, %p246
    %s249 = sadd.s32 %s248, 1
    %p252 = scmp.eq.s32.totalorder %s20, 1
    %p253 = scmp.ne.s32.totalorder %s248, %s250
    %p254 = scmp.eq.s32.totalorder %s20, 0
    %p255 = por %p253, %p254
    %p256 = scmp.ne.s32.totalorder %s248, %s250
    %p257 = scmp.eq.s32.totalorder %s25, 1
    %p258 = por %p256, %p257
    %p259 = scmp.ne.s32.totalorder %s250, %s251
    %p260 = scmp.eq.s32.totalorder %s25, 0
    %p261 = por %p259, %p260
    %p262 = scmp.ne.s32.totalorder %s250, %s251
    %p263 = scmp.eq.s32.totalorder %s26, 1
    %p264 = por %p262, %p263
    %p266 = scmp.ne.s32.totalorder %s251, %s265
    %p267 = scmp.eq.s32.totalorder %s26, 0
    %p268 = por %p266, %p267
    %s270 = sadd.s32 %s269, 1
    %p273 = scmp.eq.s32.totalorder %s20, 1
    %p274 = scmp.ne.s32.totalorder %s269, %s271
    %p275 = scmp.eq.s32.totalorder %s20, 0
    %p276 = por %p274, %p275
    %p277 = scmp.ne.s32.totalorder %s269, %s271
    %p278 = scmp.eq.s32.totalorder %s25, 1
    %p279 = por %p277, %p278
    %p280 = scmp.ne.s32.totalorder %s271, %s272
    %p281 = scmp.eq.s32.totalorder %s25, 0
    %p282 = por %p280, %p281
    %p283 = scmp.ne.s32.totalorder %s271, %s272
    %p284 = scmp.eq.s32.totalorder %s26, 1
    %p285 = por %p283, %p284
    %p287 = scmp.ne.s32.totalorder %s272, %s286
    %p288 = scmp.eq.s32.totalorder %s26, 0
    %p289 = por %p287, %p288
    %s291 = sadd.s32 %s290, 1
    %p294 = scmp.eq.s32.totalorder %s20, 1
    %p295 = scmp.ne.s32.totalorder %s290, %s292
    %p296 = scmp.eq.s32.totalorder %s20, 0
    %p297 = por %p295, %p296
    %p298 = scmp.ne.s32.totalorder %s290, %s292
    %p299 = scmp.eq.s32.totalorder %s25, 1
    %p300 = por %p298, %p299
    %p301 = scmp.ne.s32.totalorder %s292, %s293
    %p302 = scmp.eq.s32.totalorder %s25, 0
    %p303 = por %p301, %p302
    %p304 = scmp.ne.s32.totalorder %s292, %s293
    %p305 = scmp.eq.s32.totalorder %s26, 1
    %p306 = por %p304, %p305
    %p308 = scmp.ne.s32.totalorder %s293, %s307
    %p309 = scmp.eq.s32.totalorder %s26, 0
    %p310 = por %p308, %p309
    %s312 = sadd.s32 %s311, 1
    %p315 = scmp.eq.s32.totalorder %s20, 1
    %p316 = scmp.ne.s32.totalorder %s311, %s313
    %p317 = scmp.eq.s32.totalorder %s20, 0
    %p318 = por %p316, %p317
    %p319 = scmp.ne.s32.totalorder %s311, %s313
    %p320 = scmp.eq.s32.totalorder %s25, 1
    %p321 = por %p319, %p320
    %p322 = scmp.ne.s32.totalorder %s313, %s314
    %p323 = scmp.eq.s32.totalorder %s25, 0
    %p324 = por %p322, %p323
    %p325 = scmp.ne.s32.totalorder %s313, %s314
    %p326 = scmp.eq.s32.totalorder %s26, 1
    %p327 = por %p325, %p326
    %p329 = scmp.ne.s32.totalorder %s314, %s328
    %p330 = scmp.eq.s32.totalorder %s26, 0
    %p331 = por %p329, %p330
    %s332 = ssub.s32 %s20, %s27
    %p333 = scmp.eq.s32.totalorder %s332, 0
    %s335 = sadd.s32 %s334, 1
    %s336 = scalar_select %p333, %s334, %s335
    %p339 = pneg %p333
    %p340 = scmp.eq.s32.totalorder %s20, 1
    %p341 = por %p339, %p340
    %p342 = scmp.ne.s32.totalorder %s334, %s337
    %p343 = scmp.eq.s32.totalorder %s20, 0
    %p344 = por %p342, %p343
    %p345 = scmp.ne.s32.totalorder %s334, %s337
    %p346 = scmp.eq.s32.totalorder %s25, 1
    %p347 = por %p345, %p346
    %p348 = scmp.ne.s32.totalorder %s337, %s338
    %p349 = scmp.eq.s32.totalorder %s25, 0
    %p350 = por %p348, %p349
    %p351 = scmp.ne.s32.totalorder %s337, %s338
    %p352 = scmp.eq.s32.totalorder %s26, 1
    %p353 = por %p351, %p352
    %p355 = scmp.ne.s32.totalorder %s338, %s354
    %p356 = scmp.eq.s32.totalorder %s26, 0
    %p357 = por %p355, %p356
    %p358 = scmp.le.s32.totalorder 1, %s20
    %p359 = scmp.lt.s32.totalorder %s20, 3
    %p360 = pnand %p358, %p359
    %p361 = pneg %p360
    // Predicated region
    $region9: #{electra_cls_forward.5} parent=5 // pred_check
      _
    $region10: #{electra_cls_forward.5} parent=5 // pred_check_branch
      %363 = sbr.rel (%p360) target = $region12
    $region11: #{electra_cls_forward.5} parent=5 // pred_region
      %s364 = ssub.s32 %s20, 1
      // Predicated region
      $region13: #{electra_cls_forward.5} parent=11 // pred_check
        %p365 = pneg %p93
      $region14: #{electra_cls_forward.5} parent=11 // pred_check_branch
        %367 = sbr.rel (%p365) target = $region16
      $region15: #{electra_cls_forward.5} parent=11 // pred_region
        _
      $region16: #{electra_cls_forward.5} parent=11 // pred_fallthru
        _
      // Predicated region
      $region17: #{electra_cls_forward.5} parent=11 // pred_check
        %p368 = pneg %p114
      $region18: #{electra_cls_forward.5} parent=11 // pred_check_branch
        %370 = sbr.rel (%p368) target = $region20
      $region19: #{electra_cls_forward.5} parent=11 // pred_region
        _
      $region20: #{electra_cls_forward.5} parent=11 // pred_fallthru
        _
      // Predicated region
      $region21: #{electra_cls_forward.5} parent=11 // pred_check
        %p371 = pneg %p135
      $region22: #{electra_cls_forward.5} parent=11 // pred_check_branch
        %373 = sbr.rel (%p371) target = $region24
      $region23: #{electra_cls_forward.5} parent=11 // pred_region
        _
      $region24: #{electra_cls_forward.5} parent=11 // pred_fallthru
        _
      // Predicated region
      $region25: #{electra_cls_forward.5} parent=11 // pred_check
        %p374 = pneg %p156
      $region26: #{electra_cls_forward.5} parent=11 // pred_check_branch
        %376 = sbr.rel (%p374) target = $region28
      $region27: #{electra_cls_forward.5} parent=11 // pred_region
        _
      $region28: #{electra_cls_forward.5} parent=11 // pred_fallthru
        _
      // Predicated region
      $region29: #{electra_cls_forward.5} parent=11 // pred_check
        %p377 = pneg %p177
      $region30: #{electra_cls_forward.5} parent=11 // pred_check_branch
        %379 = sbr.rel (%p377) target = $region32
      $region31: #{electra_cls_forward.5} parent=11 // pred_region
        _
      $region32: #{electra_cls_forward.5} parent=11 // pred_fallthru
        _
      // Predicated region
      $region33: #{electra_cls_forward.5} parent=11 // pred_check
        %p380 = pneg %p198
      $region34: #{electra_cls_forward.5} parent=11 // pred_check_branch
        %382 = sbr.rel (%p380) target = $region36
      $region35: #{electra_cls_forward.5} parent=11 // pred_region
        _
      $region36: #{electra_cls_forward.5} parent=11 // pred_fallthru
        _
      // Predicated region
      $region37: #{electra_cls_forward.5} parent=11 // pred_check
        %p383 = pneg %p219
      $region38: #{electra_cls_forward.5} parent=11 // pred_check_branch
        %385 = sbr.rel (%p383) target = $region40
      $region39: #{electra_cls_forward.5} parent=11 // pred_region
        _
      $region40: #{electra_cls_forward.5} parent=11 // pred_fallthru
        _
      // Predicated region
      $region41: #{electra_cls_forward.5} parent=11 // pred_check
        %p386 = pneg %p240
      $region42: #{electra_cls_forward.5} parent=11 // pred_check_branch
        %388 = sbr.rel (%p386) target = $region44
      $region43: #{electra_cls_forward.5} parent=11 // pred_region
        _
      $region44: #{electra_cls_forward.5} parent=11 // pred_fallthru
        _
      // Predicated region
      $region45: #{electra_cls_forward.5} parent=11 // pred_check
        %p389 = pneg %p261
      $region46: #{electra_cls_forward.5} parent=11 // pred_check_branch
        %391 = sbr.rel (%p389) target = $region48
      $region47: #{electra_cls_forward.5} parent=11 // pred_region
        _
      $region48: #{electra_cls_forward.5} parent=11 // pred_fallthru
        _
      // Predicated region
      $region49: #{electra_cls_forward.5} parent=11 // pred_check
        %p392 = pneg %p282
      $region50: #{electra_cls_forward.5} parent=11 // pred_check_branch
        %394 = sbr.rel (%p392) target = $region52
      $region51: #{electra_cls_forward.5} parent=11 // pred_region
        _
      $region52: #{electra_cls_forward.5} parent=11 // pred_fallthru
        _
      // Predicated region
      $region53: #{electra_cls_forward.5} parent=11 // pred_check
        %p395 = pneg %p303
      $region54: #{electra_cls_forward.5} parent=11 // pred_check_branch
        %397 = sbr.rel (%p395) target = $region56
      $region55: #{electra_cls_forward.5} parent=11 // pred_region
        _
      $region56: #{electra_cls_forward.5} parent=11 // pred_fallthru
        _
      // Predicated region
      $region57: #{electra_cls_forward.5} parent=11 // pred_check
        %p398 = pneg %p324
      $region58: #{electra_cls_forward.5} parent=11 // pred_check_branch
        %400 = sbr.rel (%p398) target = $region60
      $region59: #{electra_cls_forward.5} parent=11 // pred_region
        _
      $region60: #{electra_cls_forward.5} parent=11 // pred_fallthru
        _
    $region12: #{electra_cls_forward.5} parent=5 // pred_fallthru
      _
    %p401 = scmp.lt.s32.totalorder %s20, 2
    // Predicated region
    $region61: #{electra_cls_forward.5} parent=5 // pred_check
      %p402 = pneg %p401
    $region62: #{electra_cls_forward.5} parent=5 // pred_check_branch
      %404 = sbr.rel (%p402) target = $region64
    $region63: #{electra_cls_forward.5} parent=5 // pred_region
      // Predicated region
      $region65: #{electra_cls_forward.5} parent=63 // pred_check
        %p405 = pneg %p40
      $region66: #{electra_cls_forward.5} parent=63 // pred_check_branch
        %407 = sbr.rel (%p405) target = $region68
      $region67: #{electra_cls_forward.5} parent=63 // pred_region
        %p408 = scmp.lt.s32.totalorder %s20, 1
        %s409 = scalar_select %p408, %s20, 1
        %s410 = smul.addr %s409, 4
        %s411 = scalar_lea.vmem %s0, %s410
      $region68: #{electra_cls_forward.5} parent=63 // pred_fallthru
        _
      // Predicated region
      $region69: #{electra_cls_forward.5} parent=63 // pred_check
        %p412 = pneg %p66
      $region70: #{electra_cls_forward.5} parent=63 // pred_check_branch
        %414 = sbr.rel (%p412) target = $region72
      $region71: #{electra_cls_forward.5} parent=63 // pred_region
        %p415 = scmp.lt.s32.totalorder %s20, 1
        %s416 = scalar_select %p415, %s20, 1
        %s417 = scalar_lea.vmem %s1, %s416
      $region72: #{electra_cls_forward.5} parent=63 // pred_fallthru
        _
    $region64: #{electra_cls_forward.5} parent=5 // pred_fallthru
      _
    %p418 = scmp.le.s32.totalorder 1, %s20
    %p419 = scmp.lt.s32.totalorder %s20, 3
    %p420 = pnand %p418, %p419
    %p421 = pneg %p420
    // Predicated region
    $region73: #{electra_cls_forward.5} parent=5 // pred_check
      _
    $region74: #{electra_cls_forward.5} parent=5 // pred_check_branch
      %423 = sbr.rel (%p420) target = $region76
    $region75: #{electra_cls_forward.5} parent=5 // pred_region
      %s424 = ssub.s32 %s20, 1
      %p425 = scmp.lt.s32.totalorder %s25, 1
      %s426 = scalar_select %p425, %s25, 1
      %s427 = smul.addr %s426, 4
      %s428 = scalar_lea.vmem %s0, %s427
      %p429 = pneg %p46
      %p430 = pneg %p43
      %p431 = scmp.lt.s32.totalorder %s25, 1
      %s432 = scalar_select %p431, %s25, 1
      %s433 = scalar_lea.vmem %s1, %s432
      %p434 = pneg %p72
      %p435 = pneg %p69
      %p436 = pneg %p93
      %p437 = pneg %p90
      %p438 = pneg %p114
      %p439 = pneg %p111
      %p440 = pneg %p135
      %p441 = pneg %p132
      %p442 = pneg %p156
      %p443 = pneg %p153
      %p444 = pneg %p177
      %p445 = pneg %p174
      %p446 = pneg %p198
      %p447 = pneg %p195
      %p448 = pneg %p219
      %p449 = pneg %p216
      %p450 = pneg %p240
      %p451 = pneg %p237
      %p452 = pneg %p261
      %p453 = pneg %p258
      %p454 = pneg %p282
      %p455 = pneg %p279
      %p456 = pneg %p303
      %p457 = pneg %p300
      %p458 = pneg %p324
      %p459 = pneg %p321
      %p460 = pneg %p350
      %p461 = pneg %p347
      %p462 = scmp.lt.s32.totalorder %s25, 1
      %s463 = scalar_select %p462, %s25, 1
      %s464 = smul.addr %s463, 4
      %s465 = scalar_lea.vmem %s14, %s464
      %p466 = scmp.lt.s32.totalorder %s25, 1
      %s467 = scalar_select %p466, %s25, 1
      %s468 = smul.addr %s467, 4
      %s469 = scalar_lea.vmem %s0, %s468
      %p470 = scmp.lt.s32.totalorder %s25, 1
      %s471 = scalar_select %p470, %s25, 1
      %s472 = scalar_lea.vmem %s1, %s471
      %p473 = scmp.lt.s32.totalorder %s25, 1
      %s474 = scalar_select %p473, %s25, 1
      %s475 = smul.addr %s474, 4
      %s476 = scalar_lea.vmem %s14, %s475
      %v478 = vld [vmem:[%s469] sm:$0xf]
      %v479 = vld [vmem:[%s2] sm:$0xf]
      %v480 = vld [vmem:[%s2 + $0x4] sm:$0xf]
      %v481 = vld [vmem:[%s2 + $0x8] sm:$0xf]
      %v482 = vld [vmem:[%s2 + $0xc] sm:$0xf]
      %v483 = vld [vmem:[%s3] sm:$0x1]
      %v485 = vlaneseq
      %v486 = vshrl.u32 %v485, 7
      %v487 = vsub.s32 0, %v486
      %v488 = vrot.slane %v483, %v487
      %v494 = vunpack.c.l.b16 %v479
      %v495 = vunpack.c.l.b16 %v480
      %v496 = vunpack.c.l.b16 %v481
      %v497 = vunpack.c.l.b16 %v482
      %v498 = vpack.c.b16 %v495, %v494
      %v499 = vpack.c.b16 %v497, %v496
      %vm502 = vcmask 261120
      %v504 = vsel %vm502, %v478, 0
      %506 = vmatprep.subr.bf16.mxu0 0
      %507 = vmatpush1.bf16.msra.mxu0 0
      %508 = vmatprep.subr.bf16.mxu0 0
      %509 = vmatpush1.bf16.msra.mxu0 0
      %510 = vmatprep.subr.bf16.mxu0 0
      %511 = vmatpush1.bf16.msra.mxu0 0
      %512 = vmatprep.subr.bf16.mxu0 0
      %513 = vmatpush1.bf16.msra.mxu0 0
      %514 = vmatprep.subr.bf16.mxu0 0
      %515 = vmatpush1.bf16.msra.mxu0 0
      %516 = vmatprep.subr.bf16.mxu0 0
      %517 = vmatpush1.bf16.msra.mxu0 0
      %518 = vmatprep.subr.bf16.mxu0 0
      %519 = vmatpush1.bf16.msra.mxu0 %v499
      %520 = vmatprep.subr.bf16.mxu0 0
      %521 = vmatpush1.bf16.msra.mxu0 %v498
      %522 = vmatprep.subr.bf16.mxu0 0
      %523 = vmatpush2.bf16.msra.mxu0 0
      %524 = vmatprep.subr.bf16.mxu0 0
      %525 = vmatpush2.bf16.msra.mxu0 0
      %526 = vmatprep.subr.bf16.mxu0 0
      %527 = vmatpush2.bf16.msra.mxu0 0
      %528 = vmatprep.subr.bf16.mxu0 0
      %529 = vmatpush2.bf16.msra.mxu0 0
      %530 = vmatprep.subr.bf16.mxu0 0
      %531 = vmatpush2.bf16.msra.mxu0 0
      %532 = vmatprep.subr.bf16.mxu0 0
      %533 = vmatpush2.bf16.msra.mxu0 0
      %534 = vmatprep.subr.bf16.mxu0 0
      %535 = vmatpush2.bf16.msra.mxu0 0
      %536 = vmatprep.subr.bf16.mxu0 0
      %537 = vmatpush2.bf16.msra.mxu0 0
      %538 = vmatprep.mubr.bf16.mxu0 0
      %539 = vmatmul.mubr.bf16.gmra.mxu0 %v504
      %v540 = vpop.f32.mrf.mxu0
      %v541 = vadd.f32 %v488, %v540
      %v542 = vpop.f32.mrf.mxu0
      %v543 = vpop.f32.mrf.mxu0
      %v544 = vpop.f32.mrf.mxu0
      %545 = vdwg.mxu0
      %v546 = vpack.c.bf16 %v541, %v541
      %v547 = vunpack.c.l.bf16 %v478
      %549 = vrot.lane.b32.xlu0 %v546, 120
      %v550 = vpop.permute.xlu0 %549
      %551 = vrot.lane.b32.xlu0 %v546, 112
      %v552 = vpop.permute.xlu0 %551
      %553 = vrot.lane.b32.xlu0 %v546, 104
      %v554 = vpop.permute.xlu0 %553
      %v556 = vunpack.c.l.s4 1983009808
      %v557 = vunpack.c.0.s8 %v556
      %v558 = vlaneseq
      %v559 = vshrl.u32 %v558, 7
      %v560 = vsub.s32 %v557, %v559
      %v561 = vrot.slane %v546, %v560
      %v564 = vunpack.c.l.s4 1983009808
      %v565 = vunpack.c.0.s8 %v564
      %v566 = vlaneseq
      %v567 = vshrl.u32 %v566, 7
      %v568 = vsub.s32 %v565, %v567
      %v569 = vrot.slane %v552, %v568
      %v570 = vcombine.low %v561, %v569
      %v571 = vcombine.high %v561, %v569
      %v573 = vunpack.c.l.s4 1934713408
      %v574 = vunpack.c.0.s8 %v573
      %v575 = vlaneseq
      %v576 = vshrl.u32 %v575, 7
      %v577 = vsub.s32 %v574, %v576
      %v578 = vrot.slane %v570, %v577
      %v580 = vunpack.c.l.s4 1934713408
      %v581 = vunpack.c.0.s8 %v580
      %v582 = vlaneseq
      %v583 = vshrl.u32 %v582, 7
      %v584 = vsub.s32 %v581, %v583
      %v585 = vrot.slane %v571, %v584
      %v586 = vcombine.high %v578, 0
      %v587 = vcombine.high %v585, 0
      %v590 = vunpack.c.l.s4 1983009808
      %v591 = vunpack.c.0.s8 %v590
      %v592 = vlaneseq
      %v593 = vshrl.u32 %v592, 7
      %v594 = vsub.s32 %v591, %v593
      %v595 = vrot.slane %v550, %v594
      %v598 = vunpack.c.l.s4 1983009808
      %v599 = vunpack.c.0.s8 %v598
      %v600 = vlaneseq
      %v601 = vshrl.u32 %v600, 7
      %v602 = vsub.s32 %v599, %v601
      %v603 = vrot.slane %v554, %v602
      %v604 = vcombine.low %v595, %v603
      %v605 = vcombine.high %v595, %v603
      %v607 = vunpack.c.l.s4 1934713408
      %v608 = vunpack.c.0.s8 %v607
      %v609 = vlaneseq
      %v610 = vshrl.u32 %v609, 7
      %v611 = vsub.s32 %v608, %v610
      %v612 = vrot.slane %v604, %v611
      %v614 = vunpack.c.l.s4 1934713408
      %v615 = vunpack.c.0.s8 %v614
      %v616 = vlaneseq
      %v617 = vshrl.u32 %v616, 7
      %v618 = vsub.s32 %v615, %v617
      %v619 = vrot.slane %v605, %v618
      %v620 = vcombine.high %v612, 0
      %v621 = vcombine.high %v619, 0
      %v624 = vpack.i.b16 %v612, %v578
      %v626 = vshrl.u32 %v578, 16
      %v627 = vshrl.u32 %v612, 16
      %v628 = vpack.i.b16 %v627, %v626
      %v632 = vpack.i.b16 %v620, %v586
      %v634 = vshrl.u32 %v586, 16
      %v635 = vshrl.u32 %v620, 16
      %v636 = vpack.i.b16 %v635, %v634
      %v640 = vpack.i.b16 %v619, %v585
      %v642 = vshrl.u32 %v585, 16
      %v643 = vshrl.u32 %v619, 16
      %v644 = vpack.i.b16 %v643, %v642
      %v648 = vpack.i.b16 %v621, %v587
      %v650 = vshrl.u32 %v587, 16
      %v651 = vshrl.u32 %v621, 16
      %v652 = vpack.i.b16 %v651, %v650
      %v654 = vcombine.low %v624, %v640
      %v656 = vunpack.c.l.s4 1983009808
      %v657 = vunpack.c.0.s8 %v656
      %v658 = vlaneseq
      %v659 = vshrl.u32 %v658, 7
      %v660 = vsub.s32 %v657, %v659
      %v661 = vrot.slane %v654, %v660
      %v662 = vcombine.low %v632, %v648
      %v664 = vunpack.c.l.s4 1983009808
      %v665 = vunpack.c.0.s8 %v664
      %v666 = vlaneseq
      %v667 = vshrl.u32 %v666, 7
      %v668 = vsub.s32 %v665, %v667
      %v669 = vrot.slane %v662, %v668
      %v670 = vcombine.low %v661, %v669
      %v672 = vunpack.c.l.s4 1934713408
      %v673 = vunpack.c.0.s8 %v672
      %v674 = vlaneseq
      %v675 = vshrl.u32 %v674, 7
      %v676 = vsub.s32 %v673, %v675
      %v677 = vrot.slane %v670, %v676
      %v678 = vcombine.high %v677, 0
      %v679 = vcombine.low %v628, %v644
      %v681 = vunpack.c.l.s4 1983009808
      %v682 = vunpack.c.0.s8 %v681
      %v683 = vlaneseq
      %v684 = vshrl.u32 %v683, 7
      %v685 = vsub.s32 %v682, %v684
      %v686 = vrot.slane %v679, %v685
      %v687 = vcombine.low %v636, %v652
      %v689 = vunpack.c.l.s4 1983009808
      %v690 = vunpack.c.0.s8 %v689
      %v691 = vlaneseq
      %v692 = vshrl.u32 %v691, 7
      %v693 = vsub.s32 %v690, %v692
      %v694 = vrot.slane %v687, %v693
      %v695 = vcombine.low %v686, %v694
      %v697 = vunpack.c.l.s4 1934713408
      %v698 = vunpack.c.0.s8 %v697
      %v699 = vlaneseq
      %v700 = vshrl.u32 %v699, 7
      %v701 = vsub.s32 %v698, %v700
      %v702 = vrot.slane %v695, %v701
      %v703 = vcombine.high %v702, 0
      %v706 = vpack.i.b16 %v702, %v677
      %v707 = vshrl.u32 %v677, 16
      %v708 = vshrl.u32 %v702, 16
      %v709 = vpack.i.b16 %v708, %v707
      %v712 = vpack.i.b16 %v703, %v678
      %v713 = vshrl.u32 %v678, 16
      %v714 = vshrl.u32 %v703, 16
      %v715 = vpack.i.b16 %v714, %v713
      %716 = vrot.lane.b32.xlu0 %v546, 96
      %v717 = vpop.permute.xlu0 %716
      %718 = vrot.lane.b32.xlu0 %v550, 96
      %v719 = vpop.permute.xlu0 %718
      %720 = vrot.lane.b32.xlu0 %v552, 96
      %v721 = vpop.permute.xlu0 %720
      %722 = vrot.lane.b32.xlu0 %v554, 96
      %v723 = vpop.permute.xlu0 %722
      %v726 = vunpack.c.l.s4 1983009808
      %v727 = vunpack.c.0.s8 %v726
      %v728 = vlaneseq
      %v729 = vshrl.u32 %v728, 7
      %v730 = vsub.s32 %v727, %v729
      %v731 = vrot.slane %v717, %v730
      %v734 = vunpack.c.l.s4 1983009808
      %v735 = vunpack.c.0.s8 %v734
      %v736 = vlaneseq
      %v737 = vshrl.u32 %v736, 7
      %v738 = vsub.s32 %v735, %v737
      %v739 = vrot.slane %v721, %v738
      %v740 = vcombine.low %v731, %v739
      %v741 = vcombine.high %v731, %v739
      %v743 = vunpack.c.l.s4 1934713408
      %v744 = vunpack.c.0.s8 %v743
      %v745 = vlaneseq
      %v746 = vshrl.u32 %v745, 7
      %v747 = vsub.s32 %v744, %v746
      %v748 = vrot.slane %v740, %v747
      %v750 = vunpack.c.l.s4 1934713408
      %v751 = vunpack.c.0.s8 %v750
      %v752 = vlaneseq
      %v753 = vshrl.u32 %v752, 7
      %v754 = vsub.s32 %v751, %v753
      %v755 = vrot.slane %v741, %v754
      %v756 = vcombine.high %v748, 0
      %v757 = vcombine.high %v755, 0
      %v760 = vunpack.c.l.s4 1983009808
      %v761 = vunpack.c.0.s8 %v760
      %v762 = vlaneseq
      %v763 = vshrl.u32 %v762, 7
      %v764 = vsub.s32 %v761, %v763
      %v765 = vrot.slane %v719, %v764
      %v768 = vunpack.c.l.s4 1983009808
      %v769 = vunpack.c.0.s8 %v768
      %v770 = vlaneseq
      %v771 = vshrl.u32 %v770, 7
      %v772 = vsub.s32 %v769, %v771
      %v773 = vrot.slane %v723, %v772
      %v774 = vcombine.low %v765, %v773
      %v775 = vcombine.high %v765, %v773
      %v777 = vunpack.c.l.s4 1934713408
      %v778 = vunpack.c.0.s8 %v777
      %v779 = vlaneseq
      %v780 = vshrl.u32 %v779, 7
      %v781 = vsub.s32 %v778, %v780
      %v782 = vrot.slane %v774, %v781
      %v784 = vunpack.c.l.s4 1934713408
      %v785 = vunpack.c.0.s8 %v784
      %v786 = vlaneseq
      %v787 = vshrl.u32 %v786, 7
      %v788 = vsub.s32 %v785, %v787
      %v789 = vrot.slane %v775, %v788
      %v790 = vcombine.high %v782, 0
      %v791 = vcombine.high %v789, 0
      %v794 = vpack.i.b16 %v782, %v748
      %v796 = vshrl.u32 %v748, 16
      %v797 = vshrl.u32 %v782, 16
      %v798 = vpack.i.b16 %v797, %v796
      %v802 = vpack.i.b16 %v790, %v756
      %v804 = vshrl.u32 %v756, 16
      %v805 = vshrl.u32 %v790, 16
      %v806 = vpack.i.b16 %v805, %v804
      %v810 = vpack.i.b16 %v789, %v755
      %v812 = vshrl.u32 %v755, 16
      %v813 = vshrl.u32 %v789, 16
      %v814 = vpack.i.b16 %v813, %v812
      %v818 = vpack.i.b16 %v791, %v757
      %v820 = vshrl.u32 %v757, 16
      %v821 = vshrl.u32 %v791, 16
      %v822 = vpack.i.b16 %v821, %v820
      %v824 = vcombine.low %v794, %v810
      %v826 = vunpack.c.l.s4 1983009808
      %v827 = vunpack.c.0.s8 %v826
      %v828 = vlaneseq
      %v829 = vshrl.u32 %v828, 7
      %v830 = vsub.s32 %v827, %v829
      %v831 = vrot.slane %v824, %v830
      %v832 = vcombine.low %v802, %v818
      %v834 = vunpack.c.l.s4 1983009808
      %v835 = vunpack.c.0.s8 %v834
      %v836 = vlaneseq
      %v837 = vshrl.u32 %v836, 7
      %v838 = vsub.s32 %v835, %v837
      %v839 = vrot.slane %v832, %v838
      %v840 = vcombine.low %v831, %v839
      %v842 = vunpack.c.l.s4 1934713408
      %v843 = vunpack.c.0.s8 %v842
      %v844 = vlaneseq
      %v845 = vshrl.u32 %v844, 7
      %v846 = vsub.s32 %v843, %v845
      %v847 = vrot.slane %v840, %v846
      %v848 = vcombine.high %v847, 0
      %v849 = vcombine.low %v798, %v814
      %v851 = vunpack.c.l.s4 1983009808
      %v852 = vunpack.c.0.s8 %v851
      %v853 = vlaneseq
      %v854 = vshrl.u32 %v853, 7
      %v855 = vsub.s32 %v852, %v854
      %v856 = vrot.slane %v849, %v855
      %v857 = vcombine.low %v806, %v822
      %v859 = vunpack.c.l.s4 1983009808
      %v860 = vunpack.c.0.s8 %v859
      %v861 = vlaneseq
      %v862 = vshrl.u32 %v861, 7
      %v863 = vsub.s32 %v860, %v862
      %v864 = vrot.slane %v857, %v863
      %v865 = vcombine.low %v856, %v864
      %v867 = vunpack.c.l.s4 1934713408
      %v868 = vunpack.c.0.s8 %v867
      %v869 = vlaneseq
      %v870 = vshrl.u32 %v869, 7
      %v871 = vsub.s32 %v868, %v870
      %v872 = vrot.slane %v865, %v871
      %v873 = vcombine.high %v872, 0
      %v876 = vpack.i.b16 %v872, %v847
      %v877 = vshrl.u32 %v847, 16
      %v878 = vshrl.u32 %v872, 16
      %v879 = vpack.i.b16 %v878, %v877
      %v882 = vpack.i.b16 %v873, %v848
      %v883 = vshrl.u32 %v848, 16
      %v884 = vshrl.u32 %v873, 16
      %v885 = vpack.i.b16 %v884, %v883
      %886 = vrot.lane.b32.xlu0 %v546, 64
      %v887 = vpop.permute.xlu0 %886
      %888 = vrot.lane.b32.xlu0 %v550, 64
      %v889 = vpop.permute.xlu0 %888
      %890 = vrot.lane.b32.xlu0 %v552, 64
      %v891 = vpop.permute.xlu0 %890
      %892 = vrot.lane.b32.xlu0 %v554, 64
      %v893 = vpop.permute.xlu0 %892
      %v896 = vunpack.c.l.s4 1983009808
      %v897 = vunpack.c.0.s8 %v896
      %v898 = vlaneseq
      %v899 = vshrl.u32 %v898, 7
      %v900 = vsub.s32 %v897, %v899
      %v901 = vrot.slane %v887, %v900
      %v904 = vunpack.c.l.s4 1983009808
      %v905 = vunpack.c.0.s8 %v904
      %v906 = vlaneseq
      %v907 = vshrl.u32 %v906, 7
      %v908 = vsub.s32 %v905, %v907
      %v909 = vrot.slane %v891, %v908
      %v910 = vcombine.low %v901, %v909
      %v911 = vcombine.high %v901, %v909
      %v913 = vunpack.c.l.s4 1934713408
      %v914 = vunpack.c.0.s8 %v913
      %v915 = vlaneseq
      %v916 = vshrl.u32 %v915, 7
      %v917 = vsub.s32 %v914, %v916
      %v918 = vrot.slane %v910, %v917
      %v920 = vunpack.c.l.s4 1934713408
      %v921 = vunpack.c.0.s8 %v920
      %v922 = vlaneseq
      %v923 = vshrl.u32 %v922, 7
      %v924 = vsub.s32 %v921, %v923
      %v925 = vrot.slane %v911, %v924
      %v926 = vcombine.high %v918, 0
      %v927 = vcombine.high %v925, 0
      %v930 = vunpack.c.l.s4 1983009808
      %v931 = vunpack.c.0.s8 %v930
      %v932 = vlaneseq
      %v933 = vshrl.u32 %v932, 7
      %v934 = vsub.s32 %v931, %v933
      %v935 = vrot.slane %v889, %v934
      %v938 = vunpack.c.l.s4 1983009808
      %v939 = vunpack.c.0.s8 %v938
      %v940 = vlaneseq
      %v941 = vshrl.u32 %v940, 7
      %v942 = vsub.s32 %v939, %v941
      %v943 = vrot.slane %v893, %v942
      %v944 = vcombine.low %v935, %v943
      %v945 = vcombine.high %v935, %v943
      %v947 = vunpack.c.l.s4 1934713408
      %v948 = vunpack.c.0.s8 %v947
      %v949 = vlaneseq
      %v950 = vshrl.u32 %v949, 7
      %v951 = vsub.s32 %v948, %v950
      %v952 = vrot.slane %v944, %v951
      %v954 = vunpack.c.l.s4 1934713408
      %v955 = vunpack.c.0.s8 %v954
      %v956 = vlaneseq
      %v957 = vshrl.u32 %v956, 7
      %v958 = vsub.s32 %v955, %v957
      %v959 = vrot.slane %v945, %v958
      %v960 = vcombine.high %v952, 0
      %v961 = vcombine.high %v959, 0
      %v964 = vpack.i.b16 %v952, %v918
      %v966 = vshrl.u32 %v918, 16
      %v967 = vshrl.u32 %v952, 16
      %v968 = vpack.i.b16 %v967, %v966
      %v972 = vpack.i.b16 %v960, %v926
      %v974 = vshrl.u32 %v926, 16
      %v975 = vshrl.u32 %v960, 16
      %v976 = vpack.i.b16 %v975, %v974
      %v980 = vpack.i.b16 %v959, %v925
      %v982 = vshrl.u32 %v925, 16
      %v983 = vshrl.u32 %v959, 16
      %v984 = vpack.i.b16 %v983, %v982
      %v988 = vpack.i.b16 %v961, %v927
      %v990 = vshrl.u32 %v927, 16
      %v991 = vshrl.u32 %v961, 16
      %v992 = vpack.i.b16 %v991, %v990
      %v994 = vcombine.low %v964, %v980
      %v996 = vunpack.c.l.s4 1983009808
      %v997 = vunpack.c.0.s8 %v996
      %v998 = vlaneseq
      %v999 = vshrl.u32 %v998, 7
      %v1000 = vsub.s32 %v997, %v999
      %v1001 = vrot.slane %v994, %v1000
      %v1002 = vcombine.low %v972, %v988
      %v1004 = vunpack.c.l.s4 1983009808
      %v1005 = vunpack.c.0.s8 %v1004
      %v1006 = vlaneseq
      %v1007 = vshrl.u32 %v1006, 7
      %v1008 = vsub.s32 %v1005, %v1007
      %v1009 = vrot.slane %v1002, %v1008
      %v1010 = vcombine.low %v1001, %v1009
      %v1012 = vunpack.c.l.s4 1934713408
      %v1013 = vunpack.c.0.s8 %v1012
      %v1014 = vlaneseq
      %v1015 = vshrl.u32 %v1014, 7
      %v1016 = vsub.s32 %v1013, %v1015
      %v1017 = vrot.slane %v1010, %v1016
      %v1018 = vcombine.high %v1017, 0
      %v1019 = vcombine.low %v968, %v984
      %v1021 = vunpack.c.l.s4 1983009808
      %v1022 = vunpack.c.0.s8 %v1021
      %v1023 = vlaneseq
      %v1024 = vshrl.u32 %v1023, 7
      %v1025 = vsub.s32 %v1022, %v1024
      %v1026 = vrot.slane %v1019, %v1025
      %v1027 = vcombine.low %v976, %v992
      %v1029 = vunpack.c.l.s4 1983009808
      %v1030 = vunpack.c.0.s8 %v1029
      %v1031 = vlaneseq
      %v1032 = vshrl.u32 %v1031, 7
      %v1033 = vsub.s32 %v1030, %v1032
      %v1034 = vrot.slane %v1027, %v1033
      %v1035 = vcombine.low %v1026, %v1034
      %v1037 = vunpack.c.l.s4 1934713408
      %v1038 = vunpack.c.0.s8 %v1037
      %v1039 = vlaneseq
      %v1040 = vshrl.u32 %v1039, 7
      %v1041 = vsub.s32 %v1038, %v1040
      %v1042 = vrot.slane %v1035, %v1041
      %v1043 = vcombine.high %v1042, 0
      %v1046 = vpack.i.b16 %v1042, %v1017
      %v1047 = vshrl.u32 %v1017, 16
      %v1048 = vshrl.u32 %v1042, 16
      %v1049 = vpack.i.b16 %v1048, %v1047
      %v1052 = vpack.i.b16 %v1043, %v1018
      %v1053 = vshrl.u32 %v1018, 16
      %v1054 = vshrl.u32 %v1043, 16
      %v1055 = vpack.i.b16 %v1054, %v1053
      %v1056 = vld [vmem:[%s472] sm:$0x1]
      %v1058 = vlaneseq
      %v1059 = vshrl.u32 %v1058, 7
      %v1060 = vsub.s32 0, %v1059
      %v1061 = vrot.slane %v1056, %v1060
      %vm1063 = vcmask 64512
      %v1065 = vsel %vm1063, %v706, 0
      %v1068 = vsel %vm1063, %v876, 0
      %1070 = vmatprep.subr.bf16.mxu0 0
      %1071 = vmatpush1.bf16.xpose.msra.mxu0 0
      %1072 = vmatprep.subr.bf16.mxu0 0
      %1073 = vmatpush1.bf16.xpose.msra.mxu0 0
      %1074 = vmatprep.subr.bf16.mxu0 0
      %1075 = vmatpush1.bf16.xpose.msra.mxu0 0
      %1076 = vmatprep.subr.bf16.mxu0 0
      %1077 = vmatpush1.bf16.xpose.msra.mxu0 0
      %1078 = vmatprep.subr.bf16.mxu0 0
      %1079 = vmatpush1.bf16.xpose.msra.mxu0 0
      %1080 = vmatprep.subr.bf16.mxu0 0
      %1081 = vmatpush1.bf16.xpose.msra.mxu0 0
      %1082 = vmatprep.subr.bf16.mxu0 0
      %1083 = vmatpush1.bf16.xpose.msra.mxu0 0
      %1084 = vmatprep.subr.bf16.mxu0 0
      %1085 = vmatpush1.bf16.xpose.msra.mxu0 %v1068
      %1086 = vmatprep.subr.bf16.mxu0 0
      %1087 = vmatpush2.bf16.xpose.msra.mxu0 0
      %1088 = vmatprep.subr.bf16.mxu0 0
      %1089 = vmatpush2.bf16.xpose.msra.mxu0 0
      %1090 = vmatprep.subr.bf16.mxu0 0
      %1091 = vmatpush2.bf16.xpose.msra.mxu0 0
      %1092 = vmatprep.subr.bf16.mxu0 0
      %1093 = vmatpush2.bf16.xpose.msra.mxu0 0
      %1094 = vmatprep.subr.bf16.mxu0 0
      %1095 = vmatpush2.bf16.xpose.msra.mxu0 0
      %1096 = vmatprep.subr.bf16.mxu0 0
      %1097 = vmatpush2.bf16.xpose.msra.mxu0 0
      %1098 = vmatprep.subr.bf16.mxu0 0
      %1099 = vmatpush2.bf16.xpose.msra.mxu0 0
      %1100 = vmatprep.subr.bf16.mxu0 0
      %1101 = vmatpush2.bf16.xpose.msra.mxu0 0
      %1102 = vmatprep.mubr.bf16.mxu0 0
      %1103 = vmatmul.mubr.bf16.gmra.mxu0 %v1065
      %v1104 = vpop.f32.mrf.mxu0
      %v1105 = vadd.f32 %v1061, %v1104
      %v1106 = vpop.f32.mrf.mxu0
      %v1107 = vpop.f32.mrf.mxu0
      %v1108 = vpop.f32.mrf.mxu0
      %1109 = vdwg.mxu0
      %v1111 = vsel %vm1063, %v709, 0
      %v1114 = vsel %vm1063, %v879, 0
      %1116 = vmatprep.subr.bf16.mxu0 0
      %1117 = vmatpush1.bf16.xpose.msra.mxu0 0
      %1118 = vmatprep.subr.bf16.mxu0 0
      %1119 = vmatpush1.bf16.xpose.msra.mxu0 0
      %1120 = vmatprep.subr.bf16.mxu0 0
      %1121 = vmatpush1.bf16.xpose.msra.mxu0 0
      %1122 = vmatprep.subr.bf16.mxu0 0
      %1123 = vmatpush1.bf16.xpose.msra.mxu0 0
      %1124 = vmatprep.subr.bf16.mxu0 0
      %1125 = vmatpush1.bf16.xpose.msra.mxu0 0
      %1126 = vmatprep.subr.bf16.mxu0 0
      %1127 = vmatpush1.bf16.xpose.msra.mxu0 0
      %1128 = vmatprep.subr.bf16.mxu0 0
      %1129 = vmatpush1.bf16.xpose.msra.mxu0 0
      %1130 = vmatprep.subr.bf16.mxu0 0
      %1131 = vmatpush1.bf16.xpose.msra.mxu0 %v1114
      %1132 = vmatprep.subr.bf16.mxu0 0
      %1133 = vmatpush2.bf16.xpose.msra.mxu0 0
      %1134 = vmatprep.subr.bf16.mxu0 0
      %1135 = vmatpush2.bf16.xpose.msra.mxu0 0
      %1136 = vmatprep.subr.bf16.mxu0 0
      %1137 = vmatpush2.bf16.xpose.msra.mxu0 0
      %1138 = vmatprep.subr.bf16.mxu0 0
      %1139 = vmatpush2.bf16.xpose.msra.mxu0 0
      %1140 = vmatprep.subr.bf16.mxu0 0
      %1141 = vmatpush2.bf16.xpose.msra.mxu0 0
      %1142 = vmatprep.subr.bf16.mxu0 0
      %1143 = vmatpush2.bf16.xpose.msra.mxu0 0
      %1144 = vmatprep.subr.bf16.mxu0 0
      %1145 = vmatpush2.bf16.xpose.msra.mxu0 0
      %1146 = vmatprep.subr.bf16.mxu0 0
      %1147 = vmatpush2.bf16.xpose.msra.mxu0 0
      %1148 = vmatprep.mubr.bf16.mxu0 0
      %1149 = vmatmul.mubr.bf16.gmra.mxu0 %v1111
      %v1150 = vpop.f32.mrf.mxu0
      %v1151 = vadd.f32 %v1061, %v1150
      %v1152 = vpop.f32.mrf.mxu0
      %v1153 = vpop.f32.mrf.mxu0
      %v1154 = vpop.f32.mrf.mxu0
      %1155 = vdwg.mxu0
      %v1157 = vsel %vm1063, %v712, 0
      %v1160 = vsel %vm1063, %v882, 0
      %1162 = vmatprep.subr.bf16.mxu0 0
      %1163 = vmatpush1.bf16.xpose.msra.mxu0 0
      %1164 = vmatprep.subr.bf16.mxu0 0
      %1165 = vmatpush1.bf16.xpose.msra.mxu0 0
      %1166 = vmatprep.subr.bf16.mxu0 0
      %1167 = vmatpush1.bf16.xpose.msra.mxu0 0
      %1168 = vmatprep.subr.bf16.mxu0 0
      %1169 = vmatpush1.bf16.xpose.msra.mxu0 0
      %1170 = vmatprep.subr.bf16.mxu0 0
      %1171 = vmatpush1.bf16.xpose.msra.mxu0 0
      %1172 = vmatprep.subr.bf16.mxu0 0
      %1173 = vmatpush1.bf16.xpose.msra.mxu0 0
      %1174 = vmatprep.subr.bf16.mxu0 0
      %1175 = vmatpush1.bf16.xpose.msra.mxu0 0
      %1176 = vmatprep.subr.bf16.mxu0 0
      %1177 = vmatpush1.bf16.xpose.msra.mxu0 %v1160
      %1178 = vmatprep.subr.bf16.mxu0 0
      %1179 = vmatpush2.bf16.xpose.msra.mxu0 0
      %1180 = vmatprep.subr.bf16.mxu0 0
      %1181 = vmatpush2.bf16.xpose.msra.mxu0 0
      %1182 = vmatprep.subr.bf16.mxu0 0
      %1183 = vmatpush2.bf16.xpose.msra.mxu0 0
      %1184 = vmatprep.subr.bf16.mxu0 0
      %1185 = vmatpush2.bf16.xpose.msra.mxu0 0
      %1186 = vmatprep.subr.bf16.mxu0 0
      %1187 = vmatpush2.bf16.xpose.msra.mxu0 0
      %1188 = vmatprep.subr.bf16.mxu0 0
      %1189 = vmatpush2.bf16.xpose.msra.mxu0 0
      %1190 = vmatprep.subr.bf16.mxu0 0
      %1191 = vmatpush2.bf16.xpose.msra.mxu0 0
      %1192 = vmatprep.subr.bf16.mxu0 0
      %1193 = vmatpush2.bf16.xpose.msra.mxu0 0
      %1194 = vmatprep.mubr.bf16.mxu0 0
      %1195 = vmatmul.mubr.bf16.gmra.mxu0 %v1157
      %v1196 = vpop.f32.mrf.mxu0
      %v1197 = vadd.f32 %v1061, %v1196
      %v1198 = vpop.f32.mrf.mxu0
      %v1199 = vpop.f32.mrf.mxu0
      %v1200 = vpop.f32.mrf.mxu0
      %1201 = vdwg.mxu0
      %v1203 = vsel %vm1063, %v715, 0
      %v1206 = vsel %vm1063, %v885, 0
      %1208 = vmatprep.subr.bf16.mxu0 0
      %1209 = vmatpush1.bf16.xpose.msra.mxu0 0
      %1210 = vmatprep.subr.bf16.mxu0 0
      %1211 = vmatpush1.bf16.xpose.msra.mxu0 0
      %1212 = vmatprep.subr.bf16.mxu0 0
      %1213 = vmatpush1.bf16.xpose.msra.mxu0 0
      %1214 = vmatprep.subr.bf16.mxu0 0
      %1215 = vmatpush1.bf16.xpose.msra.mxu0 0
      %1216 = vmatprep.subr.bf16.mxu0 0
      %1217 = vmatpush1.bf16.xpose.msra.mxu0 0
      %1218 = vmatprep.subr.bf16.mxu0 0
      %1219 = vmatpush1.bf16.xpose.msra.mxu0 0
      %1220 = vmatprep.subr.bf16.mxu0 0
      %1221 = vmatpush1.bf16.xpose.msra.mxu0 0
      %1222 = vmatprep.subr.bf16.mxu0 0
      %1223 = vmatpush1.bf16.xpose.msra.mxu0 %v1206
      %1224 = vmatprep.subr.bf16.mxu0 0
      %1225 = vmatpush2.bf16.xpose.msra.mxu0 0
      %1226 = vmatprep.subr.bf16.mxu0 0
      %1227 = vmatpush2.bf16.xpose.msra.mxu0 0
      %1228 = vmatprep.subr.bf16.mxu0 0
      %1229 = vmatpush2.bf16.xpose.msra.mxu0 0
      %1230 = vmatprep.subr.bf16.mxu0 0
      %1231 = vmatpush2.bf16.xpose.msra.mxu0 0
      %1232 = vmatprep.subr.bf16.mxu0 0
      %1233 = vmatpush2.bf16.xpose.msra.mxu0 0
      %1234 = vmatprep.subr.bf16.mxu0 0
      %1235 = vmatpush2.bf16.xpose.msra.mxu0 0
      %1236 = vmatprep.subr.bf16.mxu0 0
      %1237 = vmatpush2.bf16.xpose.msra.mxu0 0
      %1238 = vmatprep.subr.bf16.mxu0 0
      %1239 = vmatpush2.bf16.xpose.msra.mxu0 0
      %1240 = vmatprep.mubr.bf16.mxu0 0
      %1241 = vmatmul.mubr.bf16.gmra.mxu0 %v1203
      %v1242 = vpop.f32.mrf.mxu0
      %v1243 = vadd.f32 %v1061, %v1242
      %v1244 = vpop.f32.mrf.mxu0
      %v1245 = vpop.f32.mrf.mxu0
      %v1246 = vpop.f32.mrf.mxu0
      %1247 = vdwg.mxu0
      %v1248 = vsel %vm1063, %v1105, -inf
      %1249 = vmax.xlane.f32.xlu0 %v1248
      %v1250 = vpop.xlane.xlu0 %1249
      %v1251 = vsel %vm1063, %v1151, -inf
      %1252 = vmax.xlane.f32.xlu0 %v1251
      %v1253 = vpop.xlane.xlu0 %1252
      %v1254 = vsel %vm1063, %v1197, -inf
      %1255 = vmax.xlane.f32.xlu0 %v1254
      %v1256 = vpop.xlane.xlu0 %1255
      %v1257 = vsel %vm1063, %v1243, -inf
      %1258 = vmax.xlane.f32.xlu0 %v1257
      %v1259 = vpop.xlane.xlu0 %1258
      %v1260 = vsub.f32 %v1105, %v1250
      %v1261 = vsub.f32 %v1151, %v1253
      %v1262 = vsub.f32 %v1197, %v1256
      %v1263 = vsub.f32 %v1243, %v1259
      %v1264 = vmul.f32 %v1260, 1.442695
      %v1265 = vpow.pop %v1264
      %v1266 = vmul.f32 %v1261, 1.442695
      %v1267 = vpow.pop %v1266
      %v1268 = vmul.f32 %v1262, 1.442695
      %v1269 = vpow.pop %v1268
      %v1270 = vmul.f32 %v1263, 1.442695
      %v1271 = vpow.pop %v1270
      %v1272 = vsel %vm1063, %v1265, 0.0
      %1273 = vadd.xlane.f32.xlu0 %v1272
      %v1274 = vpop.xlane.xlu0 %1273
      %v1275 = vsel %vm1063, %v1267, 0.0
      %1276 = vadd.xlane.f32.xlu0 %v1275
      %v1277 = vpop.xlane.xlu0 %1276
      %v1278 = vsel %vm1063, %v1269, 0.0
      %1279 = vadd.xlane.f32.xlu0 %v1278
      %v1280 = vpop.xlane.xlu0 %1279
      %v1281 = vsel %vm1063, %v1271, 0.0
      %1282 = vadd.xlane.f32.xlu0 %v1281
      %v1283 = vpop.xlane.xlu0 %1282
      %v1284 = vrcp.pop %v1274
      %v1285 = vrcp.pop %v1277
      %v1286 = vrcp.pop %v1280
      %v1287 = vrcp.pop %v1283
      %v1288 = vmul.f32 %v1265, %v1284
      %v1289 = vmul.f32 %v1267, %v1285
      %v1290 = vmul.f32 %v1269, %v1286
      %v1291 = vmul.f32 %v1271, %v1287
      %v1292 = vpack.c.bf16 %v1288, %v1288
      %v1293 = vpack.c.bf16 %v1289, %v1289
      %v1294 = vpack.c.bf16 %v1290, %v1290
      %v1295 = vpack.c.bf16 %v1291, %v1291
      %v1297 = vsel %vm1063, %v1292, 0
      %vm1299 = vcmask 1043456
      %v1301 = vsel %vm1299, %v1046, 0
      %1303 = vmatprep.subr.bf16.mxu0 0
      %1304 = vmatpush1.bf16.msra.mxu0 0
      %1305 = vmatprep.subr.bf16.mxu0 0
      %1306 = vmatpush1.bf16.msra.mxu0 0
      %1307 = vmatprep.subr.bf16.mxu0 0
      %1308 = vmatpush1.bf16.msra.mxu0 0
      %1309 = vmatprep.subr.bf16.mxu0 0
      %1310 = vmatpush1.bf16.msra.mxu0 0
      %1311 = vmatprep.subr.bf16.mxu0 0
      %1312 = vmatpush1.bf16.msra.mxu0 0
      %1313 = vmatprep.subr.bf16.mxu0 0
      %1314 = vmatpush1.bf16.msra.mxu0 0
      %1315 = vmatprep.subr.bf16.mxu0 0
      %1316 = vmatpush1.bf16.msra.mxu0 0
      %1317 = vmatprep.subr.bf16.mxu0 0
      %1318 = vmatpush1.bf16.msra.mxu0 %v1301
      %1319 = vmatprep.subr.bf16.mxu0 0
      %1320 = vmatpush2.bf16.msra.mxu0 0
      %1321 = vmatprep.subr.bf16.mxu0 0
      %1322 = vmatpush2.bf16.msra.mxu0 0
      %1323 = vmatprep.subr.bf16.mxu0 0
      %1324 = vmatpush2.bf16.msra.mxu0 0
      %1325 = vmatprep.subr.bf16.mxu0 0
      %1326 = vmatpush2.bf16.msra.mxu0 0
      %1327 = vmatprep.subr.bf16.mxu0 0
      %1328 = vmatpush2.bf16.msra.mxu0 0
      %1329 = vmatprep.subr.bf16.mxu0 0
      %1330 = vmatpush2.bf16.msra.mxu0 0
      %1331 = vmatprep.subr.bf16.mxu0 0
      %1332 = vmatpush2.bf16.msra.mxu0 0
      %1333 = vmatprep.subr.bf16.mxu0 0
      %1334 = vmatpush2.bf16.msra.mxu0 0
      %1335 = vmatprep.mubr.bf16.mxu0 0
      %1336 = vmatmul.mubr.bf16.gmra.mxu0 %v1297
      %v1337 = vpop.f32.mrf.mxu0
      %v1338 = vadd.f32 0.0, %v1337
      %v1339 = vpop.f32.mrf.mxu0
      %v1340 = vpop.f32.mrf.mxu0
      %v1341 = vpop.f32.mrf.mxu0
      %1342 = vdwg.mxu0
      %v1344 = vsel %vm1063, %v1293, 0
      %v1347 = vsel %vm1299, %v1049, 0
      %1349 = vmatprep.subr.bf16.mxu0 0
      %1350 = vmatpush1.bf16.msra.mxu0 0
      %1351 = vmatprep.subr.bf16.mxu0 0
      %1352 = vmatpush1.bf16.msra.mxu0 0
      %1353 = vmatprep.subr.bf16.mxu0 0
      %1354 = vmatpush1.bf16.msra.mxu0 0
      %1355 = vmatprep.subr.bf16.mxu0 0
      %1356 = vmatpush1.bf16.msra.mxu0 0
      %1357 = vmatprep.subr.bf16.mxu0 0
      %1358 = vmatpush1.bf16.msra.mxu0 0
      %1359 = vmatprep.subr.bf16.mxu0 0
      %1360 = vmatpush1.bf16.msra.mxu0 0
      %1361 = vmatprep.subr.bf16.mxu0 0
      %1362 = vmatpush1.bf16.msra.mxu0 0
      %1363 = vmatprep.subr.bf16.mxu0 0
      %1364 = vmatpush1.bf16.msra.mxu0 %v1347
      %1365 = vmatprep.subr.bf16.mxu0 0
      %1366 = vmatpush2.bf16.msra.mxu0 0
      %1367 = vmatprep.subr.bf16.mxu0 0
      %1368 = vmatpush2.bf16.msra.mxu0 0
      %1369 = vmatprep.subr.bf16.mxu0 0
      %1370 = vmatpush2.bf16.msra.mxu0 0
      %1371 = vmatprep.subr.bf16.mxu0 0
      %1372 = vmatpush2.bf16.msra.mxu0 0
      %1373 = vmatprep.subr.bf16.mxu0 0
      %1374 = vmatpush2.bf16.msra.mxu0 0
      %1375 = vmatprep.subr.bf16.mxu0 0
      %1376 = vmatpush2.bf16.msra.mxu0 0
      %1377 = vmatprep.subr.bf16.mxu0 0
      %1378 = vmatpush2.bf16.msra.mxu0 0
      %1379 = vmatprep.subr.bf16.mxu0 0
      %1380 = vmatpush2.bf16.msra.mxu0 0
      %1381 = vmatprep.mubr.bf16.mxu0 0
      %1382 = vmatmul.mubr.bf16.gmra.mxu0 %v1344
      %v1383 = vpop.f32.mrf.mxu0
      %v1384 = vadd.f32 0.0, %v1383
      %v1385 = vpop.f32.mrf.mxu0
      %v1386 = vpop.f32.mrf.mxu0
      %v1387 = vpop.f32.mrf.mxu0
      %1388 = vdwg.mxu0
      %v1390 = vsel %vm1063, %v1294, 0
      %v1393 = vsel %vm1299, %v1052, 0
      %1395 = vmatprep.subr.bf16.mxu0 0
      %1396 = vmatpush1.bf16.msra.mxu0 0
      %1397 = vmatprep.subr.bf16.mxu0 0
      %1398 = vmatpush1.bf16.msra.mxu0 0
      %1399 = vmatprep.subr.bf16.mxu0 0
      %1400 = vmatpush1.bf16.msra.mxu0 0
      %1401 = vmatprep.subr.bf16.mxu0 0
      %1402 = vmatpush1.bf16.msra.mxu0 0
      %1403 = vmatprep.subr.bf16.mxu0 0
      %1404 = vmatpush1.bf16.msra.mxu0 0
      %1405 = vmatprep.subr.bf16.mxu0 0
      %1406 = vmatpush1.bf16.msra.mxu0 0
      %1407 = vmatprep.subr.bf16.mxu0 0
      %1408 = vmatpush1.bf16.msra.mxu0 0
      %1409 = vmatprep.subr.bf16.mxu0 0
      %1410 = vmatpush1.bf16.msra.mxu0 %v1393
      %1411 = vmatprep.subr.bf16.mxu0 0
      %1412 = vmatpush2.bf16.msra.mxu0 0
      %1413 = vmatprep.subr.bf16.mxu0 0
      %1414 = vmatpush2.bf16.msra.mxu0 0
      %1415 = vmatprep.subr.bf16.mxu0 0
      %1416 = vmatpush2.bf16.msra.mxu0 0
      %1417 = vmatprep.subr.bf16.mxu0 0
      %1418 = vmatpush2.bf16.msra.mxu0 0
      %1419 = vmatprep.subr.bf16.mxu0 0
      %1420 = vmatpush2.bf16.msra.mxu0 0
      %1421 = vmatprep.subr.bf16.mxu0 0
      %1422 = vmatpush2.bf16.msra.mxu0 0
      %1423 = vmatprep.subr.bf16.mxu0 0
      %1424 = vmatpush2.bf16.msra.mxu0 0
      %1425 = vmatprep.subr.bf16.mxu0 0
      %1426 = vmatpush2.bf16.msra.mxu0 0
      %1427 = vmatprep.mubr.bf16.mxu0 0
      %1428 = vmatmul.mubr.bf16.gmra.mxu0 %v1390
      %v1429 = vpop.f32.mrf.mxu0
      %v1430 = vadd.f32 0.0, %v1429
      %v1431 = vpop.f32.mrf.mxu0
      %v1432 = vpop.f32.mrf.mxu0
      %v1433 = vpop.f32.mrf.mxu0
      %1434 = vdwg.mxu0
      %v1436 = vsel %vm1063, %v1295, 0
      %v1439 = vsel %vm1299, %v1055, 0
      %1441 = vmatprep.subr.bf16.mxu0 0
      %1442 = vmatpush1.bf16.msra.mxu0 0
      %1443 = vmatprep.subr.bf16.mxu0 0
      %1444 = vmatpush1.bf16.msra.mxu0 0
      %1445 = vmatprep.subr.bf16.mxu0 0
      %1446 = vmatpush1.bf16.msra.mxu0 0
      %1447 = vmatprep.subr.bf16.mxu0 0
      %1448 = vmatpush1.bf16.msra.mxu0 0
      %1449 = vmatprep.subr.bf16.mxu0 0
      %1450 = vmatpush1.bf16.msra.mxu0 0
      %1451 = vmatprep.subr.bf16.mxu0 0
      %1452 = vmatpush1.bf16.msra.mxu0 0
      %1453 = vmatprep.subr.bf16.mxu0 0
      %1454 = vmatpush1.bf16.msra.mxu0 0
      %1455 = vmatprep.subr.bf16.mxu0 0
      %1456 = vmatpush1.bf16.msra.mxu0 %v1439
      %1457 = vmatprep.subr.bf16.mxu0 0
      %1458 = vmatpush2.bf16.msra.mxu0 0
      %1459 = vmatprep.subr.bf16.mxu0 0
      %1460 = vmatpush2.bf16.msra.mxu0 0
      %1461 = vmatprep.subr.bf16.mxu0 0
      %1462 = vmatpush2.bf16.msra.mxu0 0
      %1463 = vmatprep.subr.bf16.mxu0 0
      %1464 = vmatpush2.bf16.msra.mxu0 0
      %1465 = vmatprep.subr.bf16.mxu0 0
      %1466 = vmatpush2.bf16.msra.mxu0 0
      %1467 = vmatprep.subr.bf16.mxu0 0
      %1468 = vmatpush2.bf16.msra.mxu0 0
      %1469 = vmatprep.subr.bf16.mxu0 0
      %1470 = vmatpush2.bf16.msra.mxu0 0
      %1471 = vmatprep.subr.bf16.mxu0 0
      %1472 = vmatpush2.bf16.msra.mxu0 0
      %1473 = vmatprep.mubr.bf16.mxu0 0
      %1474 = vmatmul.mubr.bf16.gmra.mxu0 %v1436
      %v1475 = vpop.f32.mrf.mxu0
      %v1476 = vadd.f32 0.0, %v1475
      %v1477 = vpop.f32.mrf.mxu0
      %v1478 = vpop.f32.mrf.mxu0
      %v1479 = vpop.f32.mrf.mxu0
      %1480 = vdwg.mxu0
      %v1481 = vcombine.low %v1338, %v1430
      %v1482 = vcombine.high %v1338, %v1430
      %v1484 = vunpack.c.l.s4 1983009808
      %v1485 = vunpack.c.0.s8 %v1484
      %v1486 = vlaneseq
      %v1487 = vshrl.u32 %v1486, 7
      %v1488 = vsub.s32 %v1485, %v1487
      %v1489 = vrot.slane %v1481, %v1488
      %v1491 = vunpack.c.l.s4 1983009808
      %v1492 = vunpack.c.0.s8 %v1491
      %v1493 = vlaneseq
      %v1494 = vshrl.u32 %v1493, 7
      %v1495 = vsub.s32 %v1492, %v1494
      %v1496 = vrot.slane %v1482, %v1495
      %v1497 = vcombine.low %v1384, %v1476
      %v1498 = vcombine.high %v1384, %v1476
      %v1500 = vunpack.c.l.s4 1983009808
      %v1501 = vunpack.c.0.s8 %v1500
      %v1502 = vlaneseq
      %v1503 = vshrl.u32 %v1502, 7
      %v1504 = vsub.s32 %v1501, %v1503
      %v1505 = vrot.slane %v1497, %v1504
      %v1507 = vunpack.c.l.s4 1983009808
      %v1508 = vunpack.c.0.s8 %v1507
      %v1509 = vlaneseq
      %v1510 = vshrl.u32 %v1509, 7
      %v1511 = vsub.s32 %v1508, %v1510
      %v1512 = vrot.slane %v1498, %v1511
      %v1513 = vcombine.low %v1489, %v1505
      %v1514 = vcombine.high %v1489, %v1505
      %v1516 = vunpack.c.l.s4 1934713408
      %v1517 = vunpack.c.0.s8 %v1516
      %v1518 = vlaneseq
      %v1519 = vshrl.u32 %v1518, 7
      %v1520 = vsub.s32 %v1517, %v1519
      %v1521 = vrot.slane %v1513, %v1520
      %v1523 = vunpack.c.l.s4 1934713408
      %v1524 = vunpack.c.0.s8 %v1523
      %v1525 = vlaneseq
      %v1526 = vshrl.u32 %v1525, 7
      %v1527 = vsub.s32 %v1524, %v1526
      %v1528 = vrot.slane %v1514, %v1527
      %v1529 = vcombine.low %v1496, %v1512
      %v1530 = vcombine.high %v1496, %v1512
      %v1532 = vunpack.c.l.s4 1934713408
      %v1533 = vunpack.c.0.s8 %v1532
      %v1534 = vlaneseq
      %v1535 = vshrl.u32 %v1534, 7
      %v1536 = vsub.s32 %v1533, %v1535
      %v1537 = vrot.slane %v1529, %v1536
      %v1539 = vunpack.c.l.s4 1934713408
      %v1540 = vunpack.c.0.s8 %v1539
      %v1541 = vlaneseq
      %v1542 = vshrl.u32 %v1541, 7
      %v1543 = vsub.s32 %v1540, %v1542
      %v1544 = vrot.slane %v1530, %v1543
      %v1545 = vcombine.high %v1521, 0.0
      %v1546 = vcombine.high %v1528, 0.0
      %v1547 = vcombine.high %v1537, 0.0
      %v1548 = vcombine.high %v1544, 0.0
      %v1549 = vcombine.low %v1521, %v1528
      %v1551 = vunpack.c.l.s4 1983009808
      %v1552 = vunpack.c.0.s8 %v1551
      %v1553 = vlaneseq
      %v1554 = vshrl.u32 %v1553, 7
      %v1555 = vsub.s32 %v1552, %v1554
      %v1556 = vrot.slane %v1549, %v1555
      %v1557 = vcombine.low %v1545, %v1546
      %v1559 = vunpack.c.l.s4 1983009808
      %v1560 = vunpack.c.0.s8 %v1559
      %v1561 = vlaneseq
      %v1562 = vshrl.u32 %v1561, 7
      %v1563 = vsub.s32 %v1560, %v1562
      %v1564 = vrot.slane %v1557, %v1563
      %v1565 = vcombine.low %v1537, %v1544
      %v1567 = vunpack.c.l.s4 1983009808
      %v1568 = vunpack.c.0.s8 %v1567
      %v1569 = vlaneseq
      %v1570 = vshrl.u32 %v1569, 7
      %v1571 = vsub.s32 %v1568, %v1570
      %v1572 = vrot.slane %v1565, %v1571
      %v1573 = vcombine.low %v1547, %v1548
      %v1575 = vunpack.c.l.s4 1983009808
      %v1576 = vunpack.c.0.s8 %v1575
      %v1577 = vlaneseq
      %v1578 = vshrl.u32 %v1577, 7
      %v1579 = vsub.s32 %v1576, %v1578
      %v1580 = vrot.slane %v1573, %v1579
      %v1581 = vcombine.low %v1556, %v1564
      %v1582 = vcombine.high %v1556, %v1564
      %v1584 = vunpack.c.l.s4 1934713408
      %v1585 = vunpack.c.0.s8 %v1584
      %v1586 = vlaneseq
      %v1587 = vshrl.u32 %v1586, 7
      %v1588 = vsub.s32 %v1585, %v1587
      %v1589 = vrot.slane %v1581, %v1588
      %v1591 = vunpack.c.l.s4 1934713408
      %v1592 = vunpack.c.0.s8 %v1591
      %v1593 = vlaneseq
      %v1594 = vshrl.u32 %v1593, 7
      %v1595 = vsub.s32 %v1592, %v1594
      %v1596 = vrot.slane %v1582, %v1595
      %v1597 = vcombine.low %v1572, %v1580
      %v1598 = vcombine.high %v1572, %v1580
      %v1600 = vunpack.c.l.s4 1934713408
      %v1601 = vunpack.c.0.s8 %v1600
      %v1602 = vlaneseq
      %v1603 = vshrl.u32 %v1602, 7
      %v1604 = vsub.s32 %v1601, %v1603
      %v1605 = vrot.slane %v1597, %v1604
      %v1607 = vunpack.c.l.s4 1934713408
      %v1608 = vunpack.c.0.s8 %v1607
      %v1609 = vlaneseq
      %v1610 = vshrl.u32 %v1609, 7
      %v1611 = vsub.s32 %v1608, %v1610
      %v1612 = vrot.slane %v1598, %v1611
      %v1613 = vcombine.low %v1589, %v1605
      %v1614 = vcombine.high %v1589, %v1605
      %v1615 = vcombine.low %v1596, %v1612
      %v1616 = vcombine.high %v1596, %v1612
      %1618 = vrot.lane.b32.xlu0 %v1614, 8
      %v1619 = vpop.permute.xlu0 %1618
      %1622 = vrot.lane.b32.xlu0 %v1615, 16
      %v1623 = vpop.permute.xlu0 %1622
      %1626 = vrot.lane.b32.xlu0 %v1616, 24
      %v1627 = vpop.permute.xlu0 %1626
      %v1629 = vsel %vm1063, %v1613, %v1619
      %vm1630 = vcmask 130048
      %v1631 = vsel %vm1630, %v1629, %v1623
      %vm1632 = vcmask 195584
      %v1633 = vsel %vm1632, %v1631, %v1627
      %v1634 = vpack.c.bf16 %v1633, %v1633
      %v1635 = vld [vmem:[%s4] sm:$0xf]
      %v1636 = vld [vmem:[%s4 + $0x4] sm:$0xf]
      %v1637 = vld [vmem:[%s4 + $0x8] sm:$0xf]
      %v1638 = vld [vmem:[%s4 + $0xc] sm:$0xf]
      %v1639 = vld [vmem:[%s5] sm:$0x1]
      %v1641 = vlaneseq
      %v1642 = vshrl.u32 %v1641, 7
      %v1643 = vsub.s32 0, %v1642
      %v1644 = vrot.slane %v1639, %v1643
      %v1650 = vunpack.c.l.b16 %v1635
      %v1651 = vunpack.c.l.b16 %v1636
      %v1652 = vunpack.c.l.b16 %v1637
      %v1653 = vunpack.c.l.b16 %v1638
      %v1654 = vpack.c.b16 %v1651, %v1650
      %v1655 = vpack.c.b16 %v1653, %v1652
      %v1659 = vsel %vm502, %v1634, 0
      %1661 = vmatprep.subr.bf16.mxu0 0
      %1662 = vmatpush1.bf16.msra.mxu0 0
      %1663 = vmatprep.subr.bf16.mxu0 0
      %1664 = vmatpush1.bf16.msra.mxu0 0
      %1665 = vmatprep.subr.bf16.mxu0 0
      %1666 = vmatpush1.bf16.msra.mxu0 0
      %1667 = vmatprep.subr.bf16.mxu0 0
      %1668 = vmatpush1.bf16.msra.mxu0 0
      %1669 = vmatprep.subr.bf16.mxu0 0
      %1670 = vmatpush1.bf16.msra.mxu0 0
      %1671 = vmatprep.subr.bf16.mxu0 0
      %1672 = vmatpush1.bf16.msra.mxu0 0
      %1673 = vmatprep.subr.bf16.mxu0 0
      %1674 = vmatpush1.bf16.msra.mxu0 %v1655
      %1675 = vmatprep.subr.bf16.mxu0 0
      %1676 = vmatpush1.bf16.msra.mxu0 %v1654
      %1677 = vmatprep.subr.bf16.mxu0 0
      %1678 = vmatpush2.bf16.msra.mxu0 0
      %1679 = vmatprep.subr.bf16.mxu0 0
      %1680 = vmatpush2.bf16.msra.mxu0 0
      %1681 = vmatprep.subr.bf16.mxu0 0
      %1682 = vmatpush2.bf16.msra.mxu0 0
      %1683 = vmatprep.subr.bf16.mxu0 0
      %1684 = vmatpush2.bf16.msra.mxu0 0
      %1685 = vmatprep.subr.bf16.mxu0 0
      %1686 = vmatpush2.bf16.msra.mxu0 0
      %1687 = vmatprep.subr.bf16.mxu0 0
      %1688 = vmatpush2.bf16.msra.mxu0 0
      %1689 = vmatprep.subr.bf16.mxu0 0
      %1690 = vmatpush2.bf16.msra.mxu0 0
      %1691 = vmatprep.subr.bf16.mxu0 0
      %1692 = vmatpush2.bf16.msra.mxu0 0
      %1693 = vmatprep.mubr.bf16.mxu0 0
      %1694 = vmatmul.mubr.bf16.gmra.mxu0 %v1659
      %v1695 = vpop.f32.mrf.mxu0
      %v1696 = vadd.f32 %v1644, %v1695
      %v1697 = vpop.f32.mrf.mxu0
      %v1698 = vpop.f32.mrf.mxu0
      %v1699 = vpop.f32.mrf.mxu0
      %1700 = vdwg.mxu0
      %v1701 = vadd.f32 %v1696, %v547
      %v1702 = vld [vmem:[%s6] sm:$0x1]
      %v1703 = vld [vmem:[%s7] sm:$0x1]
      %v1704 = vsel %vm502, %v1701, 0.0
      %1705 = vadd.xlane.f32.xlu0 %v1704
      %v1706 = vpop.xlane.xlu0 %1705
      %v1707 = vrcp.pop 32.0
      %v1708 = vmul.f32 %v1706, %v1707
      %v1709 = vsub.f32 %v1701, %v1708
      %v1710 = vmul.f32 %v1709, %v1709
      %v1711 = vsel %vm502, %v1710, 0.0
      %1712 = vadd.xlane.f32.xlu0 %v1711
      %v1713 = vpop.xlane.xlu0 %1712
      %v1714 = vmul.f32 %v1713, %v1707
      %v1715 = vadd.f32 %v1714, 1e-12
      %v1716 = vrsqrt.pop %v1715
      %v1717 = vmul.f32 %v1709, %v1716
      %v1719 = vlaneseq
      %v1720 = vshrl.u32 %v1719, 7
      %v1721 = vsub.s32 0, %v1720
      %v1722 = vrot.slane %v1702, %v1721
      %v1724 = vmul.f32 %v1717, %v1722
      %v1726 = vlaneseq
      %v1727 = vshrl.u32 %v1726, 7
      %v1728 = vsub.s32 0, %v1727
      %v1729 = vrot.slane %v1703, %v1728
      %v1731 = vadd.f32 %v1724, %v1729
      %v1732 = vpack.c.bf16 %v1731, %v1731
      %v1733 = vld [vmem:[%s8] sm:$0xf]
      %v1734 = vld [vmem:[%s8 + $0x4] sm:$0xf]
      %v1735 = vld [vmem:[%s8 + $0x8] sm:$0xf]
      %v1736 = vld [vmem:[%s8 + $0xc] sm:$0xf]
      %v1737 = vld [vmem:[%s9] sm:$0x1]
      %v1739 = vlaneseq
      %v1740 = vshrl.u32 %v1739, 7
      %v1741 = vsub.s32 0, %v1740
      %v1742 = vrot.slane %v1737, %v1741
      %v1748 = vunpack.c.l.b16 %v1733
      %v1749 = vunpack.c.l.b16 %v1734
      %v1750 = vunpack.c.l.b16 %v1735
      %v1751 = vunpack.c.l.b16 %v1736
      %v1752 = vpack.c.b16 %v1749, %v1748
      %v1753 = vpack.c.b16 %v1751, %v1750
      %v1757 = vsel %vm502, %v1732, 0
      %1759 = vmatprep.subr.bf16.mxu0 0
      %1760 = vmatpush1.bf16.msra.mxu0 0
      %1761 = vmatprep.subr.bf16.mxu0 0
      %1762 = vmatpush1.bf16.msra.mxu0 0
      %1763 = vmatprep.subr.bf16.mxu0 0
      %1764 = vmatpush1.bf16.msra.mxu0 0
      %1765 = vmatprep.subr.bf16.mxu0 0
      %1766 = vmatpush1.bf16.msra.mxu0 0
      %1767 = vmatprep.subr.bf16.mxu0 0
      %1768 = vmatpush1.bf16.msra.mxu0 0
      %1769 = vmatprep.subr.bf16.mxu0 0
      %1770 = vmatpush1.bf16.msra.mxu0 0
      %1771 = vmatprep.subr.bf16.mxu0 0
      %1772 = vmatpush1.bf16.msra.mxu0 %v1753
      %1773 = vmatprep.subr.bf16.mxu0 0
      %1774 = vmatpush1.bf16.msra.mxu0 %v1752
      %1775 = vmatprep.subr.bf16.mxu0 0
      %1776 = vmatpush2.bf16.msra.mxu0 0
      %1777 = vmatprep.subr.bf16.mxu0 0
      %1778 = vmatpush2.bf16.msra.mxu0 0
      %1779 = vmatprep.subr.bf16.mxu0 0
      %1780 = vmatpush2.bf16.msra.mxu0 0
      %1781 = vmatprep.subr.bf16.mxu0 0
      %1782 = vmatpush2.bf16.msra.mxu0 0
      %1783 = vmatprep.subr.bf16.mxu0 0
      %1784 = vmatpush2.bf16.msra.mxu0 0
      %1785 = vmatprep.subr.bf16.mxu0 0
      %1786 = vmatpush2.bf16.msra.mxu0 0
      %1787 = vmatprep.subr.bf16.mxu0 0
      %1788 = vmatpush2.bf16.msra.mxu0 0
      %1789 = vmatprep.subr.bf16.mxu0 0
      %1790 = vmatpush2.bf16.msra.mxu0 0
      %1791 = vmatprep.mubr.bf16.mxu0 0
      %1792 = vmatmul.mubr.bf16.gmra.mxu0 %v1757
      %v1793 = vpop.f32.mrf.mxu0
      %v1794 = vadd.f32 %v1742, %v1793
      %v1795 = vpop.f32.mrf.mxu0
      %v1796 = vpop.f32.mrf.mxu0
      %v1797 = vpop.f32.mrf.mxu0
      %1798 = vdwg.mxu0
      %v1799 = vmul.f32 %v1794, 0.5
      %v1800 = vmul.f32 %v1794, 0.044715
      %v1801 = vmul.f32 %v1800, %v1794
      %v1802 = vmul.f32 %v1801, %v1794
      %v1803 = vadd.f32 %v1794, %v1802
      %v1804 = vmul.f32 %v1803, 0.7978846
      %v1805 = vtanh.pop %v1804
      %v1806 = vadd.f32 %v1805, 1.0
      %v1807 = vmul.f32 %v1799, %v1806
      %v1808 = vpack.c.bf16 %v1807, %v1807
      %v1809 = vld [vmem:[%s10] sm:$0xf]
      %v1810 = vld [vmem:[%s10 + $0x4] sm:$0xf]
      %v1811 = vld [vmem:[%s10 + $0x8] sm:$0xf]
      %v1812 = vld [vmem:[%s10 + $0xc] sm:$0xf]
      %v1813 = vld [vmem:[%s10 + $0x10] sm:$0xf]
      %v1814 = vld [vmem:[%s10 + $0x14] sm:$0xf]
      %v1815 = vld [vmem:[%s10 + $0x18] sm:$0xf]
      %v1816 = vld [vmem:[%s10 + $0x1c] sm:$0xf]
      %v1817 = vld [vmem:[%s11] sm:$0x1]
      %v1819 = vlaneseq
      %v1820 = vshrl.u32 %v1819, 7
      %v1821 = vsub.s32 0, %v1820
      %v1822 = vrot.slane %v1817, %v1821
      %v1832 = vunpack.c.l.b16 %v1809
      %v1833 = vunpack.c.l.b16 %v1810
      %v1834 = vunpack.c.l.b16 %v1811
      %v1835 = vunpack.c.l.b16 %v1812
      %v1836 = vunpack.c.l.b16 %v1813
      %v1837 = vunpack.c.l.b16 %v1814
      %v1838 = vunpack.c.l.b16 %v1815
      %v1839 = vunpack.c.l.b16 %v1816
      %v1840 = vpack.c.b16 %v1833, %v1832
      %v1841 = vpack.c.b16 %v1835, %v1834
      %v1842 = vpack.c.b16 %v1837, %v1836
      %v1843 = vpack.c.b16 %v1839, %v1838
      %vm1848 = vcmask 523264
      %v1850 = vsel %vm1848, %v1808, 0
      %1852 = vmatprep.subr.bf16.mxu0 0
      %1853 = vmatpush1.bf16.msra.mxu0 0
      %1854 = vmatprep.subr.bf16.mxu0 0
      %1855 = vmatpush1.bf16.msra.mxu0 0
      %1856 = vmatprep.subr.bf16.mxu0 0
      %1857 = vmatpush1.bf16.msra.mxu0 0
      %1858 = vmatprep.subr.bf16.mxu0 0
      %1859 = vmatpush1.bf16.msra.mxu0 0
      %1860 = vmatprep.subr.bf16.mxu0 0
      %1861 = vmatpush1.bf16.msra.mxu0 %v1843
      %1862 = vmatprep.subr.bf16.mxu0 0
      %1863 = vmatpush1.bf16.msra.mxu0 %v1842
      %1864 = vmatprep.subr.bf16.mxu0 0
      %1865 = vmatpush1.bf16.msra.mxu0 %v1841
      %1866 = vmatprep.subr.bf16.mxu0 0
      %1867 = vmatpush1.bf16.msra.mxu0 %v1840
      %1868 = vmatprep.subr.bf16.mxu0 0
      %1869 = vmatpush2.bf16.msra.mxu0 0
      %1870 = vmatprep.subr.bf16.mxu0 0
      %1871 = vmatpush2.bf16.msra.mxu0 0
      %1872 = vmatprep.subr.bf16.mxu0 0
      %1873 = vmatpush2.bf16.msra.mxu0 0
      %1874 = vmatprep.subr.bf16.mxu0 0
      %1875 = vmatpush2.bf16.msra.mxu0 0
      %1876 = vmatprep.subr.bf16.mxu0 0
      %1877 = vmatpush2.bf16.msra.mxu0 0
      %1878 = vmatprep.subr.bf16.mxu0 0
      %1879 = vmatpush2.bf16.msra.mxu0 0
      %1880 = vmatprep.subr.bf16.mxu0 0
      %1881 = vmatpush2.bf16.msra.mxu0 0
      %1882 = vmatprep.subr.bf16.mxu0 0
      %1883 = vmatpush2.bf16.msra.mxu0 0
      %1884 = vmatprep.mubr.bf16.mxu0 0
      %1885 = vmatmul.mubr.bf16.gmra.mxu0 %v1850
      %v1886 = vpop.f32.mrf.mxu0
      %v1887 = vadd.f32 %v1822, %v1886
      %v1888 = vpop.f32.mrf.mxu0
      %v1889 = vpop.f32.mrf.mxu0
      %v1890 = vpop.f32.mrf.mxu0
      %1891 = vdwg.mxu0
      %v1892 = vadd.f32 %v1887, %v1731
      %v1893 = vld [vmem:[%s12] sm:$0x1]
      %v1894 = vld [vmem:[%s13] sm:$0x1]
      %v1895 = vsel %vm502, %v1892, 0.0
      %1896 = vadd.xlane.f32.xlu0 %v1895
      %v1897 = vpop.xlane.xlu0 %1896
      %v1898 = vmul.f32 %v1897, %v1707
      %v1899 = vsub.f32 %v1892, %v1898
      %v1900 = vmul.f32 %v1899, %v1899
      %v1901 = vsel %vm502, %v1900, 0.0
      %1902 = vadd.xlane.f32.xlu0 %v1901
      %v1903 = vpop.xlane.xlu0 %1902
      %v1904 = vmul.f32 %v1903, %v1707
      %v1905 = vadd.f32 %v1904, 1e-12
      %v1906 = vrsqrt.pop %v1905
      %v1907 = vmul.f32 %v1899, %v1906
      %v1909 = vlaneseq
      %v1910 = vshrl.u32 %v1909, 7
      %v1911 = vsub.s32 0, %v1910
      %v1912 = vrot.slane %v1893, %v1911
      %v1914 = vmul.f32 %v1907, %v1912
      %v1916 = vlaneseq
      %v1917 = vshrl.u32 %v1916, 7
      %v1918 = vsub.s32 0, %v1917
      %v1919 = vrot.slane %v1894, %v1918
      %v1921 = vadd.f32 %v1914, %v1919
      %v1922 = vpack.c.bf16 %v1921, %v1921
      %vm1923 = vcmask 257024
      %1924 = vst.msk [vmem:[%s476] sm:$0xf] %vm1923, %v1922
      %p1925 = scmp.lt.s32.totalorder %s25, 1
      %s1926 = scalar_select %p1925, %s25, 1
      %s1927 = smul.addr %s1926, 4
      %s1928 = scalar_lea.vmem %s14, %s1927
      // Predicated region
      $region77: #{electra_cls_forward.5} parent=75 // pred_check
        %p1929 = pneg %p347
      $region78: #{electra_cls_forward.5} parent=75 // pred_check_branch
        %1931 = sbr.rel (%p1929) target = $region80
      $region79: #{electra_cls_forward.5} parent=75 // pred_region
        _
      $region80: #{electra_cls_forward.5} parent=75 // pred_fallthru
        _
    $region76: #{electra_cls_forward.5} parent=5 // pred_fallthru
      _
    %p1932 = scmp.le.s32.totalorder 2, %s20
    // Predicated region
    $region81: #{electra_cls_forward.5} parent=5 // pred_check
      %p1933 = pneg %p1932
    $region82: #{electra_cls_forward.5} parent=5 // pred_check_branch
      %1935 = sbr.rel (%p1933) target = $region84
    $region83: #{electra_cls_forward.5} parent=5 // pred_region
      %s1936 = ssub.s32 %s20, 2
      // Predicated region
      $region85: #{electra_cls_forward.5} parent=83 // pred_check
        %p1937 = pneg %p353
      $region86: #{electra_cls_forward.5} parent=83 // pred_check_branch
        %1939 = sbr.rel (%p1937) target = $region88
      $region87: #{electra_cls_forward.5} parent=83 // pred_region
        %p1940 = scmp.lt.s32.totalorder %s26, 1
        %s1941 = scalar_select %p1940, %s26, 1
        %s1942 = smul.addr %s1941, 4
        %s1943 = scalar_lea.vmem %s14, %s1942
      $region88: #{electra_cls_forward.5} parent=83 // pred_fallthru
        _
    $region84: #{electra_cls_forward.5} parent=5 // pred_fallthru
      _
  $region6: #{electra_cls_forward.5} parent=0 // loop_footer
    %s24 = sadd.s32 1, %s20
  $region7: #{electra_cls_forward.5} parent=0 // loop_footer_branch
    %19 = sbr.rel target = $region3
  $region8: #{electra_cls_forward.5} parent=0 // loop_exit
    _

// kernel: electra_cls_forward.6
$region0: #{electra_cls_forward.6}
  #allocation0 [shape = 'u32[]', space=smem, size = 0x4, offset = 0x4, fixed_abs, tag = 'smem constant byte address 0x4 - core index']
  #allocation1 [shape = 'u32[144,128]{1,0:T(1,128)}', space=vmem, size = 0x12000, scoped, tag = 'internal scratch']
  %s0 = inlined_call_operand.vmem [shape: bf16[2,8,32], index: 0, kind: input, shape index: {}]
  %s1 = inlined_call_operand.vmem [shape: f32[2,1,8], index: 1, kind: input, shape index: {}]
  %s2 = inlined_call_operand.vmem [shape: bf16[32,96], index: 2, kind: input, shape index: {}]
  %s3 = inlined_call_operand.vmem [shape: f32[1,96], index: 3, kind: input, shape index: {}]
  %s4 = inlined_call_operand.vmem [shape: bf16[32,32], index: 4, kind: input, shape index: {}]
  %s5 = inlined_call_operand.vmem [shape: f32[1,32], index: 5, kind: input, shape index: {}]
  %s6 = inlined_call_operand.vmem [shape: f32[1,32], index: 6, kind: input, shape index: {}]
  %s7 = inlined_call_operand.vmem [shape: f32[1,32], index: 7, kind: input, shape index: {}]
  %s8 = inlined_call_operand.vmem [shape: bf16[32,64], index: 8, kind: input, shape index: {}]
  %s9 = inlined_call_operand.vmem [shape: f32[1,64], index: 9, kind: input, shape index: {}]
  %s10 = inlined_call_operand.vmem [shape: bf16[64,32], index: 10, kind: input, shape index: {}]
  %s11 = inlined_call_operand.vmem [shape: f32[1,32], index: 11, kind: input, shape index: {}]
  %s12 = inlined_call_operand.vmem [shape: f32[1,32], index: 12, kind: input, shape index: {}]
  %s13 = inlined_call_operand.vmem [shape: f32[1,32], index: 13, kind: input, shape index: {}]
  %s14 = inlined_call_operand.vmem [shape: bf16[2,1,32], index: 14, kind: output, shape index: {}]
  %s15 = sld [smem:[#allocation0]]
  $region89: #{electra_cls_forward.6} parent=0
    _
  %s17 = ssub.s32 1, %s15
  %s18 = scalar_select 0, %s17, %s15
  loop: start=0, step=1, limit=4
  $region2: #{electra_cls_forward.6} parent=0 // loop_pre_header
    _
  $region3: #{electra_cls_forward.6} parent=0 // loop_header
    %s20 = sphi 0, %s24
    %p21 = scmp.ge.s32.totalorder %s20, 4
    %s30 = sphi 0, %s32
    %s33 = sphi 0, %s30
    %s34 = sphi 0, %s33
    %s50 = sphi 0, %s34
    %s56 = sphi 0, %s58
    %s59 = sphi 0, %s56
    %s60 = sphi 0, %s59
    %s76 = sphi 0, %s60
    %s80 = sphi 0, %s80
    %s82 = sphi 0, %s80
    %s83 = sphi 0, %s82
    %s97 = sphi 0, %s83
    %s101 = sphi 0, %s101
    %s103 = sphi 0, %s101
    %s104 = sphi 0, %s103
    %s118 = sphi 0, %s104
    %s122 = sphi 0, %s122
    %s124 = sphi 0, %s122
    %s125 = sphi 0, %s124
    %s139 = sphi 0, %s125
    %s143 = sphi 0, %s143
    %s145 = sphi 0, %s143
    %s146 = sphi 0, %s145
    %s160 = sphi 0, %s146
    %s164 = sphi 0, %s164
    %s166 = sphi 0, %s164
    %s167 = sphi 0, %s166
    %s181 = sphi 0, %s167
    %s185 = sphi 0, %s185
    %s187 = sphi 0, %s185
    %s188 = sphi 0, %s187
    %s202 = sphi 0, %s188
    %s206 = sphi 0, %s206
    %s208 = sphi 0, %s206
    %s209 = sphi 0, %s208
    %s223 = sphi 0, %s209
    %s227 = sphi 0, %s227
    %s229 = sphi 0, %s227
    %s230 = sphi 0, %s229
    %s244 = sphi 0, %s230
    %s248 = sphi 0, %s248
    %s250 = sphi 0, %s248
    %s251 = sphi 0, %s250
    %s265 = sphi 0, %s251
    %s269 = sphi 0, %s269
    %s271 = sphi 0, %s269
    %s272 = sphi 0, %s271
    %s286 = sphi 0, %s272
    %s290 = sphi 0, %s290
    %s292 = sphi 0, %s290
    %s293 = sphi 0, %s292
    %s307 = sphi 0, %s293
    %s311 = sphi 0, %s311
    %s313 = sphi 0, %s311
    %s314 = sphi 0, %s313
    %s328 = sphi 0, %s314
    %s334 = sphi 0, %s336
    %s337 = sphi 0, %s334
    %s338 = sphi 0, %s337
    %s354 = sphi 0, %s338
  $region4: #{electra_cls_forward.6} parent=0 // loop_header_branch
    %23 = sbr.rel (%p21) target = $region8
  $region5: #{electra_cls_forward.6} parent=0 // loop_body
    %s25 = ssub.s32 %s20, 1
    %s26 = ssub.s32 %s20, 2
    %s27 = sadd.s32 %s20, 1
    %s28 = ssub.s32 %s20, %s27
    %p29 = scmp.eq.s32.totalorder %s28, 0
    %s31 = sadd.s32 %s30, 1
    %s32 = scalar_select %p29, %s30, %s31
    %p35 = pneg %p29
    %p36 = scmp.eq.s32.totalorder %s20, 1
    %p37 = por %p35, %p36
    %p38 = scmp.ne.s32.totalorder %s30, %s33
    %p39 = scmp.eq.s32.totalorder %s20, 0
    %p40 = por %p38, %p39
    %p41 = scmp.ne.s32.totalorder %s30, %s33
    %p42 = scmp.eq.s32.totalorder %s25, 1
    %p43 = por %p41, %p42
    %p44 = scmp.ne.s32.totalorder %s33, %s34
    %p45 = scmp.eq.s32.totalorder %s25, 0
    %p46 = por %p44, %p45
    %p47 = scmp.ne.s32.totalorder %s33, %s34
    %p48 = scmp.eq.s32.totalorder %s26, 1
    %p49 = por %p47, %p48
    %p51 = scmp.ne.s32.totalorder %s34, %s50
    %p52 = scmp.eq.s32.totalorder %s26, 0
    %p53 = por %p51, %p52
    %s54 = ssub.s32 %s20, %s27
    %p55 = scmp.eq.s32.totalorder %s54, 0
    %s57 = sadd.s32 %s56, 1
    %s58 = scalar_select %p55, %s56, %s57
    %p61 = pneg %p55
    %p62 = scmp.eq.s32.totalorder %s20, 1
    %p63 = por %p61, %p62
    %p64 = scmp.ne.s32.totalorder %s56, %s59
    %p65 = scmp.eq.s32.totalorder %s20, 0
    %p66 = por %p64, %p65
    %p67 = scmp.ne.s32.totalorder %s56, %s59
    %p68 = scmp.eq.s32.totalorder %s25, 1
    %p69 = por %p67, %p68
    %p70 = scmp.ne.s32.totalorder %s59, %s60
    %p71 = scmp.eq.s32.totalorder %s25, 0
    %p72 = por %p70, %p71
    %p73 = scmp.ne.s32.totalorder %s59, %s60
    %p74 = scmp.eq.s32.totalorder %s26, 1
    %p75 = por %p73, %p74
    %p77 = scmp.ne.s32.totalorder %s60, %s76
    %p78 = scmp.eq.s32.totalorder %s26, 0
    %p79 = por %p77, %p78
    %s81 = sadd.s32 %s80, 1
    %p84 = scmp.eq.s32.totalorder %s20, 1
    %p85 = scmp.ne.s32.totalorder %s80, %s82
    %p86 = scmp.eq.s32.totalorder %s20, 0
    %p87 = por %p85, %p86
    %p88 = scmp.ne.s32.totalorder %s80, %s82
    %p89 = scmp.eq.s32.totalorder %s25, 1
    %p90 = por %p88, %p89
    %p91 = scmp.ne.s32.totalorder %s82, %s83
    %p92 = scmp.eq.s32.totalorder %s25, 0
    %p93 = por %p91, %p92
    %p94 = scmp.ne.s32.totalorder %s82, %s83
    %p95 = scmp.eq.s32.totalorder %s26, 1
    %p96 = por %p94, %p95
    %p98 = scmp.ne.s32.totalorder %s83, %s97
    %p99 = scmp.eq.s32.totalorder %s26, 0
    %p100 = por %p98, %p99
    %s102 = sadd.s32 %s101, 1
    %p105 = scmp.eq.s32.totalorder %s20, 1
    %p106 = scmp.ne.s32.totalorder %s101, %s103
    %p107 = scmp.eq.s32.totalorder %s20, 0
    %p108 = por %p106, %p107
    %p109 = scmp.ne.s32.totalorder %s101, %s103
    %p110 = scmp.eq.s32.totalorder %s25, 1
    %p111 = por %p109, %p110
    %p112 = scmp.ne.s32.totalorder %s103, %s104
    %p113 = scmp.eq.s32.totalorder %s25, 0
    %p114 = por %p112, %p113
    %p115 = scmp.ne.s32.totalorder %s103, %s104
    %p116 = scmp.eq.s32.totalorder %s26, 1
    %p117 = por %p115, %p116
    %p119 = scmp.ne.s32.totalorder %s104, %s118
    %p120 = scmp.eq.s32.totalorder %s26, 0
    %p121 = por %p119, %p120
    %s123 = sadd.s32 %s122, 1
    %p126 = scmp.eq.s32.totalorder %s20, 1
    %p127 = scmp.ne.s32.totalorder %s122, %s124
    %p128 = scmp.eq.s32.totalorder %s20, 0
    %p129 = por %p127, %p128
    %p130 = scmp.ne.s32.totalorder %s122, %s124
    %p131 = scmp.eq.s32.totalorder %s25, 1
    %p132 = por %p130, %p131
    %p133 = scmp.ne.s32.totalorder %s124, %s125
    %p134 = scmp.eq.s32.totalorder %s25, 0
    %p135 = por %p133, %p134
    %p136 = scmp.ne.s32.totalorder %s124, %s125
    %p137 = scmp.eq.s32.totalorder %s26, 1
    %p138 = por %p136, %p137
    %p140 = scmp.ne.s32.totalorder %s125, %s139
    %p141 = scmp.eq.s32.totalorder %s26, 0
    %p142 = por %p140, %p141
    %s144 = sadd.s32 %s143, 1
    %p147 = scmp.eq.s32.totalorder %s20, 1
    %p148 = scmp.ne.s32.totalorder %s143, %s145
    %p149 = scmp.eq.s32.totalorder %s20, 0
    %p150 = por %p148, %p149
    %p151 = scmp.ne.s32.totalorder %s143, %s145
    %p152 = scmp.eq.s32.totalorder %s25, 1
    %p153 = por %p151, %p152
    %p154 = scmp.ne.s32.totalorder %s145, %s146
    %p155 = scmp.eq.s32.totalorder %s25, 0
    %p156 = por %p154, %p155
    %p157 = scmp.ne.s32.totalorder %s145, %s146
    %p158 = scmp.eq.s32.totalorder %s26, 1
    %p159 = por %p157, %p158
    %p161 = scmp.ne.s32.totalorder %s146, %s160
    %p162 = scmp.eq.s32.totalorder %s26, 0
    %p163 = por %p161, %p162
    %s165 = sadd.s32 %s164, 1
    %p168 = scmp.eq.s32.totalorder %s20, 1
    %p169 = scmp.ne.s32.totalorder %s164, %s166
    %p170 = scmp.eq.s32.totalorder %s20, 0
    %p171 = por %p169, %p170
    %p172 = scmp.ne.s32.totalorder %s164, %s166
    %p173 = scmp.eq.s32.totalorder %s25, 1
    %p174 = por %p172, %p173
    %p175 = scmp.ne.s32.totalorder %s166, %s167
    %p176 = scmp.eq.s32.totalorder %s25, 0
    %p177 = por %p175, %p176
    %p178 = scmp.ne.s32.totalorder %s166, %s167
    %p179 = scmp.eq.s32.totalorder %s26, 1
    %p180 = por %p178, %p179
    %p182 = scmp.ne.s32.totalorder %s167, %s181
    %p183 = scmp.eq.s32.totalorder %s26, 0
    %p184 = por %p182, %p183
    %s186 = sadd.s32 %s185, 1
    %p189 = scmp.eq.s32.totalorder %s20, 1
    %p190 = scmp.ne.s32.totalorder %s185, %s187
    %p191 = scmp.eq.s32.totalorder %s20, 0
    %p192 = por %p190, %p191
    %p193 = scmp.ne.s32.totalorder %s185, %s187
    %p194 = scmp.eq.s32.totalorder %s25, 1
    %p195 = por %p193, %p194
    %p196 = scmp.ne.s32.totalorder %s187, %s188
    %p197 = scmp.eq.s32.totalorder %s25, 0
    %p198 = por %p196, %p197
    %p199 = scmp.ne.s32.totalorder %s187, %s188
    %p200 = scmp.eq.s32.totalorder %s26, 1
    %p201 = por %p199, %p200
    %p203 = scmp.ne.s32.totalorder %s188, %s202
    %p204 = scmp.eq.s32.totalorder %s26, 0
    %p205 = por %p203, %p204
    %s207 = sadd.s32 %s206, 1
    %p210 = scmp.eq.s32.totalorder %s20, 1
    %p211 = scmp.ne.s32.totalorder %s206, %s208
    %p212 = scmp.eq.s32.totalorder %s20, 0
    %p213 = por %p211, %p212
    %p214 = scmp.ne.s32.totalorder %s206, %s208
    %p215 = scmp.eq.s32.totalorder %s25, 1
    %p216 = por %p214, %p215
    %p217 = scmp.ne.s32.totalorder %s208, %s209
    %p218 = scmp.eq.s32.totalorder %s25, 0
    %p219 = por %p217, %p218
    %p220 = scmp.ne.s32.totalorder %s208, %s209
    %p221 = scmp.eq.s32.totalorder %s26, 1
    %p222 = por %p220, %p221
    %p224 = scmp.ne.s32.totalorder %s209, %s223
    %p225 = scmp.eq.s32.totalorder %s26, 0
    %p226 = por %p224, %p225
    %s228 = sadd.s32 %s227, 1
    %p231 = scmp.eq.s32.totalorder %s20, 1
    %p232 = scmp.ne.s32.totalorder %s227, %s229
    %p233 = scmp.eq.s32.totalorder %s20, 0
    %p234 = por %p232, %p233
    %p235 = scmp.ne.s32.totalorder %s227, %s229
    %p236 = scmp.eq.s32.totalorder %s25, 1
    %p237 = por %p235, %p236
    %p238 = scmp.ne.s32.totalorder %s229, %s230
    %p239 = scmp.eq.s32.totalorder %s25, 0
    %p240 = por %p238, %p239
    %p241 = scmp.ne.s32.totalorder %s229, %s230
    %p242 = scmp.eq.s32.totalorder %s26, 1
    %p243 = por %p241, %p242
    %p245 = scmp.ne.s32.totalorder %s230, %s244
    %p246 = scmp.eq.s32.totalorder %s26, 0
    %p247 = por %p245, %p246
    %s249 = sadd.s32 %s248, 1
    %p252 = scmp.eq.s32.totalorder %s20, 1
    %p253 = scmp.ne.s32.totalorder %s248, %s250
    %p254 = scmp.eq.s32.totalorder %s20, 0
    %p255 = por %p253, %p254
    %p256 = scmp.ne.s32.totalorder %s248, %s250
    %p257 = scmp.eq.s32.totalorder %s25, 1
    %p258 = por %p256, %p257
    %p259 = scmp.ne.s32.totalorder %s250, %s251
    %p260 = scmp.eq.s32.totalorder %s25, 0
    %p261 = por %p259, %p260
    %p262 = scmp.ne.s32.totalorder %s250, %s251
    %p263 = scmp.eq.s32.totalorder %s26, 1
    %p264 = por %p262, %p263
    %p266 = scmp.ne.s32.totalorder %s251, %s265
    %p267 = scmp.eq.s32.totalorder %s26, 0
    %p268 = por %p266, %p267
    %s270 = sadd.s32 %s269, 1
    %p273 = scmp.eq.s32.totalorder %s20, 1
    %p274 = scmp.ne.s32.totalorder %s269, %s271
    %p275 = scmp.eq.s32.totalorder %s20, 0
    %p276 = por %p274, %p275
    %p277 = scmp.ne.s32.totalorder %s269, %s271
    %p278 = scmp.eq.s32.totalorder %s25, 1
    %p279 = por %p277, %p278
    %p280 = scmp.ne.s32.totalorder %s271, %s272
    %p281 = scmp.eq.s32.totalorder %s25, 0
    %p282 = por %p280, %p281
    %p283 = scmp.ne.s32.totalorder %s271, %s272
    %p284 = scmp.eq.s32.totalorder %s26, 1
    %p285 = por %p283, %p284
    %p287 = scmp.ne.s32.totalorder %s272, %s286
    %p288 = scmp.eq.s32.totalorder %s26, 0
    %p289 = por %p287, %p288
    %s291 = sadd.s32 %s290, 1
    %p294 = scmp.eq.s32.totalorder %s20, 1
    %p295 = scmp.ne.s32.totalorder %s290, %s292
    %p296 = scmp.eq.s32.totalorder %s20, 0
    %p297 = por %p295, %p296
    %p298 = scmp.ne.s32.totalorder %s290, %s292
    %p299 = scmp.eq.s32.totalorder %s25, 1
    %p300 = por %p298, %p299
    %p301 = scmp.ne.s32.totalorder %s292, %s293
    %p302 = scmp.eq.s32.totalorder %s25, 0
    %p303 = por %p301, %p302
    %p304 = scmp.ne.s32.totalorder %s292, %s293
    %p305 = scmp.eq.s32.totalorder %s26, 1
    %p306 = por %p304, %p305
    %p308 = scmp.ne.s32.totalorder %s293, %s307
    %p309 = scmp.eq.s32.totalorder %s26, 0
    %p310 = por %p308, %p309
    %s312 = sadd.s32 %s311, 1
    %p315 = scmp.eq.s32.totalorder %s20, 1
    %p316 = scmp.ne.s32.totalorder %s311, %s313
    %p317 = scmp.eq.s32.totalorder %s20, 0
    %p318 = por %p316, %p317
    %p319 = scmp.ne.s32.totalorder %s311, %s313
    %p320 = scmp.eq.s32.totalorder %s25, 1
    %p321 = por %p319, %p320
    %p322 = scmp.ne.s32.totalorder %s313, %s314
    %p323 = scmp.eq.s32.totalorder %s25, 0
    %p324 = por %p322, %p323
    %p325 = scmp.ne.s32.totalorder %s313, %s314
    %p326 = scmp.eq.s32.totalorder %s26, 1
    %p327 = por %p325, %p326
    %p329 = scmp.ne.s32.totalorder %s314, %s328
    %p330 = scmp.eq.s32.totalorder %s26, 0
    %p331 = por %p329, %p330
    %s332 = ssub.s32 %s20, %s27
    %p333 = scmp.eq.s32.totalorder %s332, 0
    %s335 = sadd.s32 %s334, 1
    %s336 = scalar_select %p333, %s334, %s335
    %p339 = pneg %p333
    %p340 = scmp.eq.s32.totalorder %s20, 1
    %p341 = por %p339, %p340
    %p342 = scmp.ne.s32.totalorder %s334, %s337
    %p343 = scmp.eq.s32.totalorder %s20, 0
    %p344 = por %p342, %p343
    %p345 = scmp.ne.s32.totalorder %s334, %s337
    %p346 = scmp.eq.s32.totalorder %s25, 1
    %p347 = por %p345, %p346
    %p348 = scmp.ne.s32.totalorder %s337, %s338
    %p349 = scmp.eq.s32.totalorder %s25, 0
    %p350 = por %p348, %p349
    %p351 = scmp.ne.s32.totalorder %s337, %s338
    %p352 = scmp.eq.s32.totalorder %s26, 1
    %p353 = por %p351, %p352
    %p355 = scmp.ne.s32.totalorder %s338, %s354
    %p356 = scmp.eq.s32.totalorder %s26, 0
    %p357 = por %p355, %p356
    %p358 = scmp.le.s32.totalorder 1, %s20
    %p359 = scmp.lt.s32.totalorder %s20, 3
    %p360 = pnand %p358, %p359
    %p361 = pneg %p360
    // Predicated region
    $region9: #{electra_cls_forward.6} parent=5 // pred_check
      _
    $region10: #{electra_cls_forward.6} parent=5 // pred_check_branch
      %363 = sbr.rel (%p360) target = $region12
    $region11: #{electra_cls_forward.6} parent=5 // pred_region
      %s364 = ssub.s32 %s20, 1
      // Predicated region
      $region13: #{electra_cls_forward.6} parent=11 // pred_check
        %p365 = pneg %p93
      $region14: #{electra_cls_forward.6} parent=11 // pred_check_branch
        %367 = sbr.rel (%p365) target = $region16
      $region15: #{electra_cls_forward.6} parent=11 // pred_region
        _
      $region16: #{electra_cls_forward.6} parent=11 // pred_fallthru
        _
      // Predicated region
      $region17: #{electra_cls_forward.6} parent=11 // pred_check
        %p368 = pneg %p114
      $region18: #{electra_cls_forward.6} parent=11 // pred_check_branch
        %370 = sbr.rel (%p368) target = $region20
      $region19: #{electra_cls_forward.6} parent=11 // pred_region
        _
      $region20: #{electra_cls_forward.6} parent=11 // pred_fallthru
        _
      // Predicated region
      $region21: #{electra_cls_forward.6} parent=11 // pred_check
        %p371 = pneg %p135
      $region22: #{electra_cls_forward.6} parent=11 // pred_check_branch
        %373 = sbr.rel (%p371) target = $region24
      $region23: #{electra_cls_forward.6} parent=11 // pred_region
        _
      $region24: #{electra_cls_forward.6} parent=11 // pred_fallthru
        _
      // Predicated region
      $region25: #{electra_cls_forward.6} parent=11 // pred_check
        %p374 = pneg %p156
      $region26: #{electra_cls_forward.6} parent=11 // pred_check_branch
        %376 = sbr.rel (%p374) target = $region28
      $region27: #{electra_cls_forward.6} parent=11 // pred_region
        _
      $region28: #{electra_cls_forward.6} parent=11 // pred_fallthru
        _
      // Predicated region
      $region29: #{electra_cls_forward.6} parent=11 // pred_check
        %p377 = pneg %p177
      $region30: #{electra_cls_forward.6} parent=11 // pred_check_branch
        %379 = sbr.rel (%p377) target = $region32
      $region31: #{electra_cls_forward.6} parent=11 // pred_region
        _
      $region32: #{electra_cls_forward.6} parent=11 // pred_fallthru
        _
      // Predicated region
      $region33: #{electra_cls_forward.6} parent=11 // pred_check
        %p380 = pneg %p198
      $region34: #{electra_cls_forward.6} parent=11 // pred_check_branch
        %382 = sbr.rel (%p380) target = $region36
      $region35: #{electra_cls_forward.6} parent=11 // pred_region
        _
      $region36: #{electra_cls_forward.6} parent=11 // pred_fallthru
        _
      // Predicated region
      $region37: #{electra_cls_forward.6} parent=11 // pred_check
        %p383 = pneg %p219
      $region38: #{electra_cls_forward.6} parent=11 // pred_check_branch
        %385 = sbr.rel (%p383) target = $region40
      $region39: #{electra_cls_forward.6} parent=11 // pred_region
        _
      $region40: #{electra_cls_forward.6} parent=11 // pred_fallthru
        _
      // Predicated region
      $region41: #{electra_cls_forward.6} parent=11 // pred_check
        %p386 = pneg %p240
      $region42: #{electra_cls_forward.6} parent=11 // pred_check_branch
        %388 = sbr.rel (%p386) target = $region44
      $region43: #{electra_cls_forward.6} parent=11 // pred_region
        _
      $region44: #{electra_cls_forward.6} parent=11 // pred_fallthru
        _
      // Predicated region
      $region45: #{electra_cls_forward.6} parent=11 // pred_check
        %p389 = pneg %p261
      $region46: #{electra_cls_forward.6} parent=11 // pred_check_branch
        %391 = sbr.rel (%p389) target = $region48
      $region47: #{electra_cls_forward.6} parent=11 // pred_region
        _
      $region48: #{electra_cls_forward.6} parent=11 // pred_fallthru
        _
      // Predicated region
      $region49: #{electra_cls_forward.6} parent=11 // pred_check
        %p392 = pneg %p282
      $region50: #{electra_cls_forward.6} parent=11 // pred_check_branch
        %394 = sbr.rel (%p392) target = $region52
      $region51: #{electra_cls_forward.6} parent=11 // pred_region
        _
      $region52: #{electra_cls_forward.6} parent=11 // pred_fallthru
        _
      // Predicated region
      $region53: #{electra_cls_forward.6} parent=11 // pred_check
        %p395 = pneg %p303
      $region54: #{electra_cls_forward.6} parent=11 // pred_check_branch
        %397 = sbr.rel (%p395) target = $region56
      $region55: #{electra_cls_forward.6} parent=11 // pred_region
        _
      $region56: #{electra_cls_forward.6} parent=11 // pred_fallthru
        _
      // Predicated region
      $region57: #{electra_cls_forward.6} parent=11 // pred_check
        %p398 = pneg %p324
      $region58: #{electra_cls_forward.6} parent=11 // pred_check_branch
        %400 = sbr.rel (%p398) target = $region60
      $region59: #{electra_cls_forward.6} parent=11 // pred_region
        _
      $region60: #{electra_cls_forward.6} parent=11 // pred_fallthru
        _
    $region12: #{electra_cls_forward.6} parent=5 // pred_fallthru
      _
    %p401 = scmp.lt.s32.totalorder %s20, 2
    // Predicated region
    $region61: #{electra_cls_forward.6} parent=5 // pred_check
      %p402 = pneg %p401
    $region62: #{electra_cls_forward.6} parent=5 // pred_check_branch
      %404 = sbr.rel (%p402) target = $region64
    $region63: #{electra_cls_forward.6} parent=5 // pred_region
      // Predicated region
      $region65: #{electra_cls_forward.6} parent=63 // pred_check
        %p405 = pneg %p40
      $region66: #{electra_cls_forward.6} parent=63 // pred_check_branch
        %407 = sbr.rel (%p405) target = $region68
      $region67: #{electra_cls_forward.6} parent=63 // pred_region
        %p408 = scmp.lt.s32.totalorder %s20, 1
        %s409 = scalar_select %p408, %s20, 1
        %s410 = smul.addr %s409, 4
        %s411 = scalar_lea.vmem %s0, %s410
      $region68: #{electra_cls_forward.6} parent=63 // pred_fallthru
        _
      // Predicated region
      $region69: #{electra_cls_forward.6} parent=63 // pred_check
        %p412 = pneg %p66
      $region70: #{electra_cls_forward.6} parent=63 // pred_check_branch
        %414 = sbr.rel (%p412) target = $region72
      $region71: #{electra_cls_forward.6} parent=63 // pred_region
        %p415 = scmp.lt.s32.totalorder %s20, 1
        %s416 = scalar_select %p415, %s20, 1
        %s417 = scalar_lea.vmem %s1, %s416
      $region72: #{electra_cls_forward.6} parent=63 // pred_fallthru
        _
    $region64: #{electra_cls_forward.6} parent=5 // pred_fallthru
      _
    %p418 = scmp.le.s32.totalorder 1, %s20
    %p419 = scmp.lt.s32.totalorder %s20, 3
    %p420 = pnand %p418, %p419
    %p421 = pneg %p420
    // Predicated region
    $region73: #{electra_cls_forward.6} parent=5 // pred_check
      _
    $region74: #{electra_cls_forward.6} parent=5 // pred_check_branch
      %423 = sbr.rel (%p420) target = $region76
    $region75: #{electra_cls_forward.6} parent=5 // pred_region
      %s424 = ssub.s32 %s20, 1
      %p425 = scmp.lt.s32.totalorder %s25, 1
      %s426 = scalar_select %p425, %s25, 1
      %s427 = smul.addr %s426, 4
      %s428 = scalar_lea.vmem %s0, %s427
      %p429 = pneg %p46
      %p430 = pneg %p43
      %p431 = scmp.lt.s32.totalorder %s25, 1
      %s432 = scalar_select %p431, %s25, 1
      %s433 = scalar_lea.vmem %s1, %s432
      %p434 = pneg %p72
      %p435 = pneg %p69
      %p436 = pneg %p93
      %p437 = pneg %p90
      %p438 = pneg %p114
      %p439 = pneg %p111
      %p440 = pneg %p135
      %p441 = pneg %p132
      %p442 = pneg %p156
      %p443 = pneg %p153
      %p444 = pneg %p177
      %p445 = pneg %p174
      %p446 = pneg %p198
      %p447 = pneg %p195
      %p448 = pneg %p219
      %p449 = pneg %p216
      %p450 = pneg %p240
      %p451 = pneg %p237
      %p452 = pneg %p261
      %p453 = pneg %p258
      %p454 = pneg %p282
      %p455 = pneg %p279
      %p456 = pneg %p303
      %p457 = pneg %p300
      %p458 = pneg %p324
      %p459 = pneg %p321
      %p460 = pneg %p350
      %p461 = pneg %p347
      %p462 = scmp.lt.s32.totalorder %s25, 1
      %s463 = scalar_select %p462, %s25, 1
      %s464 = scalar_lea.vmem %s14, %s463
      %p465 = scmp.lt.s32.totalorder %s25, 1
      %s466 = scalar_select %p465, %s25, 1
      %s467 = smul.addr %s466, 4
      %s468 = scalar_lea.vmem %s0, %s467
      %p469 = scmp.lt.s32.totalorder %s25, 1
      %s470 = scalar_select %p469, %s25, 1
      %s471 = scalar_lea.vmem %s1, %s470
      %p472 = scmp.lt.s32.totalorder %s25, 1
      %s473 = scalar_select %p472, %s25, 1
      %s474 = scalar_lea.vmem %s14, %s473
      %v476 = vld [vmem:[%s468] sm:$0xf]
      %v477 = vld [vmem:[%s2] sm:$0xf]
      %v478 = vld [vmem:[%s2 + $0x4] sm:$0xf]
      %v479 = vld [vmem:[%s2 + $0x8] sm:$0xf]
      %v480 = vld [vmem:[%s2 + $0xc] sm:$0xf]
      %v481 = vld [vmem:[%s3] sm:$0x1]
      %v483 = vlaneseq
      %v484 = vshrl.u32 %v483, 7
      %v485 = vsub.s32 0, %v484
      %v486 = vrot.slane %v481, %v485
      %v492 = vunpack.c.l.b16 %v477
      %v493 = vunpack.c.l.b16 %v478
      %v494 = vunpack.c.l.b16 %v479
      %v495 = vunpack.c.l.b16 %v480
      %v496 = vpack.c.b16 %v493, %v492
      %v497 = vpack.c.b16 %v495, %v494
      %vm500 = vcmask 261120
      %v502 = vsel %vm500, %v476, 0
      %504 = vmatprep.subr.bf16.mxu0 0
      %505 = vmatpush1.bf16.msra.mxu0 0
      %506 = vmatprep.subr.bf16.mxu0 0
      %507 = vmatpush1.bf16.msra.mxu0 0
      %508 = vmatprep.subr.bf16.mxu0 0
      %509 = vmatpush1.bf16.msra.mxu0 0
      %510 = vmatprep.subr.bf16.mxu0 0
      %511 = vmatpush1.bf16.msra.mxu0 0
      %512 = vmatprep.subr.bf16.mxu0 0
      %513 = vmatpush1.bf16.msra.mxu0 0
      %514 = vmatprep.subr.bf16.mxu0 0
      %515 = vmatpush1.bf16.msra.mxu0 0
      %516 = vmatprep.subr.bf16.mxu0 0
      %517 = vmatpush1.bf16.msra.mxu0 %v497
      %518 = vmatprep.subr.bf16.mxu0 0
      %519 = vmatpush1.bf16.msra.mxu0 %v496
      %520 = vmatprep.subr.bf16.mxu0 0
      %521 = vmatpush2.bf16.msra.mxu0 0
      %522 = vmatprep.subr.bf16.mxu0 0
      %523 = vmatpush2.bf16.msra.mxu0 0
      %524 = vmatprep.subr.bf16.mxu0 0
      %525 = vmatpush2.bf16.msra.mxu0 0
      %526 = vmatprep.subr.bf16.mxu0 0
      %527 = vmatpush2.bf16.msra.mxu0 0
      %528 = vmatprep.subr.bf16.mxu0 0
      %529 = vmatpush2.bf16.msra.mxu0 0
      %530 = vmatprep.subr.bf16.mxu0 0
      %531 = vmatpush2.bf16.msra.mxu0 0
      %532 = vmatprep.subr.bf16.mxu0 0
      %533 = vmatpush2.bf16.msra.mxu0 0
      %534 = vmatprep.subr.bf16.mxu0 0
      %535 = vmatpush2.bf16.msra.mxu0 0
      %536 = vmatprep.mubr.bf16.mxu0 0
      %537 = vmatmul.mubr.bf16.gmra.mxu0 %v502
      %v538 = vpop.f32.mrf.mxu0
      %v539 = vadd.f32 %v486, %v538
      %v540 = vpop.f32.mrf.mxu0
      %v541 = vpop.f32.mrf.mxu0
      %v542 = vpop.f32.mrf.mxu0
      %543 = vdwg.mxu0
      %v544 = vpack.c.bf16 %v539, %v539
      %v545 = vunpack.c.l.bf16 %v476
      %547 = vrot.lane.b32.xlu0 %v544, 120
      %v548 = vpop.permute.xlu0 %547
      %549 = vrot.lane.b32.xlu0 %v544, 112
      %v550 = vpop.permute.xlu0 %549
      %551 = vrot.lane.b32.xlu0 %v544, 104
      %v552 = vpop.permute.xlu0 %551
      %v554 = vcombine.low %v544, %v550
      %v556 = vunpack.c.l.s4 1934713408
      %v557 = vunpack.c.0.s8 %v556
      %v558 = vlaneseq
      %v559 = vshrl.u32 %v558, 7
      %v560 = vsub.s32 %v557, %v559
      %v561 = vrot.slane %v554, %v560
      %v564 = vcombine.low %v548, %v552
      %v566 = vunpack.c.l.s4 1934713408
      %v567 = vunpack.c.0.s8 %v566
      %v568 = vlaneseq
      %v569 = vshrl.u32 %v568, 7
      %v570 = vsub.s32 %v567, %v569
      %v571 = vrot.slane %v564, %v570
      %v574 = vpack.i.b16 %v571, %v561
      %v577 = vunpack.c.l.s4 1934713408
      %v578 = vunpack.c.0.s8 %v577
      %v579 = vlaneseq
      %v580 = vshrl.u32 %v579, 7
      %v581 = vsub.s32 %v578, %v580
      %v582 = vrot.slane %v574, %v581
      %v583 = vcombine.high %v582, 0
      %v586 = vpack.i.b16 0, %v582
      %v587 = vshrl.u32 %v582, 16
      %v588 = vshrl.u32 0, 16
      %v589 = vpack.i.b16 %v588, %v587
      %v591 = vpack.i.b16 0, %v583
      %v592 = vshrl.u32 %v583, 16
      %v593 = vpack.i.b16 %v588, %v592
      %594 = vrot.lane.b32.xlu0 %v544, 96
      %v595 = vpop.permute.xlu0 %594
      %596 = vrot.lane.b32.xlu0 %v548, 96
      %v597 = vpop.permute.xlu0 %596
      %598 = vrot.lane.b32.xlu0 %v550, 96
      %v599 = vpop.permute.xlu0 %598
      %600 = vrot.lane.b32.xlu0 %v552, 96
      %v601 = vpop.permute.xlu0 %600
      %v604 = vunpack.c.l.s4 1983009808
      %v605 = vunpack.c.0.s8 %v604
      %v606 = vlaneseq
      %v607 = vshrl.u32 %v606, 7
      %v608 = vsub.s32 %v605, %v607
      %v609 = vrot.slane %v595, %v608
      %v612 = vunpack.c.l.s4 1983009808
      %v613 = vunpack.c.0.s8 %v612
      %v614 = vlaneseq
      %v615 = vshrl.u32 %v614, 7
      %v616 = vsub.s32 %v613, %v615
      %v617 = vrot.slane %v599, %v616
      %v618 = vcombine.low %v609, %v617
      %v619 = vcombine.high %v609, %v617
      %v621 = vunpack.c.l.s4 1934713408
      %v622 = vunpack.c.0.s8 %v621
      %v623 = vlaneseq
      %v624 = vshrl.u32 %v623, 7
      %v625 = vsub.s32 %v622, %v624
      %v626 = vrot.slane %v618, %v625
      %v628 = vunpack.c.l.s4 1934713408
      %v629 = vunpack.c.0.s8 %v628
      %v630 = vlaneseq
      %v631 = vshrl.u32 %v630, 7
      %v632 = vsub.s32 %v629, %v631
      %v633 = vrot.slane %v619, %v632
      %v634 = vcombine.high %v626, 0
      %v635 = vcombine.high %v633, 0
      %v638 = vunpack.c.l.s4 1983009808
      %v639 = vunpack.c.0.s8 %v638
      %v640 = vlaneseq
      %v641 = vshrl.u32 %v640, 7
      %v642 = vsub.s32 %v639, %v641
      %v643 = vrot.slane %v597, %v642
      %v646 = vunpack.c.l.s4 1983009808
      %v647 = vunpack.c.0.s8 %v646
      %v648 = vlaneseq
      %v649 = vshrl.u32 %v648, 7
      %v650 = vsub.s32 %v647, %v649
      %v651 = vrot.slane %v601, %v650
      %v652 = vcombine.low %v643, %v651
      %v653 = vcombine.high %v643, %v651
      %v655 = vunpack.c.l.s4 1934713408
      %v656 = vunpack.c.0.s8 %v655
      %v657 = vlaneseq
      %v658 = vshrl.u32 %v657, 7
      %v659 = vsub.s32 %v656, %v658
      %v660 = vrot.slane %v652, %v659
      %v662 = vunpack.c.l.s4 1934713408
      %v663 = vunpack.c.0.s8 %v662
      %v664 = vlaneseq
      %v665 = vshrl.u32 %v664, 7
      %v666 = vsub.s32 %v663, %v665
      %v667 = vrot.slane %v653, %v666
      %v668 = vcombine.high %v660, 0
      %v669 = vcombine.high %v667, 0
      %v672 = vpack.i.b16 %v660, %v626
      %v674 = vshrl.u32 %v626, 16
      %v675 = vshrl.u32 %v660, 16
      %v676 = vpack.i.b16 %v675, %v674
      %v680 = vpack.i.b16 %v668, %v634
      %v682 = vshrl.u32 %v634, 16
      %v683 = vshrl.u32 %v668, 16
      %v684 = vpack.i.b16 %v683, %v682
      %v688 = vpack.i.b16 %v667, %v633
      %v690 = vshrl.u32 %v633, 16
      %v691 = vshrl.u32 %v667, 16
      %v692 = vpack.i.b16 %v691, %v690
      %v696 = vpack.i.b16 %v669, %v635
      %v698 = vshrl.u32 %v635, 16
      %v699 = vshrl.u32 %v669, 16
      %v700 = vpack.i.b16 %v699, %v698
      %v702 = vcombine.low %v672, %v688
      %v704 = vunpack.c.l.s4 1983009808
      %v705 = vunpack.c.0.s8 %v704
      %v706 = vlaneseq
      %v707 = vshrl.u32 %v706, 7
      %v708 = vsub.s32 %v705, %v707
      %v709 = vrot.slane %v702, %v708
      %v710 = vcombine.low %v680, %v696
      %v712 = vunpack.c.l.s4 1983009808
      %v713 = vunpack.c.0.s8 %v712
      %v714 = vlaneseq
      %v715 = vshrl.u32 %v714, 7
      %v716 = vsub.s32 %v713, %v715
      %v717 = vrot.slane %v710, %v716
      %v718 = vcombine.low %v709, %v717
      %v720 = vunpack.c.l.s4 1934713408
      %v721 = vunpack.c.0.s8 %v720
      %v722 = vlaneseq
      %v723 = vshrl.u32 %v722, 7
      %v724 = vsub.s32 %v721, %v723
      %v725 = vrot.slane %v718, %v724
      %v726 = vcombine.high %v725, 0
      %v727 = vcombine.low %v676, %v692
      %v729 = vunpack.c.l.s4 1983009808
      %v730 = vunpack.c.0.s8 %v729
      %v731 = vlaneseq
      %v732 = vshrl.u32 %v731, 7
      %v733 = vsub.s32 %v730, %v732
      %v734 = vrot.slane %v727, %v733
      %v735 = vcombine.low %v684, %v700
      %v737 = vunpack.c.l.s4 1983009808
      %v738 = vunpack.c.0.s8 %v737
      %v739 = vlaneseq
      %v740 = vshrl.u32 %v739, 7
      %v741 = vsub.s32 %v738, %v740
      %v742 = vrot.slane %v735, %v741
      %v743 = vcombine.low %v734, %v742
      %v745 = vunpack.c.l.s4 1934713408
      %v746 = vunpack.c.0.s8 %v745
      %v747 = vlaneseq
      %v748 = vshrl.u32 %v747, 7
      %v749 = vsub.s32 %v746, %v748
      %v750 = vrot.slane %v743, %v749
      %v751 = vcombine.high %v750, 0
      %v754 = vpack.i.b16 %v750, %v725
      %v755 = vshrl.u32 %v725, 16
      %v756 = vshrl.u32 %v750, 16
      %v757 = vpack.i.b16 %v756, %v755
      %v760 = vpack.i.b16 %v751, %v726
      %v761 = vshrl.u32 %v726, 16
      %v762 = vshrl.u32 %v751, 16
      %v763 = vpack.i.b16 %v762, %v761
      %764 = vrot.lane.b32.xlu0 %v544, 64
      %v765 = vpop.permute.xlu0 %764
      %766 = vrot.lane.b32.xlu0 %v548, 64
      %v767 = vpop.permute.xlu0 %766
      %768 = vrot.lane.b32.xlu0 %v550, 64
      %v769 = vpop.permute.xlu0 %768
      %770 = vrot.lane.b32.xlu0 %v552, 64
      %v771 = vpop.permute.xlu0 %770
      %v774 = vunpack.c.l.s4 1983009808
      %v775 = vunpack.c.0.s8 %v774
      %v776 = vlaneseq
      %v777 = vshrl.u32 %v776, 7
      %v778 = vsub.s32 %v775, %v777
      %v779 = vrot.slane %v765, %v778
      %v782 = vunpack.c.l.s4 1983009808
      %v783 = vunpack.c.0.s8 %v782
      %v784 = vlaneseq
      %v785 = vshrl.u32 %v784, 7
      %v786 = vsub.s32 %v783, %v785
      %v787 = vrot.slane %v769, %v786
      %v788 = vcombine.low %v779, %v787
      %v789 = vcombine.high %v779, %v787
      %v791 = vunpack.c.l.s4 1934713408
      %v792 = vunpack.c.0.s8 %v791
      %v793 = vlaneseq
      %v794 = vshrl.u32 %v793, 7
      %v795 = vsub.s32 %v792, %v794
      %v796 = vrot.slane %v788, %v795
      %v798 = vunpack.c.l.s4 1934713408
      %v799 = vunpack.c.0.s8 %v798
      %v800 = vlaneseq
      %v801 = vshrl.u32 %v800, 7
      %v802 = vsub.s32 %v799, %v801
      %v803 = vrot.slane %v789, %v802
      %v804 = vcombine.high %v796, 0
      %v805 = vcombine.high %v803, 0
      %v808 = vunpack.c.l.s4 1983009808
      %v809 = vunpack.c.0.s8 %v808
      %v810 = vlaneseq
      %v811 = vshrl.u32 %v810, 7
      %v812 = vsub.s32 %v809, %v811
      %v813 = vrot.slane %v767, %v812
      %v816 = vunpack.c.l.s4 1983009808
      %v817 = vunpack.c.0.s8 %v816
      %v818 = vlaneseq
      %v819 = vshrl.u32 %v818, 7
      %v820 = vsub.s32 %v817, %v819
      %v821 = vrot.slane %v771, %v820
      %v822 = vcombine.low %v813, %v821
      %v823 = vcombine.high %v813, %v821
      %v825 = vunpack.c.l.s4 1934713408
      %v826 = vunpack.c.0.s8 %v825
      %v827 = vlaneseq
      %v828 = vshrl.u32 %v827, 7
      %v829 = vsub.s32 %v826, %v828
      %v830 = vrot.slane %v822, %v829
      %v832 = vunpack.c.l.s4 1934713408
      %v833 = vunpack.c.0.s8 %v832
      %v834 = vlaneseq
      %v835 = vshrl.u32 %v834, 7
      %v836 = vsub.s32 %v833, %v835
      %v837 = vrot.slane %v823, %v836
      %v838 = vcombine.high %v830, 0
      %v839 = vcombine.high %v837, 0
      %v842 = vpack.i.b16 %v830, %v796
      %v844 = vshrl.u32 %v796, 16
      %v845 = vshrl.u32 %v830, 16
      %v846 = vpack.i.b16 %v845, %v844
      %v850 = vpack.i.b16 %v838, %v804
      %v852 = vshrl.u32 %v804, 16
      %v853 = vshrl.u32 %v838, 16
      %v854 = vpack.i.b16 %v853, %v852
      %v858 = vpack.i.b16 %v837, %v803
      %v860 = vshrl.u32 %v803, 16
      %v861 = vshrl.u32 %v837, 16
      %v862 = vpack.i.b16 %v861, %v860
      %v866 = vpack.i.b16 %v839, %v805
      %v868 = vshrl.u32 %v805, 16
      %v869 = vshrl.u32 %v839, 16
      %v870 = vpack.i.b16 %v869, %v868
      %v872 = vcombine.low %v842, %v858
      %v874 = vunpack.c.l.s4 1983009808
      %v875 = vunpack.c.0.s8 %v874
      %v876 = vlaneseq
      %v877 = vshrl.u32 %v876, 7
      %v878 = vsub.s32 %v875, %v877
      %v879 = vrot.slane %v872, %v878
      %v880 = vcombine.low %v850, %v866
      %v882 = vunpack.c.l.s4 1983009808
      %v883 = vunpack.c.0.s8 %v882
      %v884 = vlaneseq
      %v885 = vshrl.u32 %v884, 7
      %v886 = vsub.s32 %v883, %v885
      %v887 = vrot.slane %v880, %v886
      %v888 = vcombine.low %v879, %v887
      %v890 = vunpack.c.l.s4 1934713408
      %v891 = vunpack.c.0.s8 %v890
      %v892 = vlaneseq
      %v893 = vshrl.u32 %v892, 7
      %v894 = vsub.s32 %v891, %v893
      %v895 = vrot.slane %v888, %v894
      %v896 = vcombine.high %v895, 0
      %v897 = vcombine.low %v846, %v862
      %v899 = vunpack.c.l.s4 1983009808
      %v900 = vunpack.c.0.s8 %v899
      %v901 = vlaneseq
      %v902 = vshrl.u32 %v901, 7
      %v903 = vsub.s32 %v900, %v902
      %v904 = vrot.slane %v897, %v903
      %v905 = vcombine.low %v854, %v870
      %v907 = vunpack.c.l.s4 1983009808
      %v908 = vunpack.c.0.s8 %v907
      %v909 = vlaneseq
      %v910 = vshrl.u32 %v909, 7
      %v911 = vsub.s32 %v908, %v910
      %v912 = vrot.slane %v905, %v911
      %v913 = vcombine.low %v904, %v912
      %v915 = vunpack.c.l.s4 1934713408
      %v916 = vunpack.c.0.s8 %v915
      %v917 = vlaneseq
      %v918 = vshrl.u32 %v917, 7
      %v919 = vsub.s32 %v916, %v918
      %v920 = vrot.slane %v913, %v919
      %v921 = vcombine.high %v920, 0
      %v924 = vpack.i.b16 %v920, %v895
      %v925 = vshrl.u32 %v895, 16
      %v926 = vshrl.u32 %v920, 16
      %v927 = vpack.i.b16 %v926, %v925
      %v930 = vpack.i.b16 %v921, %v896
      %v931 = vshrl.u32 %v896, 16
      %v932 = vshrl.u32 %v921, 16
      %v933 = vpack.i.b16 %v932, %v931
      %v934 = vld [vmem:[%s471] sm:$0x1]
      %vm935 = vcmask 64512
      %v937 = vsel %vm935, %v586, 0
      %v940 = vsel %vm935, %v754, 0
      %942 = vmatprep.subr.bf16.mxu0 0
      %943 = vmatpush1.bf16.xpose.msra.mxu0 0
      %944 = vmatprep.subr.bf16.mxu0 0
      %945 = vmatpush1.bf16.xpose.msra.mxu0 0
      %946 = vmatprep.subr.bf16.mxu0 0
      %947 = vmatpush1.bf16.xpose.msra.mxu0 0
      %948 = vmatprep.subr.bf16.mxu0 0
      %949 = vmatpush1.bf16.xpose.msra.mxu0 0
      %950 = vmatprep.subr.bf16.mxu0 0
      %951 = vmatpush1.bf16.xpose.msra.mxu0 0
      %952 = vmatprep.subr.bf16.mxu0 0
      %953 = vmatpush1.bf16.xpose.msra.mxu0 0
      %954 = vmatprep.subr.bf16.mxu0 0
      %955 = vmatpush1.bf16.xpose.msra.mxu0 0
      %956 = vmatprep.subr.bf16.mxu0 0
      %957 = vmatpush1.bf16.xpose.msra.mxu0 %v940
      %958 = vmatprep.subr.bf16.mxu0 0
      %959 = vmatpush2.bf16.xpose.msra.mxu0 0
      %960 = vmatprep.subr.bf16.mxu0 0
      %961 = vmatpush2.bf16.xpose.msra.mxu0 0
      %962 = vmatprep.subr.bf16.mxu0 0
      %963 = vmatpush2.bf16.xpose.msra.mxu0 0
      %964 = vmatprep.subr.bf16.mxu0 0
      %965 = vmatpush2.bf16.xpose.msra.mxu0 0
      %966 = vmatprep.subr.bf16.mxu0 0
      %967 = vmatpush2.bf16.xpose.msra.mxu0 0
      %968 = vmatprep.subr.bf16.mxu0 0
      %969 = vmatpush2.bf16.xpose.msra.mxu0 0
      %970 = vmatprep.subr.bf16.mxu0 0
      %971 = vmatpush2.bf16.xpose.msra.mxu0 0
      %972 = vmatprep.subr.bf16.mxu0 0
      %973 = vmatpush2.bf16.xpose.msra.mxu0 0
      %974 = vmatprep.mubr.bf16.mxu0 0
      %975 = vmatmul.mubr.bf16.gmra.mxu0 %v937
      %v976 = vpop.f32.mrf.mxu0
      %v977 = vadd.f32 %v934, %v976
      %v978 = vpop.f32.mrf.mxu0
      %v979 = vpop.f32.mrf.mxu0
      %v980 = vpop.f32.mrf.mxu0
      %981 = vdwg.mxu0
      %v983 = vsel %vm935, %v589, 0
      %v986 = vsel %vm935, %v757, 0
      %988 = vmatprep.subr.bf16.mxu0 0
      %989 = vmatpush1.bf16.xpose.msra.mxu0 0
      %990 = vmatprep.subr.bf16.mxu0 0
      %991 = vmatpush1.bf16.xpose.msra.mxu0 0
      %992 = vmatprep.subr.bf16.mxu0 0
      %993 = vmatpush1.bf16.xpose.msra.mxu0 0
      %994 = vmatprep.subr.bf16.mxu0 0
      %995 = vmatpush1.bf16.xpose.msra.mxu0 0
      %996 = vmatprep.subr.bf16.mxu0 0
      %997 = vmatpush1.bf16.xpose.msra.mxu0 0
      %998 = vmatprep.subr.bf16.mxu0 0
      %999 = vmatpush1.bf16.xpose.msra.mxu0 0
      %1000 = vmatprep.subr.bf16.mxu0 0
      %1001 = vmatpush1.bf16.xpose.msra.mxu0 0
      %1002 = vmatprep.subr.bf16.mxu0 0
      %1003 = vmatpush1.bf16.xpose.msra.mxu0 %v986
      %1004 = vmatprep.subr.bf16.mxu0 0
      %1005 = vmatpush2.bf16.xpose.msra.mxu0 0
      %1006 = vmatprep.subr.bf16.mxu0 0
      %1007 = vmatpush2.bf16.xpose.msra.mxu0 0
      %1008 = vmatprep.subr.bf16.mxu0 0
      %1009 = vmatpush2.bf16.xpose.msra.mxu0 0
      %1010 = vmatprep.subr.bf16.mxu0 0
      %1011 = vmatpush2.bf16.xpose.msra.mxu0 0
      %1012 = vmatprep.subr.bf16.mxu0 0
      %1013 = vmatpush2.bf16.xpose.msra.mxu0 0
      %1014 = vmatprep.subr.bf16.mxu0 0
      %1015 = vmatpush2.bf16.xpose.msra.mxu0 0
      %1016 = vmatprep.subr.bf16.mxu0 0
      %1017 = vmatpush2.bf16.xpose.msra.mxu0 0
      %1018 = vmatprep.subr.bf16.mxu0 0
      %1019 = vmatpush2.bf16.xpose.msra.mxu0 0
      %1020 = vmatprep.mubr.bf16.mxu0 0
      %1021 = vmatmul.mubr.bf16.gmra.mxu0 %v983
      %v1022 = vpop.f32.mrf.mxu0
      %v1023 = vadd.f32 %v934, %v1022
      %v1024 = vpop.f32.mrf.mxu0
      %v1025 = vpop.f32.mrf.mxu0
      %v1026 = vpop.f32.mrf.mxu0
      %1027 = vdwg.mxu0
      %v1029 = vsel %vm935, %v591, 0
      %v1032 = vsel %vm935, %v760, 0
      %1034 = vmatprep.subr.bf16.mxu0 0
      %1035 = vmatpush1.bf16.xpose.msra.mxu0 0
      %1036 = vmatprep.subr.bf16.mxu0 0
      %1037 = vmatpush1.bf16.xpose.msra.mxu0 0
      %1038 = vmatprep.subr.bf16.mxu0 0
      %1039 = vmatpush1.bf16.xpose.msra.mxu0 0
      %1040 = vmatprep.subr.bf16.mxu0 0
      %1041 = vmatpush1.bf16.xpose.msra.mxu0 0
      %1042 = vmatprep.subr.bf16.mxu0 0
      %1043 = vmatpush1.bf16.xpose.msra.mxu0 0
      %1044 = vmatprep.subr.bf16.mxu0 0
      %1045 = vmatpush1.bf16.xpose.msra.mxu0 0
      %1046 = vmatprep.subr.bf16.mxu0 0
      %1047 = vmatpush1.bf16.xpose.msra.mxu0 0
      %1048 = vmatprep.subr.bf16.mxu0 0
      %1049 = vmatpush1.bf16.xpose.msra.mxu0 %v1032
      %1050 = vmatprep.subr.bf16.mxu0 0
      %1051 = vmatpush2.bf16.xpose.msra.mxu0 0
      %1052 = vmatprep.subr.bf16.mxu0 0
      %1053 = vmatpush2.bf16.xpose.msra.mxu0 0
      %1054 = vmatprep.subr.bf16.mxu0 0
      %1055 = vmatpush2.bf16.xpose.msra.mxu0 0
      %1056 = vmatprep.subr.bf16.mxu0 0
      %1057 = vmatpush2.bf16.xpose.msra.mxu0 0
      %1058 = vmatprep.subr.bf16.mxu0 0
      %1059 = vmatpush2.bf16.xpose.msra.mxu0 0
      %1060 = vmatprep.subr.bf16.mxu0 0
      %1061 = vmatpush2.bf16.xpose.msra.mxu0 0
      %1062 = vmatprep.subr.bf16.mxu0 0
      %1063 = vmatpush2.bf16.xpose.msra.mxu0 0
      %1064 = vmatprep.subr.bf16.mxu0 0
      %1065 = vmatpush2.bf16.xpose.msra.mxu0 0
      %1066 = vmatprep.mubr.bf16.mxu0 0
      %1067 = vmatmul.mubr.bf16.gmra.mxu0 %v1029
      %v1068 = vpop.f32.mrf.mxu0
      %v1069 = vadd.f32 %v934, %v1068
      %v1070 = vpop.f32.mrf.mxu0
      %v1071 = vpop.f32.mrf.mxu0
      %v1072 = vpop.f32.mrf.mxu0
      %1073 = vdwg.mxu0
      %v1075 = vsel %vm935, %v593, 0
      %v1078 = vsel %vm935, %v763, 0
      %1080 = vmatprep.subr.bf16.mxu0 0
      %1081 = vmatpush1.bf16.xpose.msra.mxu0 0
      %1082 = vmatprep.subr.bf16.mxu0 0
      %1083 = vmatpush1.bf16.xpose.msra.mxu0 0
      %1084 = vmatprep.subr.bf16.mxu0 0
      %1085 = vmatpush1.bf16.xpose.msra.mxu0 0
      %1086 = vmatprep.subr.bf16.mxu0 0
      %1087 = vmatpush1.bf16.xpose.msra.mxu0 0
      %1088 = vmatprep.subr.bf16.mxu0 0
      %1089 = vmatpush1.bf16.xpose.msra.mxu0 0
      %1090 = vmatprep.subr.bf16.mxu0 0
      %1091 = vmatpush1.bf16.xpose.msra.mxu0 0
      %1092 = vmatprep.subr.bf16.mxu0 0
      %1093 = vmatpush1.bf16.xpose.msra.mxu0 0
      %1094 = vmatprep.subr.bf16.mxu0 0
      %1095 = vmatpush1.bf16.xpose.msra.mxu0 %v1078
      %1096 = vmatprep.subr.bf16.mxu0 0
      %1097 = vmatpush2.bf16.xpose.msra.mxu0 0
      %1098 = vmatprep.subr.bf16.mxu0 0
      %1099 = vmatpush2.bf16.xpose.msra.mxu0 0
      %1100 = vmatprep.subr.bf16.mxu0 0
      %1101 = vmatpush2.bf16.xpose.msra.mxu0 0
      %1102 = vmatprep.subr.bf16.mxu0 0
      %1103 = vmatpush2.bf16.xpose.msra.mxu0 0
      %1104 = vmatprep.subr.bf16.mxu0 0
      %1105 = vmatpush2.bf16.xpose.msra.mxu0 0
      %1106 = vmatprep.subr.bf16.mxu0 0
      %1107 = vmatpush2.bf16.xpose.msra.mxu0 0
      %1108 = vmatprep.subr.bf16.mxu0 0
      %1109 = vmatpush2.bf16.xpose.msra.mxu0 0
      %1110 = vmatprep.subr.bf16.mxu0 0
      %1111 = vmatpush2.bf16.xpose.msra.mxu0 0
      %1112 = vmatprep.mubr.bf16.mxu0 0
      %1113 = vmatmul.mubr.bf16.gmra.mxu0 %v1075
      %v1114 = vpop.f32.mrf.mxu0
      %v1115 = vadd.f32 %v934, %v1114
      %v1116 = vpop.f32.mrf.mxu0
      %v1117 = vpop.f32.mrf.mxu0
      %v1118 = vpop.f32.mrf.mxu0
      %1119 = vdwg.mxu0
      %vm1120 = vcmask 57344
      %v1121 = vsel %vm1120, %v977, -inf
      %1122 = vmax.xlane.f32.xlu0 %v1121
      %v1123 = vpop.xlane.xlu0 %1122
      %v1124 = vsel %vm1120, %v1023, -inf
      %1125 = vmax.xlane.f32.xlu0 %v1124
      %v1126 = vpop.xlane.xlu0 %1125
      %v1127 = vsel %vm1120, %v1069, -inf
      %1128 = vmax.xlane.f32.xlu0 %v1127
      %v1129 = vpop.xlane.xlu0 %1128
      %v1130 = vsel %vm1120, %v1115, -inf
      %1131 = vmax.xlane.f32.xlu0 %v1130
      %v1132 = vpop.xlane.xlu0 %1131
      %v1133 = vsub.f32 %v977, %v1123
      %v1134 = vsub.f32 %v1023, %v1126
      %v1135 = vsub.f32 %v1069, %v1129
      %v1136 = vsub.f32 %v1115, %v1132
      %v1137 = vmul.f32 %v1133, 1.442695
      %v1138 = vpow.pop %v1137
      %v1139 = vmul.f32 %v1134, 1.442695
      %v1140 = vpow.pop %v1139
      %v1141 = vmul.f32 %v1135, 1.442695
      %v1142 = vpow.pop %v1141
      %v1143 = vmul.f32 %v1136, 1.442695
      %v1144 = vpow.pop %v1143
      %v1145 = vsel %vm1120, %v1138, 0.0
      %1146 = vadd.xlane.f32.xlu0 %v1145
      %v1147 = vpop.xlane.xlu0 %1146
      %v1148 = vsel %vm1120, %v1140, 0.0
      %1149 = vadd.xlane.f32.xlu0 %v1148
      %v1150 = vpop.xlane.xlu0 %1149
      %v1151 = vsel %vm1120, %v1142, 0.0
      %1152 = vadd.xlane.f32.xlu0 %v1151
      %v1153 = vpop.xlane.xlu0 %1152
      %v1154 = vsel %vm1120, %v1144, 0.0
      %1155 = vadd.xlane.f32.xlu0 %v1154
      %v1156 = vpop.xlane.xlu0 %1155
      %v1157 = vrcp.pop %v1147
      %v1158 = vrcp.pop %v1150
      %v1159 = vrcp.pop %v1153
      %v1160 = vrcp.pop %v1156
      %v1161 = vmul.f32 %v1138, %v1157
      %v1162 = vmul.f32 %v1140, %v1158
      %v1163 = vmul.f32 %v1142, %v1159
      %v1164 = vmul.f32 %v1144, %v1160
      %v1165 = vpack.c.bf16 %v1161, %v1161
      %v1166 = vpack.c.bf16 %v1162, %v1162
      %v1167 = vpack.c.bf16 %v1163, %v1163
      %v1168 = vpack.c.bf16 %v1164, %v1164
      %v1170 = vsel %vm935, %v1165, 0
      %vm1172 = vcmask 1043456
      %v1174 = vsel %vm1172, %v924, 0
      %1176 = vmatprep.subr.bf16.mxu0 0
      %1177 = vmatpush1.bf16.msra.mxu0 0
      %1178 = vmatprep.subr.bf16.mxu0 0
      %1179 = vmatpush1.bf16.msra.mxu0 0
      %1180 = vmatprep.subr.bf16.mxu0 0
      %1181 = vmatpush1.bf16.msra.mxu0 0
      %1182 = vmatprep.subr.bf16.mxu0 0
      %1183 = vmatpush1.bf16.msra.mxu0 0
      %1184 = vmatprep.subr.bf16.mxu0 0
      %1185 = vmatpush1.bf16.msra.mxu0 0
      %1186 = vmatprep.subr.bf16.mxu0 0
      %1187 = vmatpush1.bf16.msra.mxu0 0
      %1188 = vmatprep.subr.bf16.mxu0 0
      %1189 = vmatpush1.bf16.msra.mxu0 0
      %1190 = vmatprep.subr.bf16.mxu0 0
      %1191 = vmatpush1.bf16.msra.mxu0 %v1174
      %1192 = vmatprep.subr.bf16.mxu0 0
      %1193 = vmatpush2.bf16.msra.mxu0 0
      %1194 = vmatprep.subr.bf16.mxu0 0
      %1195 = vmatpush2.bf16.msra.mxu0 0
      %1196 = vmatprep.subr.bf16.mxu0 0
      %1197 = vmatpush2.bf16.msra.mxu0 0
      %1198 = vmatprep.subr.bf16.mxu0 0
      %1199 = vmatpush2.bf16.msra.mxu0 0
      %1200 = vmatprep.subr.bf16.mxu0 0
      %1201 = vmatpush2.bf16.msra.mxu0 0
      %1202 = vmatprep.subr.bf16.mxu0 0
      %1203 = vmatpush2.bf16.msra.mxu0 0
      %1204 = vmatprep.subr.bf16.mxu0 0
      %1205 = vmatpush2.bf16.msra.mxu0 0
      %1206 = vmatprep.subr.bf16.mxu0 0
      %1207 = vmatpush2.bf16.msra.mxu0 0
      %1208 = vmatprep.mubr.bf16.mxu0 0
      %1209 = vmatmul.mubr.bf16.gmra.mxu0 %v1170
      %v1210 = vpop.f32.mrf.mxu0
      %v1211 = vadd.f32 0.0, %v1210
      %v1212 = vpop.f32.mrf.mxu0
      %v1213 = vpop.f32.mrf.mxu0
      %v1214 = vpop.f32.mrf.mxu0
      %1215 = vdwg.mxu0
      %v1217 = vsel %vm935, %v1166, 0
      %v1220 = vsel %vm1172, %v927, 0
      %1222 = vmatprep.subr.bf16.mxu0 0
      %1223 = vmatpush1.bf16.msra.mxu0 0
      %1224 = vmatprep.subr.bf16.mxu0 0
      %1225 = vmatpush1.bf16.msra.mxu0 0
      %1226 = vmatprep.subr.bf16.mxu0 0
      %1227 = vmatpush1.bf16.msra.mxu0 0
      %1228 = vmatprep.subr.bf16.mxu0 0
      %1229 = vmatpush1.bf16.msra.mxu0 0
      %1230 = vmatprep.subr.bf16.mxu0 0
      %1231 = vmatpush1.bf16.msra.mxu0 0
      %1232 = vmatprep.subr.bf16.mxu0 0
      %1233 = vmatpush1.bf16.msra.mxu0 0
      %1234 = vmatprep.subr.bf16.mxu0 0
      %1235 = vmatpush1.bf16.msra.mxu0 0
      %1236 = vmatprep.subr.bf16.mxu0 0
      %1237 = vmatpush1.bf16.msra.mxu0 %v1220
      %1238 = vmatprep.subr.bf16.mxu0 0
      %1239 = vmatpush2.bf16.msra.mxu0 0
      %1240 = vmatprep.subr.bf16.mxu0 0
      %1241 = vmatpush2.bf16.msra.mxu0 0
      %1242 = vmatprep.subr.bf16.mxu0 0
      %1243 = vmatpush2.bf16.msra.mxu0 0
      %1244 = vmatprep.subr.bf16.mxu0 0
      %1245 = vmatpush2.bf16.msra.mxu0 0
      %1246 = vmatprep.subr.bf16.mxu0 0
      %1247 = vmatpush2.bf16.msra.mxu0 0
      %1248 = vmatprep.subr.bf16.mxu0 0
      %1249 = vmatpush2.bf16.msra.mxu0 0
      %1250 = vmatprep.subr.bf16.mxu0 0
      %1251 = vmatpush2.bf16.msra.mxu0 0
      %1252 = vmatprep.subr.bf16.mxu0 0
      %1253 = vmatpush2.bf16.msra.mxu0 0
      %1254 = vmatprep.mubr.bf16.mxu0 0
      %1255 = vmatmul.mubr.bf16.gmra.mxu0 %v1217
      %v1256 = vpop.f32.mrf.mxu0
      %v1257 = vadd.f32 0.0, %v1256
      %v1258 = vpop.f32.mrf.mxu0
      %v1259 = vpop.f32.mrf.mxu0
      %v1260 = vpop.f32.mrf.mxu0
      %1261 = vdwg.mxu0
      %v1263 = vsel %vm935, %v1167, 0
      %v1266 = vsel %vm1172, %v930, 0
      %1268 = vmatprep.subr.bf16.mxu0 0
      %1269 = vmatpush1.bf16.msra.mxu0 0
      %1270 = vmatprep.subr.bf16.mxu0 0
      %1271 = vmatpush1.bf16.msra.mxu0 0
      %1272 = vmatprep.subr.bf16.mxu0 0
      %1273 = vmatpush1.bf16.msra.mxu0 0
      %1274 = vmatprep.subr.bf16.mxu0 0
      %1275 = vmatpush1.bf16.msra.mxu0 0
      %1276 = vmatprep.subr.bf16.mxu0 0
      %1277 = vmatpush1.bf16.msra.mxu0 0
      %1278 = vmatprep.subr.bf16.mxu0 0
      %1279 = vmatpush1.bf16.msra.mxu0 0
      %1280 = vmatprep.subr.bf16.mxu0 0
      %1281 = vmatpush1.bf16.msra.mxu0 0
      %1282 = vmatprep.subr.bf16.mxu0 0
      %1283 = vmatpush1.bf16.msra.mxu0 %v1266
      %1284 = vmatprep.subr.bf16.mxu0 0
      %1285 = vmatpush2.bf16.msra.mxu0 0
      %1286 = vmatprep.subr.bf16.mxu0 0
      %1287 = vmatpush2.bf16.msra.mxu0 0
      %1288 = vmatprep.subr.bf16.mxu0 0
      %1289 = vmatpush2.bf16.msra.mxu0 0
      %1290 = vmatprep.subr.bf16.mxu0 0
      %1291 = vmatpush2.bf16.msra.mxu0 0
      %1292 = vmatprep.subr.bf16.mxu0 0
      %1293 = vmatpush2.bf16.msra.mxu0 0
      %1294 = vmatprep.subr.bf16.mxu0 0
      %1295 = vmatpush2.bf16.msra.mxu0 0
      %1296 = vmatprep.subr.bf16.mxu0 0
      %1297 = vmatpush2.bf16.msra.mxu0 0
      %1298 = vmatprep.subr.bf16.mxu0 0
      %1299 = vmatpush2.bf16.msra.mxu0 0
      %1300 = vmatprep.mubr.bf16.mxu0 0
      %1301 = vmatmul.mubr.bf16.gmra.mxu0 %v1263
      %v1302 = vpop.f32.mrf.mxu0
      %v1303 = vadd.f32 0.0, %v1302
      %v1304 = vpop.f32.mrf.mxu0
      %v1305 = vpop.f32.mrf.mxu0
      %v1306 = vpop.f32.mrf.mxu0
      %1307 = vdwg.mxu0
      %v1309 = vsel %vm935, %v1168, 0
      %v1312 = vsel %vm1172, %v933, 0
      %1314 = vmatprep.subr.bf16.mxu0 0
      %1315 = vmatpush1.bf16.msra.mxu0 0
      %1316 = vmatprep.subr.bf16.mxu0 0
      %1317 = vmatpush1.bf16.msra.mxu0 0
      %1318 = vmatprep.subr.bf16.mxu0 0
      %1319 = vmatpush1.bf16.msra.mxu0 0
      %1320 = vmatprep.subr.bf16.mxu0 0
      %1321 = vmatpush1.bf16.msra.mxu0 0
      %1322 = vmatprep.subr.bf16.mxu0 0
      %1323 = vmatpush1.bf16.msra.mxu0 0
      %1324 = vmatprep.subr.bf16.mxu0 0
      %1325 = vmatpush1.bf16.msra.mxu0 0
      %1326 = vmatprep.subr.bf16.mxu0 0
      %1327 = vmatpush1.bf16.msra.mxu0 0
      %1328 = vmatprep.subr.bf16.mxu0 0
      %1329 = vmatpush1.bf16.msra.mxu0 %v1312
      %1330 = vmatprep.subr.bf16.mxu0 0
      %1331 = vmatpush2.bf16.msra.mxu0 0
      %1332 = vmatprep.subr.bf16.mxu0 0
      %1333 = vmatpush2.bf16.msra.mxu0 0
      %1334 = vmatprep.subr.bf16.mxu0 0
      %1335 = vmatpush2.bf16.msra.mxu0 0
      %1336 = vmatprep.subr.bf16.mxu0 0
      %1337 = vmatpush2.bf16.msra.mxu0 0
      %1338 = vmatprep.subr.bf16.mxu0 0
      %1339 = vmatpush2.bf16.msra.mxu0 0
      %1340 = vmatprep.subr.bf16.mxu0 0
      %1341 = vmatpush2.bf16.msra.mxu0 0
      %1342 = vmatprep.subr.bf16.mxu0 0
      %1343 = vmatpush2.bf16.msra.mxu0 0
      %1344 = vmatprep.subr.bf16.mxu0 0
      %1345 = vmatpush2.bf16.msra.mxu0 0
      %1346 = vmatprep.mubr.bf16.mxu0 0
      %1347 = vmatmul.mubr.bf16.gmra.mxu0 %v1309
      %v1348 = vpop.f32.mrf.mxu0
      %v1349 = vadd.f32 0.0, %v1348
      %v1350 = vpop.f32.mrf.mxu0
      %v1351 = vpop.f32.mrf.mxu0
      %v1352 = vpop.f32.mrf.mxu0
      %1353 = vdwg.mxu0
      %v1354 = vcombine.low %v1211, %v1303
      %v1356 = vunpack.c.l.s4 1983009808
      %v1357 = vunpack.c.0.s8 %v1356
      %v1358 = vlaneseq
      %v1359 = vshrl.u32 %v1358, 7
      %v1360 = vsub.s32 %v1357, %v1359
      %v1361 = vrot.slane %v1354, %v1360
      %v1362 = vcombine.low %v1257, %v1349
      %v1364 = vunpack.c.l.s4 1983009808
      %v1365 = vunpack.c.0.s8 %v1364
      %v1366 = vlaneseq
      %v1367 = vshrl.u32 %v1366, 7
      %v1368 = vsub.s32 %v1365, %v1367
      %v1369 = vrot.slane %v1362, %v1368
      %v1370 = vcombine.low %v1361, %v1369
      %v1372 = vunpack.c.l.s4 1934713408
      %v1373 = vunpack.c.0.s8 %v1372
      %v1374 = vlaneseq
      %v1375 = vshrl.u32 %v1374, 7
      %v1376 = vsub.s32 %v1373, %v1375
      %v1377 = vrot.slane %v1370, %v1376
      %v1379 = vunpack.c.l.s4 1983009808
      %v1380 = vunpack.c.0.s8 %v1379
      %v1381 = vlaneseq
      %v1382 = vshrl.u32 %v1381, 7
      %v1383 = vsub.s32 %v1380, %v1382
      %v1384 = vrot.slane %v1377, %v1383
      %v1385 = vcombine.high %v1384, 0.0
      %v1387 = vunpack.c.l.s4 1934713408
      %v1388 = vunpack.c.0.s8 %v1387
      %v1389 = vlaneseq
      %v1390 = vshrl.u32 %v1389, 7
      %v1391 = vsub.s32 %v1388, %v1390
      %v1392 = vrot.slane %v1384, %v1391
      %v1394 = vunpack.c.l.s4 1934713408
      %v1395 = vunpack.c.0.s8 %v1394
      %v1396 = vlaneseq
      %v1397 = vshrl.u32 %v1396, 7
      %v1398 = vsub.s32 %v1395, %v1397
      %v1399 = vrot.slane %v1385, %v1398
      %v1400 = vcombine.high %v1392, 0.0
      %v1401 = vcombine.high %v1399, 0.0
      %1403 = vrot.lane.b32.xlu0 %v1400, 8
      %v1404 = vpop.permute.xlu0 %1403
      %1407 = vrot.lane.b32.xlu0 %v1399, 16
      %v1408 = vpop.permute.xlu0 %1407
      %1411 = vrot.lane.b32.xlu0 %v1401, 24
      %v1412 = vpop.permute.xlu0 %1411
      %v1414 = vsel %vm935, %v1392, %v1404
      %vm1415 = vcmask 130048
      %v1416 = vsel %vm1415, %v1414, %v1408
      %vm1417 = vcmask 195584
      %v1418 = vsel %vm1417, %v1416, %v1412
      %v1419 = vpack.c.bf16 %v1418, %v1418
      %v1420 = vld [vmem:[%s4] sm:$0xf]
      %v1421 = vld [vmem:[%s4 + $0x4] sm:$0xf]
      %v1422 = vld [vmem:[%s4 + $0x8] sm:$0xf]
      %v1423 = vld [vmem:[%s4 + $0xc] sm:$0xf]
      %v1424 = vld [vmem:[%s5] sm:$0x1]
      %v1429 = vunpack.c.l.b16 %v1420
      %v1430 = vunpack.c.l.b16 %v1421
      %v1431 = vunpack.c.l.b16 %v1422
      %v1432 = vunpack.c.l.b16 %v1423
      %v1433 = vpack.c.b16 %v1430, %v1429
      %v1434 = vpack.c.b16 %v1432, %v1431
      %v1438 = vsel %vm500, %v1419, 0
      %1440 = vmatprep.subr.bf16.mxu0 0
      %1441 = vmatpush1.bf16.msra.mxu0 0
      %1442 = vmatprep.subr.bf16.mxu0 0
      %1443 = vmatpush1.bf16.msra.mxu0 0
      %1444 = vmatprep.subr.bf16.mxu0 0
      %1445 = vmatpush1.bf16.msra.mxu0 0
      %1446 = vmatprep.subr.bf16.mxu0 0
      %1447 = vmatpush1.bf16.msra.mxu0 0
      %1448 = vmatprep.subr.bf16.mxu0 0
      %1449 = vmatpush1.bf16.msra.mxu0 0
      %1450 = vmatprep.subr.bf16.mxu0 0
      %1451 = vmatpush1.bf16.msra.mxu0 0
      %1452 = vmatprep.subr.bf16.mxu0 0
      %1453 = vmatpush1.bf16.msra.mxu0 %v1434
      %1454 = vmatprep.subr.bf16.mxu0 0
      %1455 = vmatpush1.bf16.msra.mxu0 %v1433
      %1456 = vmatprep.subr.bf16.mxu0 0
      %1457 = vmatpush2.bf16.msra.mxu0 0
      %1458 = vmatprep.subr.bf16.mxu0 0
      %1459 = vmatpush2.bf16.msra.mxu0 0
      %1460 = vmatprep.subr.bf16.mxu0 0
      %1461 = vmatpush2.bf16.msra.mxu0 0
      %1462 = vmatprep.subr.bf16.mxu0 0
      %1463 = vmatpush2.bf16.msra.mxu0 0
      %1464 = vmatprep.subr.bf16.mxu0 0
      %1465 = vmatpush2.bf16.msra.mxu0 0
      %1466 = vmatprep.subr.bf16.mxu0 0
      %1467 = vmatpush2.bf16.msra.mxu0 0
      %1468 = vmatprep.subr.bf16.mxu0 0
      %1469 = vmatpush2.bf16.msra.mxu0 0
      %1470 = vmatprep.subr.bf16.mxu0 0
      %1471 = vmatpush2.bf16.msra.mxu0 0
      %1472 = vmatprep.mubr.bf16.mxu0 0
      %1473 = vmatmul.mubr.bf16.gmra.mxu0 %v1438
      %v1474 = vpop.f32.mrf.mxu0
      %v1475 = vadd.f32 %v1424, %v1474
      %v1476 = vpop.f32.mrf.mxu0
      %v1477 = vpop.f32.mrf.mxu0
      %v1478 = vpop.f32.mrf.mxu0
      %1479 = vdwg.mxu0
      %v1480 = vadd.f32 %v1475, %v545
      %v1481 = vld [vmem:[%s6] sm:$0x1]
      %v1482 = vld [vmem:[%s7] sm:$0x1]
      %vm1483 = vcmask 253952
      %v1484 = vsel %vm1483, %v1480, 0.0
      %1485 = vadd.xlane.f32.xlu0 %v1484
      %v1486 = vpop.xlane.xlu0 %1485
      %v1487 = vrcp.pop 32.0
      %v1488 = vmul.f32 %v1486, %v1487
      %v1489 = vsub.f32 %v1480, %v1488
      %v1490 = vmul.f32 %v1489, %v1489
      %v1491 = vsel %vm1483, %v1490, 0.0
      %1492 = vadd.xlane.f32.xlu0 %v1491
      %v1493 = vpop.xlane.xlu0 %1492
      %v1494 = vmul.f32 %v1493, %v1487
      %v1495 = vadd.f32 %v1494, 1e-12
      %v1496 = vrsqrt.pop %v1495
      %v1497 = vmul.f32 %v1489, %v1496
      %v1498 = vmul.f32 %v1497, %v1481
      %v1499 = vadd.f32 %v1498, %v1482
      %v1500 = vpack.c.bf16 %v1499, %v1499
      %v1501 = vld [vmem:[%s8] sm:$0xf]
      %v1502 = vld [vmem:[%s8 + $0x4] sm:$0xf]
      %v1503 = vld [vmem:[%s8 + $0x8] sm:$0xf]
      %v1504 = vld [vmem:[%s8 + $0xc] sm:$0xf]
      %v1505 = vld [vmem:[%s9] sm:$0x1]
      %v1510 = vunpack.c.l.b16 %v1501
      %v1511 = vunpack.c.l.b16 %v1502
      %v1512 = vunpack.c.l.b16 %v1503
      %v1513 = vunpack.c.l.b16 %v1504
      %v1514 = vpack.c.b16 %v1511, %v1510
      %v1515 = vpack.c.b16 %v1513, %v1512
      %v1519 = vsel %vm500, %v1500, 0
      %1521 = vmatprep.subr.bf16.mxu0 0
      %1522 = vmatpush1.bf16.msra.mxu0 0
      %1523 = vmatprep.subr.bf16.mxu0 0
      %1524 = vmatpush1.bf16.msra.mxu0 0
      %1525 = vmatprep.subr.bf16.mxu0 0
      %1526 = vmatpush1.bf16.msra.mxu0 0
      %1527 = vmatprep.subr.bf16.mxu0 0
      %1528 = vmatpush1.bf16.msra.mxu0 0
      %1529 = vmatprep.subr.bf16.mxu0 0
      %1530 = vmatpush1.bf16.msra.mxu0 0
      %1531 = vmatprep.subr.bf16.mxu0 0
      %1532 = vmatpush1.bf16.msra.mxu0 0
      %1533 = vmatprep.subr.bf16.mxu0 0
      %1534 = vmatpush1.bf16.msra.mxu0 %v1515
      %1535 = vmatprep.subr.bf16.mxu0 0
      %1536 = vmatpush1.bf16.msra.mxu0 %v1514
      %1537 = vmatprep.subr.bf16.mxu0 0
      %1538 = vmatpush2.bf16.msra.mxu0 0
      %1539 = vmatprep.subr.bf16.mxu0 0
      %1540 = vmatpush2.bf16.msra.mxu0 0
      %1541 = vmatprep.subr.bf16.mxu0 0
      %1542 = vmatpush2.bf16.msra.mxu0 0
      %1543 = vmatprep.subr.bf16.mxu0 0
      %1544 = vmatpush2.bf16.msra.mxu0 0
      %1545 = vmatprep.subr.bf16.mxu0 0
      %1546 = vmatpush2.bf16.msra.mxu0 0
      %1547 = vmatprep.subr.bf16.mxu0 0
      %1548 = vmatpush2.bf16.msra.mxu0 0
      %1549 = vmatprep.subr.bf16.mxu0 0
      %1550 = vmatpush2.bf16.msra.mxu0 0
      %1551 = vmatprep.subr.bf16.mxu0 0
      %1552 = vmatpush2.bf16.msra.mxu0 0
      %1553 = vmatprep.mubr.bf16.mxu0 0
      %1554 = vmatmul.mubr.bf16.gmra.mxu0 %v1519
      %v1555 = vpop.f32.mrf.mxu0
      %v1556 = vadd.f32 %v1505, %v1555
      %v1557 = vpop.f32.mrf.mxu0
      %v1558 = vpop.f32.mrf.mxu0
      %v1559 = vpop.f32.mrf.mxu0
      %1560 = vdwg.mxu0
      %v1561 = vmul.f32 %v1556, 0.5
      %v1562 = vmul.f32 %v1556, 0.044715
      %v1563 = vmul.f32 %v1562, %v1556
      %v1564 = vmul.f32 %v1563, %v1556
      %v1565 = vadd.f32 %v1556, %v1564
      %v1566 = vmul.f32 %v1565, 0.7978846
      %v1567 = vtanh.pop %v1566
      %v1568 = vadd.f32 %v1567, 1.0
      %v1569 = vmul.f32 %v1561, %v1568
      %v1570 = vpack.c.bf16 %v1569, %v1569
      %v1571 = vld [vmem:[%s10] sm:$0xf]
      %v1572 = vld [vmem:[%s10 + $0x4] sm:$0xf]
      %v1573 = vld [vmem:[%s10 + $0x8] sm:$0xf]
      %v1574 = vld [vmem:[%s10 + $0xc] sm:$0xf]
      %v1575 = vld [vmem:[%s10 + $0x10] sm:$0xf]
      %v1576 = vld [vmem:[%s10 + $0x14] sm:$0xf]
      %v1577 = vld [vmem:[%s10 + $0x18] sm:$0xf]
      %v1578 = vld [vmem:[%s10 + $0x1c] sm:$0xf]
      %v1579 = vld [vmem:[%s11] sm:$0x1]
      %v1588 = vunpack.c.l.b16 %v1571
      %v1589 = vunpack.c.l.b16 %v1572
      %v1590 = vunpack.c.l.b16 %v1573
      %v1591 = vunpack.c.l.b16 %v1574
      %v1592 = vunpack.c.l.b16 %v1575
      %v1593 = vunpack.c.l.b16 %v1576
      %v1594 = vunpack.c.l.b16 %v1577
      %v1595 = vunpack.c.l.b16 %v1578
      %v1596 = vpack.c.b16 %v1589, %v1588
      %v1597 = vpack.c.b16 %v1591, %v1590
      %v1598 = vpack.c.b16 %v1593, %v1592
      %v1599 = vpack.c.b16 %v1595, %v1594
      %vm1604 = vcmask 523264
      %v1606 = vsel %vm1604, %v1570, 0
      %1608 = vmatprep.subr.bf16.mxu0 0
      %1609 = vmatpush1.bf16.msra.mxu0 0
      %1610 = vmatprep.subr.bf16.mxu0 0
      %1611 = vmatpush1.bf16.msra.mxu0 0
      %1612 = vmatprep.subr.bf16.mxu0 0
      %1613 = vmatpush1.bf16.msra.mxu0 0
      %1614 = vmatprep.subr.bf16.mxu0 0
      %1615 = vmatpush1.bf16.msra.mxu0 0
      %1616 = vmatprep.subr.bf16.mxu0 0
      %1617 = vmatpush1.bf16.msra.mxu0 %v1599
      %1618 = vmatprep.subr.bf16.mxu0 0
      %1619 = vmatpush1.bf16.msra.mxu0 %v1598
      %1620 = vmatprep.subr.bf16.mxu0 0
      %1621 = vmatpush1.bf16.msra.mxu0 %v1597
      %1622 = vmatprep.subr.bf16.mxu0 0
      %1623 = vmatpush1.bf16.msra.mxu0 %v1596
      %1624 = vmatprep.subr.bf16.mxu0 0
      %1625 = vmatpush2.bf16.msra.mxu0 0
      %1626 = vmatprep.subr.bf16.mxu0 0
      %1627 = vmatpush2.bf16.msra.mxu0 0
      %1628 = vmatprep.subr.bf16.mxu0 0
      %1629 = vmatpush2.bf16.msra.mxu0 0
      %1630 = vmatprep.subr.bf16.mxu0 0
      %1631 = vmatpush2.bf16.msra.mxu0 0
      %1632 = vmatprep.subr.bf16.mxu0 0
      %1633 = vmatpush2.bf16.msra.mxu0 0
      %1634 = vmatprep.subr.bf16.mxu0 0
      %1635 = vmatpush2.bf16.msra.mxu0 0
      %1636 = vmatprep.subr.bf16.mxu0 0
      %1637 = vmatpush2.bf16.msra.mxu0 0
      %1638 = vmatprep.subr.bf16.mxu0 0
      %1639 = vmatpush2.bf16.msra.mxu0 0
      %1640 = vmatprep.mubr.bf16.mxu0 0
      %1641 = vmatmul.mubr.bf16.gmra.mxu0 %v1606
      %v1642 = vpop.f32.mrf.mxu0
      %v1643 = vadd.f32 %v1579, %v1642
      %v1644 = vpop.f32.mrf.mxu0
      %v1645 = vpop.f32.mrf.mxu0
      %v1646 = vpop.f32.mrf.mxu0
      %1647 = vdwg.mxu0
      %v1648 = vadd.f32 %v1643, %v1499
      %v1649 = vld [vmem:[%s12] sm:$0x1]
      %v1650 = vld [vmem:[%s13] sm:$0x1]
      %v1651 = vsel %vm1483, %v1648, 0.0
      %1652 = vadd.xlane.f32.xlu0 %v1651
      %v1653 = vpop.xlane.xlu0 %1652
      %v1654 = vmul.f32 %v1653, %v1487
      %v1655 = vsub.f32 %v1648, %v1654
      %v1656 = vmul.f32 %v1655, %v1655
      %v1657 = vsel %vm1483, %v1656, 0.0
      %1658 = vadd.xlane.f32.xlu0 %v1657
      %v1659 = vpop.xlane.xlu0 %1658
      %v1660 = vmul.f32 %v1659, %v1487
      %v1661 = vadd.f32 %v1660, 1e-12
      %v1662 = vrsqrt.pop %v1661
      %v1663 = vmul.f32 %v1655, %v1662
      %v1664 = vmul.f32 %v1663, %v1649
      %v1665 = vadd.f32 %v1664, %v1650
      %v1666 = vpack.c.bf16 %v1665, %v1665
      %vm1667 = vcmask 253952
      %vm1668 = vsmask.f32 256
      %vm1669 = vmand %vm1667, %vm1668
      %v1670 = vld [vmem:[%s474] sm:$0x1]
      %v1671 = vsel %vm1669, %v1666, %v1670
      %1672 = vst [vmem:[%s474] sm:$0x1] %v1671
      %p1673 = scmp.lt.s32.totalorder %s25, 1
      %s1674 = scalar_select %p1673, %s25, 1
      %s1675 = scalar_lea.vmem %s14, %s1674
      // Predicated region
      $region77: #{electra_cls_forward.6} parent=75 // pred_check
        %p1676 = pneg %p347
      $region78: #{electra_cls_forward.6} parent=75 // pred_check_branch
        %1678 = sbr.rel (%p1676) target = $region80
      $region79: #{electra_cls_forward.6} parent=75 // pred_region
        _
      $region80: #{electra_cls_forward.6} parent=75 // pred_fallthru
        _
    $region76: #{electra_cls_forward.6} parent=5 // pred_fallthru
      _
    %p1679 = scmp.le.s32.totalorder 2, %s20
    // Predicated region
    $region81: #{electra_cls_forward.6} parent=5 // pred_check
      %p1680 = pneg %p1679
    $region82: #{electra_cls_forward.6} parent=5 // pred_check_branch
      %1682 = sbr.rel (%p1680) target = $region84
    $region83: #{electra_cls_forward.6} parent=5 // pred_region
      %s1683 = ssub.s32 %s20, 2
      // Predicated region
      $region85: #{electra_cls_forward.6} parent=83 // pred_check
        %p1684 = pneg %p353
      $region86: #{electra_cls_forward.6} parent=83 // pred_check_branch
        %1686 = sbr.rel (%p1684) target = $region88
      $region87: #{electra_cls_forward.6} parent=83 // pred_region
        %p1687 = scmp.lt.s32.totalorder %s26, 1
        %s1688 = scalar_select %p1687, %s26, 1
        %s1689 = scalar_lea.vmem %s14, %s1688
      $region88: #{electra_cls_forward.6} parent=83 // pred_fallthru
        _
    $region84: #{electra_cls_forward.6} parent=5 // pred_fallthru
      _
  $region6: #{electra_cls_forward.6} parent=0 // loop_footer
    %s24 = sadd.s32 1, %s20
  $region7: #{electra_cls_forward.6} parent=0 // loop_footer_branch
    %19 = sbr.rel target = $region3
  $region8: #{electra_cls_forward.6} parent=0 // loop_exit
    _

</llo_original>
